<compile_context>
chip_gen: v7x
topology: tpu7x:2x2x1
jax: 0.10.0
libtpu: 0.0.40
codegen_flags: <defaults>
</compile_context>

<pallas_src>
import functools

import jax
import jax.numpy as jnp
from jax import lax
from jax.experimental import pallas as pl
from jax.experimental.pallas import tpu as pltpu


def _convgru_kernel(cat1_ref, w1_ref, w2_ref, b_ref, out_ref, pad2_ref, *, wp):
    # cat1_ref: (1, CTOT, NPAD)  channels-first [state, input], spatially
    #           zero-padded (H+2, W+2) plane flattened into the lane dim.
    # w1_ref  : (3, 3, 3*CO, CTOT) per-tap transposed weights
    #           rows 0:CO = wr^T, CO:2CO = wu^T, 2CO:3CO = [0 | ws_x^T].
    # w2_ref  : (3, 3, CO, CO)     per-tap transposed ws_h weights.
    # b_ref   : (3*CO, 1)          [br; bu; bs].
    # out_ref : (1, CO, L)         new state, flat with row stride wp (= W+2).
    # pad2_ref: VMEM scratch (CO, NPAD) zero-padded reset_gate*state plane.
    n1 = w1_ref.shape[2]
    co = w2_ref.shape[2]
    L = out_ref.shape[2]

    cat1 = cat1_ref[0]                                   # (CTOT, NPAD)

    # ---- pass 1: fused [reset | update | state_x] conv, 9 taps --------------
    acc1 = jnp.zeros((n1, L), jnp.float32)
    for ky in range(3):
        for kx in range(3):
            off = ky * wp + kx
            acc1 = acc1 + jnp.dot(w1_ref[ky, kx], cat1[:, off:off + L],
                                  preferred_element_type=jnp.float32)
    acc1 = acc1 + b_ref[...]                             # broadcast over lanes

    r = jax.nn.sigmoid(acc1[0:co])                       # reset gate
    u = jax.nn.sigmoid(acc1[co:2 * co])                  # update gate
    sx = acc1[2 * co:3 * co]                             # x-part of state conv (+bs)

    # previous state in the same flat layout = centre tap of the padded plane
    h = cat1[0:co, wp + 1:wp + 1 + L]

    # ---- pass 2: ws_h conv over reset_gate * state ---------------------------
    pad2_ref[...] = jnp.zeros_like(pad2_ref)
    pad2_ref[:, wp + 1:wp + 1 + L] = r * h
    pad2 = pad2_ref[...]

    acc2 = jnp.zeros((co, L), jnp.float32)
    for ky in range(3):
        for kx in range(3):
            off = ky * wp + kx
            acc2 = acc2 + jnp.dot(w2_ref[ky, kx], pad2[:, off:off + L],
                                  preferred_element_type=jnp.float32)

    s = jnp.tanh(sx + acc2)
    out_ref[0] = (1.0 - u) * h + u * s


@jax.jit
def conv_gru_cell(x, h, params):
    """x: (B, H, W, Cin)  h: (B, H, W, Cout)  -> new state (B, H, W, Cout)."""
    B, H, W, Cin = x.shape
    Cout = h.shape[-1]
    Ctot = Cin + Cout
    WP = W + 2                       # padded row length (flat row stride)
    L = H * WP                       # flat output length (incl. 2 junk cols/row)
    flat_real = (H + 2) * WP
    NPAD = max(flat_real, 2 * WP + 2 + L)
    NPAD = ((NPAD + 127) // 128) * 128

    # cat(state, input) -> zero-pad spatially -> channels-first -> flatten plane.
    cat1 = jnp.concatenate([h, x], axis=-1)                       # (B,H,W,Ctot)
    cat1 = jnp.pad(cat1, ((0, 0), (1, 1), (1, 1), (0, 0)))        # (B,H+2,WP,Ctot)
    cat1 = jnp.transpose(cat1, (0, 3, 1, 2)).reshape(B, Ctot, flat_real)
    cat1 = jnp.pad(cat1, ((0, 0), (0, 0), (0, NPAD - flat_real))) # (B,Ctot,NPAD)

    # per-tap transposed weights (3,3,Cout,Ctot); fuse gates along output axis.
    wr_t = jnp.transpose(params["wr"], (0, 1, 3, 2))
    wu_t = jnp.transpose(params["wu"], (0, 1, 3, 2))
    ws_t = jnp.transpose(params["ws"], (0, 1, 3, 2))
    ws_x_t = ws_t.at[:, :, :, :Cout].set(0.0)          # keep only input-channel part
    w1 = jnp.concatenate([wr_t, wu_t, ws_x_t], axis=2)  # (3,3,3*Cout,Ctot)
    w2 = ws_t[:, :, :, :Cout]                            # ws_h^T  (3,3,Cout,Cout)
    bias = jnp.concatenate(
        [params["br"], params["bu"], params["bs"]]).reshape(3 * Cout, 1)

    kernel = functools.partial(_convgru_kernel, wp=WP)
    out_flat = pl.pallas_call(
        kernel,
        out_shape=jax.ShapeDtypeStruct((B, Cout, L), jnp.float32),
        grid_spec=pltpu.PrefetchScalarGridSpec(
            num_scalar_prefetch=0,
            grid=(B,),
            in_specs=[
                pl.BlockSpec((1, Ctot, NPAD), lambda b: (b, 0, 0)),
                pl.BlockSpec((3, 3, 3 * Cout, Ctot), lambda b: (0, 0, 0, 0)),
                pl.BlockSpec((3, 3, Cout, Cout), lambda b: (0, 0, 0, 0)),
                pl.BlockSpec((3 * Cout, 1), lambda b: (0, 0)),
            ],
            out_specs=pl.BlockSpec((1, Cout, L), lambda b: (b, 0, 0)),
            scratch_shapes=[pltpu.VMEM((Cout, NPAD), jnp.float32)],
        ),
        compiler_params=pltpu.CompilerParams(
            dimension_semantics=("parallel",)),   # 1 batch element / TC on v7x
    )(cat1, w1, w2, bias)

    # un-flatten: (B, Cout, H, WP) -> drop 2 pad columns -> NHWC
    out = out_flat.reshape(B, Cout, H, WP)[:, :, :, :W]
    return jnp.transpose(out, (0, 2, 3, 1))


def conv_gru_cell_ref(x, h, params):
    """Pure-JAX reference mirroring the PyTorch forward (NHWC / HWIO)."""
    def conv(inp, w, b):
        y = lax.conv_general_dilated(
            inp, w, window_strides=(1, 1), padding="SAME",
            dimension_numbers=("NHWC", "HWIO", "NHWC"))
        return y + b

    cat1 = jnp.concatenate([h, x], axis=-1)
    r = jax.nn.sigmoid(conv(cat1, params["wr"], params["br"]))
    u = jax.nn.sigmoid(conv(cat1, params["wu"], params["bu"]))
    cat2 = jnp.concatenate([r * h, x], axis=-1)
    s = jnp.tanh(conv(cat2, params["ws"], params["bs"]))
    return (1.0 - u) * h + u * s


if __name__ == "__main__":
    B, H, W = 2, 16, 16
    Cin, Cout = 4, 8          # in_channels=4, out_channels=8, kernel=3, stride=1
    Ctot = Cin + Cout

    key = jax.random.PRNGKey(0)
    kx, kh, k1, k2, k3, k4, k5, k6 = jax.random.split(key, 8)

    x = jax.random.normal(kx, (B, H, W, Cin), jnp.float32)
    h = jax.random.normal(kh, (B, H, W, Cout), jnp.float32)

    scale = 0.1
    params = {
        "wr": scale * jax.random.normal(k1, (3, 3, Ctot, Cout), jnp.float32),
        "wu": scale * jax.random.normal(k2, (3, 3, Ctot, Cout), jnp.float32),
        "ws": scale * jax.random.normal(k3, (3, 3, Ctot, Cout), jnp.float32),
        "br": scale * jax.random.normal(k4, (Cout,), jnp.float32),
        "bu": scale * jax.random.normal(k5, (Cout,), jnp.float32),
        "bs": scale * jax.random.normal(k6, (Cout,), jnp.float32),
    }

    out = conv_gru_cell(x, h, params)
    out = jax.block_until_ready(out)

    ref = conv_gru_cell_ref(x, h, params)
    assert out.shape == (B, H, W, Cout)
    err = float(jnp.max(jnp.abs(out - ref)))
    assert jnp.allclose(out, ref, atol=1e-4, rtol=1e-4), err

    print("KERNEL_OK")
</pallas_src>

<mosaic_0001>
module attributes {stable_mosaic.version = 11 : i64} {
  func.func @_convgru_kernel(%arg0: i32, %arg1: memref<1x12x384xf32, #tpu.memory_space<vmem>>, %arg2: memref<3x3x24x12xf32, #tpu.memory_space<vmem>>, %arg3: memref<3x3x8x8xf32, #tpu.memory_space<vmem>>, %arg4: memref<24x1xf32, #tpu.memory_space<vmem>>, %arg5: memref<1x8x288xf32, #tpu.memory_space<vmem>>, %arg6: memref<8x384xf32, #tpu.memory_space<vmem>>) attributes {dimension_semantics = [#tpu.dimension_semantics<parallel>], iteration_bounds = array<i64: 2>, scalar_prefetch = 0 : i64, scratch_operands = 1 : i64, tpu.core_type = #tpu.core_type<tc>, window_params = [{transform_indices = @transform_0, window_bounds = array<i64: 1, 12, 384>}, {pipeline_mode = #tpu.pipeline_mode<synchronous>, transform_indices = @transform_1, window_bounds = array<i64: 3, 3, 24, 12>}, {pipeline_mode = #tpu.pipeline_mode<synchronous>, transform_indices = @transform_2, window_bounds = array<i64: 3, 3, 8, 8>}, {pipeline_mode = #tpu.pipeline_mode<synchronous>, transform_indices = @transform_3, window_bounds = array<i64: 24, 1>}, {transform_indices = @transform_4, window_bounds = array<i64: 1, 8, 288>}]} {
    %c0 = arith.constant 0 : index
    %c0_0 = arith.constant 0 : index
    %c0_1 = arith.constant 0 : index
    %0 = vector.load %arg1[%c0, %c0_0, %c0_1] : memref<1x12x384xf32, #tpu.memory_space<vmem>>, vector<1x12x384xf32>
    %1 = vector.shape_cast %0 : vector<1x12x384xf32> to vector<12x384xf32>
    %cst = arith.constant 0.000000e+00 : f32
    %2 = vector.broadcast %cst : f32 to vector<24x288xf32>
    %c0_2 = arith.constant 0 : index
    %c0_3 = arith.constant 0 : index
    %c0_4 = arith.constant 0 : index
    %c0_5 = arith.constant 0 : index
    %3 = vector.load %arg2[%c0_2, %c0_3, %c0_4, %c0_5] : memref<3x3x24x12xf32, #tpu.memory_space<vmem>>, vector<1x1x24x12xf32>
    %4 = vector.shape_cast %3 : vector<1x1x24x12xf32> to vector<24x12xf32>
    %5 = vector.extract_strided_slice %1 {offsets = [0, 0], sizes = [12, 288], strides = [1, 1]} : vector<12x384xf32> to vector<12x288xf32>
    %cst_6 = arith.constant dense<0.000000e+00> : vector<24x288xf32>
    %6 = tpu.matmul %4, %5, %cst_6 {dimension_numbers = #tpu.dot_dimension_numbers<[1], [0], [0], [1], [0, 0, 1, 1], [], []>} : vector<24x12xf32>, vector<12x288xf32>, vector<24x288xf32> -> vector<24x288xf32>
    %7 = arith.addf %2, %6 : vector<24x288xf32>
    %c0_7 = arith.constant 0 : index
    %c1 = arith.constant 1 : index
    %c0_8 = arith.constant 0 : index
    %c0_9 = arith.constant 0 : index
    %8 = vector.load %arg2[%c0_7, %c1, %c0_8, %c0_9] : memref<3x3x24x12xf32, #tpu.memory_space<vmem>>, vector<1x1x24x12xf32>
    %9 = vector.shape_cast %8 : vector<1x1x24x12xf32> to vector<24x12xf32>
    %10 = vector.extract_strided_slice %1 {offsets = [0, 1], sizes = [12, 288], strides = [1, 1]} : vector<12x384xf32> to vector<12x288xf32>
    %cst_10 = arith.constant dense<0.000000e+00> : vector<24x288xf32>
    %11 = tpu.matmul %9, %10, %cst_10 {dimension_numbers = #tpu.dot_dimension_numbers<[1], [0], [0], [1], [0, 0, 1, 1], [], []>} : vector<24x12xf32>, vector<12x288xf32>, vector<24x288xf32> -> vector<24x288xf32>
    %12 = arith.addf %7, %11 : vector<24x288xf32>
    %c0_11 = arith.constant 0 : index
    %c2 = arith.constant 2 : index
    %c0_12 = arith.constant 0 : index
    %c0_13 = arith.constant 0 : index
    %13 = vector.load %arg2[%c0_11, %c2, %c0_12, %c0_13] : memref<3x3x24x12xf32, #tpu.memory_space<vmem>>, vector<1x1x24x12xf32>
    %14 = vector.shape_cast %13 : vector<1x1x24x12xf32> to vector<24x12xf32>
    %15 = vector.extract_strided_slice %1 {offsets = [0, 2], sizes = [12, 288], strides = [1, 1]} : vector<12x384xf32> to vector<12x288xf32>
    %cst_14 = arith.constant dense<0.000000e+00> : vector<24x288xf32>
    %16 = tpu.matmul %14, %15, %cst_14 {dimension_numbers = #tpu.dot_dimension_numbers<[1], [0], [0], [1], [0, 0, 1, 1], [], []>} : vector<24x12xf32>, vector<12x288xf32>, vector<24x288xf32> -> vector<24x288xf32>
    %17 = arith.addf %12, %16 : vector<24x288xf32>
    %c1_15 = arith.constant 1 : index
    %c0_16 = arith.constant 0 : index
    %c0_17 = arith.constant 0 : index
    %c0_18 = arith.constant 0 : index
    %18 = vector.load %arg2[%c1_15, %c0_16, %c0_17, %c0_18] : memref<3x3x24x12xf32, #tpu.memory_space<vmem>>, vector<1x1x24x12xf32>
    %19 = vector.shape_cast %18 : vector<1x1x24x12xf32> to vector<24x12xf32>
    %20 = vector.extract_strided_slice %1 {offsets = [0, 18], sizes = [12, 288], strides = [1, 1]} : vector<12x384xf32> to vector<12x288xf32>
    %cst_19 = arith.constant dense<0.000000e+00> : vector<24x288xf32>
    %21 = tpu.matmul %19, %20, %cst_19 {dimension_numbers = #tpu.dot_dimension_numbers<[1], [0], [0], [1], [0, 0, 1, 1], [], []>} : vector<24x12xf32>, vector<12x288xf32>, vector<24x288xf32> -> vector<24x288xf32>
    %22 = arith.addf %17, %21 : vector<24x288xf32>
    %c1_20 = arith.constant 1 : index
    %c1_21 = arith.constant 1 : index
    %c0_22 = arith.constant 0 : index
    %c0_23 = arith.constant 0 : index
    %23 = vector.load %arg2[%c1_20, %c1_21, %c0_22, %c0_23] : memref<3x3x24x12xf32, #tpu.memory_space<vmem>>, vector<1x1x24x12xf32>
    %24 = vector.shape_cast %23 : vector<1x1x24x12xf32> to vector<24x12xf32>
    %25 = vector.extract_strided_slice %1 {offsets = [0, 19], sizes = [12, 288], strides = [1, 1]} : vector<12x384xf32> to vector<12x288xf32>
    %cst_24 = arith.constant dense<0.000000e+00> : vector<24x288xf32>
    %26 = tpu.matmul %24, %25, %cst_24 {dimension_numbers = #tpu.dot_dimension_numbers<[1], [0], [0], [1], [0, 0, 1, 1], [], []>} : vector<24x12xf32>, vector<12x288xf32>, vector<24x288xf32> -> vector<24x288xf32>
    %27 = arith.addf %22, %26 : vector<24x288xf32>
    %c1_25 = arith.constant 1 : index
    %c2_26 = arith.constant 2 : index
    %c0_27 = arith.constant 0 : index
    %c0_28 = arith.constant 0 : index
    %28 = vector.load %arg2[%c1_25, %c2_26, %c0_27, %c0_28] : memref<3x3x24x12xf32, #tpu.memory_space<vmem>>, vector<1x1x24x12xf32>
    %29 = vector.shape_cast %28 : vector<1x1x24x12xf32> to vector<24x12xf32>
    %30 = vector.extract_strided_slice %1 {offsets = [0, 20], sizes = [12, 288], strides = [1, 1]} : vector<12x384xf32> to vector<12x288xf32>
    %cst_29 = arith.constant dense<0.000000e+00> : vector<24x288xf32>
    %31 = tpu.matmul %29, %30, %cst_29 {dimension_numbers = #tpu.dot_dimension_numbers<[1], [0], [0], [1], [0, 0, 1, 1], [], []>} : vector<24x12xf32>, vector<12x288xf32>, vector<24x288xf32> -> vector<24x288xf32>
    %32 = arith.addf %27, %31 : vector<24x288xf32>
    %c2_30 = arith.constant 2 : index
    %c0_31 = arith.constant 0 : index
    %c0_32 = arith.constant 0 : index
    %c0_33 = arith.constant 0 : index
    %33 = vector.load %arg2[%c2_30, %c0_31, %c0_32, %c0_33] : memref<3x3x24x12xf32, #tpu.memory_space<vmem>>, vector<1x1x24x12xf32>
    %34 = vector.shape_cast %33 : vector<1x1x24x12xf32> to vector<24x12xf32>
    %35 = vector.extract_strided_slice %1 {offsets = [0, 36], sizes = [12, 288], strides = [1, 1]} : vector<12x384xf32> to vector<12x288xf32>
    %cst_34 = arith.constant dense<0.000000e+00> : vector<24x288xf32>
    %36 = tpu.matmul %34, %35, %cst_34 {dimension_numbers = #tpu.dot_dimension_numbers<[1], [0], [0], [1], [0, 0, 1, 1], [], []>} : vector<24x12xf32>, vector<12x288xf32>, vector<24x288xf32> -> vector<24x288xf32>
    %37 = arith.addf %32, %36 : vector<24x288xf32>
    %c2_35 = arith.constant 2 : index
    %c1_36 = arith.constant 1 : index
    %c0_37 = arith.constant 0 : index
    %c0_38 = arith.constant 0 : index
    %38 = vector.load %arg2[%c2_35, %c1_36, %c0_37, %c0_38] : memref<3x3x24x12xf32, #tpu.memory_space<vmem>>, vector<1x1x24x12xf32>
    %39 = vector.shape_cast %38 : vector<1x1x24x12xf32> to vector<24x12xf32>
    %40 = vector.extract_strided_slice %1 {offsets = [0, 37], sizes = [12, 288], strides = [1, 1]} : vector<12x384xf32> to vector<12x288xf32>
    %cst_39 = arith.constant dense<0.000000e+00> : vector<24x288xf32>
    %41 = tpu.matmul %39, %40, %cst_39 {dimension_numbers = #tpu.dot_dimension_numbers<[1], [0], [0], [1], [0, 0, 1, 1], [], []>} : vector<24x12xf32>, vector<12x288xf32>, vector<24x288xf32> -> vector<24x288xf32>
    %42 = arith.addf %37, %41 : vector<24x288xf32>
    %c2_40 = arith.constant 2 : index
    %c2_41 = arith.constant 2 : index
    %c0_42 = arith.constant 0 : index
    %c0_43 = arith.constant 0 : index
    %43 = vector.load %arg2[%c2_40, %c2_41, %c0_42, %c0_43] : memref<3x3x24x12xf32, #tpu.memory_space<vmem>>, vector<1x1x24x12xf32>
    %44 = vector.shape_cast %43 : vector<1x1x24x12xf32> to vector<24x12xf32>
    %45 = vector.extract_strided_slice %1 {offsets = [0, 38], sizes = [12, 288], strides = [1, 1]} : vector<12x384xf32> to vector<12x288xf32>
    %cst_44 = arith.constant dense<0.000000e+00> : vector<24x288xf32>
    %46 = tpu.matmul %44, %45, %cst_44 {dimension_numbers = #tpu.dot_dimension_numbers<[1], [0], [0], [1], [0, 0, 1, 1], [], []>} : vector<24x12xf32>, vector<12x288xf32>, vector<24x288xf32> -> vector<24x288xf32>
    %47 = arith.addf %42, %46 : vector<24x288xf32>
    %c0_45 = arith.constant 0 : index
    %c0_46 = arith.constant 0 : index
    %48 = vector.load %arg4[%c0_45, %c0_46] : memref<24x1xf32, #tpu.memory_space<vmem>>, vector<24x1xf32>
    %49 = vector.broadcast %48 : vector<24x1xf32> to vector<24x288xf32>
    %50 = arith.addf %47, %49 : vector<24x288xf32>
    %51 = vector.extract_strided_slice %50 {offsets = [0, 0], sizes = [8, 288], strides = [1, 1]} : vector<24x288xf32> to vector<8x288xf32>
    %52 = arith.negf %51 : vector<8x288xf32>
    %53 = math.exp %52 : vector<8x288xf32>
    %cst_47 = arith.constant 1.000000e+00 : f32
    %54 = vector.broadcast %cst_47 : f32 to vector<8x288xf32>
    %55 = arith.addf %54, %53 : vector<8x288xf32>
    %56 = arith.divf %54, %55 : vector<8x288xf32>
    %57 = vector.extract_strided_slice %50 {offsets = [8, 0], sizes = [8, 288], strides = [1, 1]} : vector<24x288xf32> to vector<8x288xf32>
    %58 = arith.negf %57 : vector<8x288xf32>
    %59 = math.exp %58 : vector<8x288xf32>
    %cst_48 = arith.constant 1.000000e+00 : f32
    %60 = vector.broadcast %cst_48 : f32 to vector<8x288xf32>
    %61 = arith.addf %60, %59 : vector<8x288xf32>
    %62 = arith.divf %60, %61 : vector<8x288xf32>
    %63 = vector.extract_strided_slice %50 {offsets = [16, 0], sizes = [8, 288], strides = [1, 1]} : vector<24x288xf32> to vector<8x288xf32>
    %64 = vector.extract_strided_slice %1 {offsets = [0, 19], sizes = [8, 288], strides = [1, 1]} : vector<12x384xf32> to vector<8x288xf32>
    %cst_49 = arith.constant 0.000000e+00 : f32
    %65 = vector.broadcast %cst_49 : f32 to vector<8x384xf32>
    %c0_50 = arith.constant 0 : index
    %c0_51 = arith.constant 0 : index
    %66 = vector.load %arg6[%c0_50, %c0_51] : memref<8x384xf32, #tpu.memory_space<vmem>>, vector<8x384xf32>
    tpu.vector_store %arg6[%c0_50, %c0_51], %65 {strides = array<i32>} : memref<8x384xf32, #tpu.memory_space<vmem>>, vector<8x384xf32>,
    %67 = arith.mulf %56, %64 : vector<8x288xf32>
    %c0_52 = arith.constant 0 : index
    %c19 = arith.constant 19 : index
    %68 = vector.load %arg6[%c0_52, %c19] : memref<8x384xf32, #tpu.memory_space<vmem>>, vector<8x288xf32>
    tpu.vector_store %arg6[%c0_52, %c19], %67 {strides = array<i32>} : memref<8x384xf32, #tpu.memory_space<vmem>>, vector<8x288xf32>,
    %c0_53 = arith.constant 0 : index
    %c0_54 = arith.constant 0 : index
    %69 = vector.load %arg6[%c0_53, %c0_54] : memref<8x384xf32, #tpu.memory_space<vmem>>, vector<8x384xf32>
    %cst_55 = arith.constant 0.000000e+00 : f32
    %70 = vector.broadcast %cst_55 : f32 to vector<8x288xf32>
    %c0_56 = arith.constant 0 : index
    %c0_57 = arith.constant 0 : index
    %c0_58 = arith.constant 0 : index
    %c0_59 = arith.constant 0 : index
    %71 = vector.load %arg3[%c0_56, %c0_57, %c0_58, %c0_59] : memref<3x3x8x8xf32, #tpu.memory_space<vmem>>, vector<1x1x8x8xf32>
    %72 = vector.shape_cast %71 : vector<1x1x8x8xf32> to vector<8x8xf32>
    %73 = vector.extract_strided_slice %69 {offsets = [0, 0], sizes = [8, 288], strides = [1, 1]} : vector<8x384xf32> to vector<8x288xf32>
    %cst_60 = arith.constant dense<0.000000e+00> : vector<8x288xf32>
    %74 = tpu.matmul %72, %73, %cst_60 {dimension_numbers = #tpu.dot_dimension_numbers<[1], [0], [0], [1], [0, 0, 1, 1], [], []>} : vector<8x8xf32>, vector<8x288xf32>, vector<8x288xf32> -> vector<8x288xf32>
    %75 = arith.addf %70, %74 : vector<8x288xf32>
    %c0_61 = arith.constant 0 : index
    %c1_62 = arith.constant 1 : index
    %c0_63 = arith.constant 0 : index
    %c0_64 = arith.constant 0 : index
    %76 = vector.load %arg3[%c0_61, %c1_62, %c0_63, %c0_64] : memref<3x3x8x8xf32, #tpu.memory_space<vmem>>, vector<1x1x8x8xf32>
    %77 = vector.shape_cast %76 : vector<1x1x8x8xf32> to vector<8x8xf32>
    %78 = vector.extract_strided_slice %69 {offsets = [0, 1], sizes = [8, 288], strides = [1, 1]} : vector<8x384xf32> to vector<8x288xf32>
    %cst_65 = arith.constant dense<0.000000e+00> : vector<8x288xf32>
    %79 = tpu.matmul %77, %78, %cst_65 {dimension_numbers = #tpu.dot_dimension_numbers<[1], [0], [0], [1], [0, 0, 1, 1], [], []>} : vector<8x8xf32>, vector<8x288xf32>, vector<8x288xf32> -> vector<8x288xf32>
    %80 = arith.addf %75, %79 : vector<8x288xf32>
    %c0_66 = arith.constant 0 : index
    %c2_67 = arith.constant 2 : index
    %c0_68 = arith.constant 0 : index
    %c0_69 = arith.constant 0 : index
    %81 = vector.load %arg3[%c0_66, %c2_67, %c0_68, %c0_69] : memref<3x3x8x8xf32, #tpu.memory_space<vmem>>, vector<1x1x8x8xf32>
    %82 = vector.shape_cast %81 : vector<1x1x8x8xf32> to vector<8x8xf32>
    %83 = vector.extract_strided_slice %69 {offsets = [0, 2], sizes = [8, 288], strides = [1, 1]} : vector<8x384xf32> to vector<8x288xf32>
    %cst_70 = arith.constant dense<0.000000e+00> : vector<8x288xf32>
    %84 = tpu.matmul %82, %83, %cst_70 {dimension_numbers = #tpu.dot_dimension_numbers<[1], [0], [0], [1], [0, 0, 1, 1], [], []>} : vector<8x8xf32>, vector<8x288xf32>, vector<8x288xf32> -> vector<8x288xf32>
    %85 = arith.addf %80, %84 : vector<8x288xf32>
    %c1_71 = arith.constant 1 : index
    %c0_72 = arith.constant 0 : index
    %c0_73 = arith.constant 0 : index
    %c0_74 = arith.constant 0 : index
    %86 = vector.load %arg3[%c1_71, %c0_72, %c0_73, %c0_74] : memref<3x3x8x8xf32, #tpu.memory_space<vmem>>, vector<1x1x8x8xf32>
    %87 = vector.shape_cast %86 : vector<1x1x8x8xf32> to vector<8x8xf32>
    %88 = vector.extract_strided_slice %69 {offsets = [0, 18], sizes = [8, 288], strides = [1, 1]} : vector<8x384xf32> to vector<8x288xf32>
    %cst_75 = arith.constant dense<0.000000e+00> : vector<8x288xf32>
    %89 = tpu.matmul %87, %88, %cst_75 {dimension_numbers = #tpu.dot_dimension_numbers<[1], [0], [0], [1], [0, 0, 1, 1], [], []>} : vector<8x8xf32>, vector<8x288xf32>, vector<8x288xf32> -> vector<8x288xf32>
    %90 = arith.addf %85, %89 : vector<8x288xf32>
    %c1_76 = arith.constant 1 : index
    %c1_77 = arith.constant 1 : index
    %c0_78 = arith.constant 0 : index
    %c0_79 = arith.constant 0 : index
    %91 = vector.load %arg3[%c1_76, %c1_77, %c0_78, %c0_79] : memref<3x3x8x8xf32, #tpu.memory_space<vmem>>, vector<1x1x8x8xf32>
    %92 = vector.shape_cast %91 : vector<1x1x8x8xf32> to vector<8x8xf32>
    %93 = vector.extract_strided_slice %69 {offsets = [0, 19], sizes = [8, 288], strides = [1, 1]} : vector<8x384xf32> to vector<8x288xf32>
    %cst_80 = arith.constant dense<0.000000e+00> : vector<8x288xf32>
    %94 = tpu.matmul %92, %93, %cst_80 {dimension_numbers = #tpu.dot_dimension_numbers<[1], [0], [0], [1], [0, 0, 1, 1], [], []>} : vector<8x8xf32>, vector<8x288xf32>, vector<8x288xf32> -> vector<8x288xf32>
    %95 = arith.addf %90, %94 : vector<8x288xf32>
    %c1_81 = arith.constant 1 : index
    %c2_82 = arith.constant 2 : index
    %c0_83 = arith.constant 0 : index
    %c0_84 = arith.constant 0 : index
    %96 = vector.load %arg3[%c1_81, %c2_82, %c0_83, %c0_84] : memref<3x3x8x8xf32, #tpu.memory_space<vmem>>, vector<1x1x8x8xf32>
    %97 = vector.shape_cast %96 : vector<1x1x8x8xf32> to vector<8x8xf32>
    %98 = vector.extract_strided_slice %69 {offsets = [0, 20], sizes = [8, 288], strides = [1, 1]} : vector<8x384xf32> to vector<8x288xf32>
    %cst_85 = arith.constant dense<0.000000e+00> : vector<8x288xf32>
    %99 = tpu.matmul %97, %98, %cst_85 {dimension_numbers = #tpu.dot_dimension_numbers<[1], [0], [0], [1], [0, 0, 1, 1], [], []>} : vector<8x8xf32>, vector<8x288xf32>, vector<8x288xf32> -> vector<8x288xf32>
    %100 = arith.addf %95, %99 : vector<8x288xf32>
    %c2_86 = arith.constant 2 : index
    %c0_87 = arith.constant 0 : index
    %c0_88 = arith.constant 0 : index
    %c0_89 = arith.constant 0 : index
    %101 = vector.load %arg3[%c2_86, %c0_87, %c0_88, %c0_89] : memref<3x3x8x8xf32, #tpu.memory_space<vmem>>, vector<1x1x8x8xf32>
    %102 = vector.shape_cast %101 : vector<1x1x8x8xf32> to vector<8x8xf32>
    %103 = vector.extract_strided_slice %69 {offsets = [0, 36], sizes = [8, 288], strides = [1, 1]} : vector<8x384xf32> to vector<8x288xf32>
    %cst_90 = arith.constant dense<0.000000e+00> : vector<8x288xf32>
    %104 = tpu.matmul %102, %103, %cst_90 {dimension_numbers = #tpu.dot_dimension_numbers<[1], [0], [0], [1], [0, 0, 1, 1], [], []>} : vector<8x8xf32>, vector<8x288xf32>, vector<8x288xf32> -> vector<8x288xf32>
    %105 = arith.addf %100, %104 : vector<8x288xf32>
    %c2_91 = arith.constant 2 : index
    %c1_92 = arith.constant 1 : index
    %c0_93 = arith.constant 0 : index
    %c0_94 = arith.constant 0 : index
    %106 = vector.load %arg3[%c2_91, %c1_92, %c0_93, %c0_94] : memref<3x3x8x8xf32, #tpu.memory_space<vmem>>, vector<1x1x8x8xf32>
    %107 = vector.shape_cast %106 : vector<1x1x8x8xf32> to vector<8x8xf32>
    %108 = vector.extract_strided_slice %69 {offsets = [0, 37], sizes = [8, 288], strides = [1, 1]} : vector<8x384xf32> to vector<8x288xf32>
    %cst_95 = arith.constant dense<0.000000e+00> : vector<8x288xf32>
    %109 = tpu.matmul %107, %108, %cst_95 {dimension_numbers = #tpu.dot_dimension_numbers<[1], [0], [0], [1], [0, 0, 1, 1], [], []>} : vector<8x8xf32>, vector<8x288xf32>, vector<8x288xf32> -> vector<8x288xf32>
    %110 = arith.addf %105, %109 : vector<8x288xf32>
    %c2_96 = arith.constant 2 : index
    %c2_97 = arith.constant 2 : index
    %c0_98 = arith.constant 0 : index
    %c0_99 = arith.constant 0 : index
    %111 = vector.load %arg3[%c2_96, %c2_97, %c0_98, %c0_99] : memref<3x3x8x8xf32, #tpu.memory_space<vmem>>, vector<1x1x8x8xf32>
    %112 = vector.shape_cast %111 : vector<1x1x8x8xf32> to vector<8x8xf32>
    %113 = vector.extract_strided_slice %69 {offsets = [0, 38], sizes = [8, 288], strides = [1, 1]} : vector<8x384xf32> to vector<8x288xf32>
    %cst_100 = arith.constant dense<0.000000e+00> : vector<8x288xf32>
    %114 = tpu.matmul %112, %113, %cst_100 {dimension_numbers = #tpu.dot_dimension_numbers<[1], [0], [0], [1], [0, 0, 1, 1], [], []>} : vector<8x8xf32>, vector<8x288xf32>, vector<8x288xf32> -> vector<8x288xf32>
    %115 = arith.addf %110, %114 : vector<8x288xf32>
    %116 = arith.addf %63, %115 : vector<8x288xf32>
    %117 = math.tanh %116 : vector<8x288xf32>
    %cst_101 = arith.constant 1.000000e+00 : f32
    %118 = vector.broadcast %cst_101 : f32 to vector<8x288xf32>
    %119 = arith.subf %118, %62 : vector<8x288xf32>
    %120 = arith.mulf %119, %64 : vector<8x288xf32>
    %121 = arith.mulf %62, %117 : vector<8x288xf32>
    %122 = arith.addf %120, %121 : vector<8x288xf32>
    %c0_102 = arith.constant 0 : index
    %c0_103 = arith.constant 0 : index
    %c0_104 = arith.constant 0 : index
    %123 = vector.load %arg5[%c0_102, %c0_103, %c0_104] : memref<1x8x288xf32, #tpu.memory_space<vmem>>, vector<1x8x288xf32>
    %124 = vector.shape_cast %123 : vector<1x8x288xf32> to vector<8x288xf32>
    %125 = vector.shape_cast %122 : vector<8x288xf32> to vector<1x8x288xf32>
    tpu.vector_store %arg5[%c0_102, %c0_103, %c0_104], %125 {strides = array<i32>} : memref<1x8x288xf32, #tpu.memory_space<vmem>>, vector<1x8x288xf32>,
    return
  }
  func.func @transform_0(%arg0: i32) -> (i32, i32, i32) {
    %c0_i32 = arith.constant 0 : i32
    %c0_i32_0 = arith.constant 0 : i32
    %c0_i32_1 = arith.constant 0 : i32
    return %arg0, %c0_i32, %c0_i32_0 : i32, i32, i32
  }
  func.func @transform_1(%arg0: i32) -> (i32, i32, i32, i32) {
    %c0_i32 = arith.constant 0 : i32
    %c0_i32_0 = arith.constant 0 : i32
    %c0_i32_1 = arith.constant 0 : i32
    %c0_i32_2 = arith.constant 0 : i32
    %c0_i32_3 = arith.constant 0 : i32
    return %c0_i32, %c0_i32_0, %c0_i32_1, %c0_i32_2 : i32, i32, i32, i32
  }
  func.func @transform_2(%arg0: i32) -> (i32, i32, i32, i32) {
    %c0_i32 = arith.constant 0 : i32
    %c0_i32_0 = arith.constant 0 : i32
    %c0_i32_1 = arith.constant 0 : i32
    %c0_i32_2 = arith.constant 0 : i32
    %c0_i32_3 = arith.constant 0 : i32
    return %c0_i32, %c0_i32_0, %c0_i32_1, %c0_i32_2 : i32, i32, i32, i32
  }
  func.func @transform_3(%arg0: i32) -> (i32, i32) {
    %c0_i32 = arith.constant 0 : i32
    %c0_i32_0 = arith.constant 0 : i32
    %c0_i32_1 = arith.constant 0 : i32
    return %c0_i32, %c0_i32_0 : i32, i32
  }
  func.func @transform_4(%arg0: i32) -> (i32, i32, i32) {
    %c0_i32 = arith.constant 0 : i32
    %c0_i32_0 = arith.constant 0 : i32
    %c0_i32_1 = arith.constant 0 : i32
    return %arg0, %c0_i32, %c0_i32_0 : i32, i32, i32
  }
}

</mosaic_0001>

<llo_original>
// kernel: conv_gru_cell.1
$region0: #{conv_gru_cell.1}
  #allocation0 [shape = 'u32[]', space=smem, size = 0x4, offset = 0x4, fixed_abs, tag = 'smem constant byte address 0x4 - core index']
  #allocation1 [shape = 'u32[144,128]{1,0:T(1,128)}', space=vmem, size = 0x12000, scoped, tag = 'internal scratch']
  #allocation2 [shape = 'f32[8,384]{1,0:T(8,128)}', space=vmem, size = 0x3000, scoped, tag = 'scratch operand']
  %s0 = inlined_call_operand.vmem [shape: f32[2,12,384], index: 0, kind: input, shape index: {}]
  %s1 = inlined_call_operand.vmem [shape: f32[3,3,24,12], index: 1, kind: input, shape index: {}]
  %s2 = inlined_call_operand.vmem [shape: f32[3,3,8,8], index: 2, kind: input, shape index: {}]
  %s3 = inlined_call_operand.vmem [shape: f32[24,1], index: 3, kind: input, shape index: {}]
  %s4 = inlined_call_operand.vmem [shape: f32[2,8,288], index: 4, kind: output, shape index: {}]
  %s5 = sld [smem:[#allocation0]]
  $region49: #{conv_gru_cell.1} parent=0
    _
  %s7 = ssub.s32 1, %s5
  %s8 = scalar_select 0, %s7, %s5
  loop: start=0, step=1, limit=4
  $region2: #{conv_gru_cell.1} parent=0 // loop_pre_header
    _
  $region3: #{conv_gru_cell.1} parent=0 // loop_header
    %s10 = sphi 0, %s14
    %p11 = scmp.ge.s32.totalorder %s10, 4
    %s20 = sphi 0, %s22
    %s23 = sphi 0, %s20
    %s24 = sphi 0, %s23
    %s40 = sphi 0, %s24
    %s44 = sphi 0, %s44
    %s46 = sphi 0, %s44
    %s47 = sphi 0, %s46
    %s61 = sphi 0, %s47
    %s65 = sphi 0, %s65
    %s67 = sphi 0, %s65
    %s68 = sphi 0, %s67
    %s82 = sphi 0, %s68
    %s86 = sphi 0, %s86
    %s88 = sphi 0, %s86
    %s89 = sphi 0, %s88
    %s103 = sphi 0, %s89
    %s109 = sphi 0, %s111
    %s112 = sphi 0, %s109
    %s113 = sphi 0, %s112
    %s129 = sphi 0, %s113
  $region4: #{conv_gru_cell.1} parent=0 // loop_header_branch
    %13 = sbr.rel (%p11) target = $region8
  $region5: #{conv_gru_cell.1} parent=0 // loop_body
    %s15 = ssub.s32 %s10, 1
    %s16 = ssub.s32 %s10, 2
    %s17 = sadd.s32 %s10, 1
    %s18 = ssub.s32 %s10, %s17
    %p19 = scmp.eq.s32.totalorder %s18, 0
    %s21 = sadd.s32 %s20, 1
    %s22 = scalar_select %p19, %s20, %s21
    %p25 = pneg %p19
    %p26 = scmp.eq.s32.totalorder %s10, 1
    %p27 = por %p25, %p26
    %p28 = scmp.ne.s32.totalorder %s20, %s23
    %p29 = scmp.eq.s32.totalorder %s10, 0
    %p30 = por %p28, %p29
    %p31 = scmp.ne.s32.totalorder %s20, %s23
    %p32 = scmp.eq.s32.totalorder %s15, 1
    %p33 = por %p31, %p32
    %p34 = scmp.ne.s32.totalorder %s23, %s24
    %p35 = scmp.eq.s32.totalorder %s15, 0
    %p36 = por %p34, %p35
    %p37 = scmp.ne.s32.totalorder %s23, %s24
    %p38 = scmp.eq.s32.totalorder %s16, 1
    %p39 = por %p37, %p38
    %p41 = scmp.ne.s32.totalorder %s24, %s40
    %p42 = scmp.eq.s32.totalorder %s16, 0
    %p43 = por %p41, %p42
    %s45 = sadd.s32 %s44, 1
    %p48 = scmp.eq.s32.totalorder %s10, 1
    %p49 = scmp.ne.s32.totalorder %s44, %s46
    %p50 = scmp.eq.s32.totalorder %s10, 0
    %p51 = por %p49, %p50
    %p52 = scmp.ne.s32.totalorder %s44, %s46
    %p53 = scmp.eq.s32.totalorder %s15, 1
    %p54 = por %p52, %p53
    %p55 = scmp.ne.s32.totalorder %s46, %s47
    %p56 = scmp.eq.s32.totalorder %s15, 0
    %p57 = por %p55, %p56
    %p58 = scmp.ne.s32.totalorder %s46, %s47
    %p59 = scmp.eq.s32.totalorder %s16, 1
    %p60 = por %p58, %p59
    %p62 = scmp.ne.s32.totalorder %s47, %s61
    %p63 = scmp.eq.s32.totalorder %s16, 0
    %p64 = por %p62, %p63
    %s66 = sadd.s32 %s65, 1
    %p69 = scmp.eq.s32.totalorder %s10, 1
    %p70 = scmp.ne.s32.totalorder %s65, %s67
    %p71 = scmp.eq.s32.totalorder %s10, 0
    %p72 = por %p70, %p71
    %p73 = scmp.ne.s32.totalorder %s65, %s67
    %p74 = scmp.eq.s32.totalorder %s15, 1
    %p75 = por %p73, %p74
    %p76 = scmp.ne.s32.totalorder %s67, %s68
    %p77 = scmp.eq.s32.totalorder %s15, 0
    %p78 = por %p76, %p77
    %p79 = scmp.ne.s32.totalorder %s67, %s68
    %p80 = scmp.eq.s32.totalorder %s16, 1
    %p81 = por %p79, %p80
    %p83 = scmp.ne.s32.totalorder %s68, %s82
    %p84 = scmp.eq.s32.totalorder %s16, 0
    %p85 = por %p83, %p84
    %s87 = sadd.s32 %s86, 1
    %p90 = scmp.eq.s32.totalorder %s10, 1
    %p91 = scmp.ne.s32.totalorder %s86, %s88
    %p92 = scmp.eq.s32.totalorder %s10, 0
    %p93 = por %p91, %p92
    %p94 = scmp.ne.s32.totalorder %s86, %s88
    %p95 = scmp.eq.s32.totalorder %s15, 1
    %p96 = por %p94, %p95
    %p97 = scmp.ne.s32.totalorder %s88, %s89
    %p98 = scmp.eq.s32.totalorder %s15, 0
    %p99 = por %p97, %p98
    %p100 = scmp.ne.s32.totalorder %s88, %s89
    %p101 = scmp.eq.s32.totalorder %s16, 1
    %p102 = por %p100, %p101
    %p104 = scmp.ne.s32.totalorder %s89, %s103
    %p105 = scmp.eq.s32.totalorder %s16, 0
    %p106 = por %p104, %p105
    %s107 = ssub.s32 %s10, %s17
    %p108 = scmp.eq.s32.totalorder %s107, 0
    %s110 = sadd.s32 %s109, 1
    %s111 = scalar_select %p108, %s109, %s110
    %p114 = pneg %p108
    %p115 = scmp.eq.s32.totalorder %s10, 1
    %p116 = por %p114, %p115
    %p117 = scmp.ne.s32.totalorder %s109, %s112
    %p118 = scmp.eq.s32.totalorder %s10, 0
    %p119 = por %p117, %p118
    %p120 = scmp.ne.s32.totalorder %s109, %s112
    %p121 = scmp.eq.s32.totalorder %s15, 1
    %p122 = por %p120, %p121
    %p123 = scmp.ne.s32.totalorder %s112, %s113
    %p124 = scmp.eq.s32.totalorder %s15, 0
    %p125 = por %p123, %p124
    %p126 = scmp.ne.s32.totalorder %s112, %s113
    %p127 = scmp.eq.s32.totalorder %s16, 1
    %p128 = por %p126, %p127
    %p130 = scmp.ne.s32.totalorder %s113, %s129
    %p131 = scmp.eq.s32.totalorder %s16, 0
    %p132 = por %p130, %p131
    %p133 = scmp.le.s32.totalorder 1, %s10
    %p134 = scmp.lt.s32.totalorder %s10, 3
    %p135 = pnand %p133, %p134
    %p136 = pneg %p135
    // Predicated region
    $region9: #{conv_gru_cell.1} parent=5 // pred_check
      _
    $region10: #{conv_gru_cell.1} parent=5 // pred_check_branch
      %138 = sbr.rel (%p135) target = $region12
    $region11: #{conv_gru_cell.1} parent=5 // pred_region
      %s139 = ssub.s32 %s10, 1
      // Predicated region
      $region13: #{conv_gru_cell.1} parent=11 // pred_check
        %p140 = pneg %p57
      $region14: #{conv_gru_cell.1} parent=11 // pred_check_branch
        %142 = sbr.rel (%p140) target = $region16
      $region15: #{conv_gru_cell.1} parent=11 // pred_region
        _
      $region16: #{conv_gru_cell.1} parent=11 // pred_fallthru
        _
      // Predicated region
      $region17: #{conv_gru_cell.1} parent=11 // pred_check
        %p143 = pneg %p78
      $region18: #{conv_gru_cell.1} parent=11 // pred_check_branch
        %145 = sbr.rel (%p143) target = $region20
      $region19: #{conv_gru_cell.1} parent=11 // pred_region
        _
      $region20: #{conv_gru_cell.1} parent=11 // pred_fallthru
        _
      // Predicated region
      $region21: #{conv_gru_cell.1} parent=11 // pred_check
        %p146 = pneg %p99
      $region22: #{conv_gru_cell.1} parent=11 // pred_check_branch
        %148 = sbr.rel (%p146) target = $region24
      $region23: #{conv_gru_cell.1} parent=11 // pred_region
        _
      $region24: #{conv_gru_cell.1} parent=11 // pred_fallthru
        _
    $region12: #{conv_gru_cell.1} parent=5 // pred_fallthru
      _
    %p149 = scmp.lt.s32.totalorder %s10, 2
    // Predicated region
    $region25: #{conv_gru_cell.1} parent=5 // pred_check
      %p150 = pneg %p149
    $region26: #{conv_gru_cell.1} parent=5 // pred_check_branch
      %152 = sbr.rel (%p150) target = $region28
    $region27: #{conv_gru_cell.1} parent=5 // pred_region
      // Predicated region
      $region29: #{conv_gru_cell.1} parent=27 // pred_check
        %p153 = pneg %p30
      $region30: #{conv_gru_cell.1} parent=27 // pred_check_branch
        %155 = sbr.rel (%p153) target = $region32
      $region31: #{conv_gru_cell.1} parent=27 // pred_region
        %p156 = scmp.lt.s32.totalorder %s10, 1
        %s157 = scalar_select %p156, %s10, 1
        %s158 = smul.addr %s157, 6
        %s159 = smul.addr %s158, 8
        %s160 = scalar_lea.vmem %s0, %s159
      $region32: #{conv_gru_cell.1} parent=27 // pred_fallthru
        _
    $region28: #{conv_gru_cell.1} parent=5 // pred_fallthru
      _
    %p161 = scmp.le.s32.totalorder 1, %s10
    %p162 = scmp.lt.s32.totalorder %s10, 3
    %p163 = pnand %p161, %p162
    %p164 = pneg %p163
    // Predicated region
    $region33: #{conv_gru_cell.1} parent=5 // pred_check
      _
    $region34: #{conv_gru_cell.1} parent=5 // pred_check_branch
      %166 = sbr.rel (%p163) target = $region36
    $region35: #{conv_gru_cell.1} parent=5 // pred_region
      %s167 = ssub.s32 %s10, 1
      %p168 = scmp.lt.s32.totalorder %s15, 1
      %s169 = scalar_select %p168, %s15, 1
      %s170 = smul.addr %s169, 6
      %s171 = smul.addr %s170, 8
      %s172 = scalar_lea.vmem %s0, %s171
      %p173 = pneg %p36
      %p174 = pneg %p33
      %p175 = pneg %p57
      %p176 = pneg %p54
      %p177 = pneg %p78
      %p178 = pneg %p75
      %p179 = pneg %p99
      %p180 = pneg %p96
      %p181 = pneg %p125
      %p182 = pneg %p122
      %p183 = scmp.lt.s32.totalorder %s15, 1
      %s184 = scalar_select %p183, %s15, 1
      %s185 = smul.addr %s184, 3
      %s186 = smul.addr %s185, 8
      %s187 = scalar_lea.vmem %s4, %s186
      %p188 = scmp.lt.s32.totalorder %s15, 1
      %s189 = scalar_select %p188, %s15, 1
      %s190 = smul.addr %s189, 6
      %s191 = smul.addr %s190, 8
      %s192 = scalar_lea.vmem %s0, %s191
      %p193 = scmp.lt.s32.totalorder %s15, 1
      %s194 = scalar_select %p193, %s15, 1
      %s195 = smul.addr %s194, 3
      %s196 = smul.addr %s195, 8
      %s197 = scalar_lea.vmem %s4, %s196
      %v198 = vld [vmem:[%s192] sm:$0xff]
      %v199 = vld [vmem:[%s192 + $0x8] sm:$0xff]
      %v200 = vld [vmem:[%s192 + $0x10] sm:$0xff]
      %v201 = vld [vmem:[%s192 + $0x18] sm:$0xf]
      %v202 = vld [vmem:[%s192 + $0x20] sm:$0xf]
      %v203 = vld [vmem:[%s192 + $0x28] sm:$0xf]
      %v204 = vld [vmem:[%s1] sm:$0xff]
      %v205 = vld [vmem:[%s1 + $0x8] sm:$0xff]
      %v206 = vld [vmem:[%s1 + $0x10] sm:$0xff]
      %s207 = scalar_lea.vmem %s1, 24
      %v208 = vld [vmem:[%s207] sm:$0xff]
      %v209 = vld [vmem:[%s207 + $0x8] sm:$0xff]
      %v210 = vld [vmem:[%s207 + $0x10] sm:$0xff]
      %217 = vrot.lane.b32.xlu0 %v198, 127
      %v218 = vpop.permute.xlu0 %217
      %219 = vrot.lane.b32.xlu0 %v199, 127
      %v220 = vpop.permute.xlu0 %219
      %221 = vrot.lane.b32.xlu0 %v200, 127
      %v222 = vpop.permute.xlu0 %221
      %223 = vrot.lane.b32.xlu0 %v201, 127
      %v224 = vpop.permute.xlu0 %223
      %225 = vrot.lane.b32.xlu0 %v202, 127
      %v226 = vpop.permute.xlu0 %225
      %227 = vrot.lane.b32.xlu0 %v203, 127
      %v228 = vpop.permute.xlu0 %227
      %vm229 = vcmask 1039360
      %v230 = vsel %vm229, %v218, %v220
      %v231 = vsel %vm229, %v220, %v222
      %v232 = vsel %vm229, %v224, %v226
      %v233 = vsel %vm229, %v226, %v228
      %vm237 = vcmask 97280
      %v239 = vsel %vm237, %v208, 0
      %v242 = vsel %vm237, %v209, 0
      %v245 = vsel %vm237, %v210, 0
      %vm247 = vcmask 1043456
      %v248 = vsel %vm247, %v232, 0
      %v250 = vsel %vm247, %v233, 0
      %v252 = vsel %vm247, %v228, 0
      %254 = vmatprep.subr.mxu0 %v231
      %255 = vmatpush1.msra.mxu0 %v230
      %256 = vmatprep.subr.mxu0 %v250
      %257 = vmatpush1.msra.mxu0 %v248
      %258 = vmatprep.subr.mxu0 0.0
      %259 = vmatpush1.msra.mxu0 0.0
      %260 = vmatprep.subr.mxu0 0.0
      %261 = vmatpush1.msra.mxu0 0.0
      %262 = vmatprep.subr.mxu0 0.0
      %263 = vmatpush1.msra.mxu0 0.0
      %264 = vmatprep.subr.mxu0 0.0
      %265 = vmatpush1.msra.mxu0 0.0
      %266 = vmatprep.subr.mxu0 0.0
      %267 = vmatpush1.msra.mxu0 0.0
      %268 = vmatprep.subr.mxu0 0.0
      %269 = vmatpush1.msra.mxu0 0.0
      %270 = vmatprep.subr.mxu0 0.0
      %271 = vmatpush1.msra.mxu0 0.0
      %272 = vmatprep.subr.mxu0 0.0
      %273 = vmatpush1.msra.mxu0 0.0
      %274 = vmatprep.subr.mxu0 0.0
      %275 = vmatpush1.msra.mxu0 0.0
      %276 = vmatprep.subr.mxu0 0.0
      %277 = vmatpush1.msra.mxu0 0.0
      %278 = vmatprep.subr.mxu0 0.0
      %279 = vmatpush1.msra.mxu0 0.0
      %280 = vmatprep.subr.mxu0 0.0
      %281 = vmatpush1.msra.mxu0 0.0
      %282 = vmatprep.subr.mxu0 0.0
      %283 = vmatpush1.msra.mxu0 0.0
      %284 = vmatprep.subr.mxu0 0.0
      %285 = vmatpush1.msra.mxu0 0.0
      %286 = vmatprep.subr.mxu0 0.0
      %287 = vmatpush1.msra.mxu0 0.0
      %288 = vmatprep.subr.mxu0 0.0
      %289 = vmatpush1.msra.mxu0 0.0
      %290 = vmatprep.subr.mxu0 0.0
      %291 = vmatpush1.msra.mxu0 0.0
      %292 = vmatprep.subr.mxu0 0.0
      %293 = vmatpush1.msra.mxu0 0.0
      %294 = vmatprep.subr.mxu0 0.0
      %295 = vmatpush1.msra.mxu0 0.0
      %296 = vmatprep.subr.mxu0 0.0
      %297 = vmatpush1.msra.mxu0 0.0
      %298 = vmatprep.subr.mxu0 0.0
      %299 = vmatpush1.msra.mxu0 0.0
      %300 = vmatprep.subr.mxu0 0.0
      %301 = vmatpush1.msra.mxu0 0.0
      %302 = vmatprep.subr.mxu0 0.0
      %303 = vmatpush1.msra.mxu0 0.0
      %304 = vmatprep.subr.mxu0 0.0
      %305 = vmatpush1.msra.mxu0 0.0
      %306 = vmatprep.subr.mxu0 0.0
      %307 = vmatpush1.msra.mxu0 0.0
      %308 = vmatprep.subr.mxu0 0.0
      %309 = vmatpush1.msra.mxu0 0.0
      %310 = vmatprep.subr.mxu0 0.0
      %311 = vmatpush1.msra.mxu0 0.0
      %312 = vmatprep.subr.mxu0 0.0
      %313 = vmatpush1.msra.mxu0 0.0
      %314 = vmatprep.subr.mxu0 0.0
      %315 = vmatpush1.msra.mxu0 0.0
      %316 = vmatprep.subr.mxu0 0.0
      %317 = vmatpush1.msra.mxu0 0.0
      %318 = vmatprep.mubr.f32.mxu0 0.0
      %319 = vmatmul.mubr.f32.gmra.mrb[0].mxu0 %v239
      %v320 = vpop.f32.mrb[0].mxu0
      %v321 = vadd.f32 0.0, %v320
      %v322 = vpop.f32.mrb[0].mxu0
      %v323 = vadd.f32 0.0, %v322
      %324 = vmatprep.mubr.f32.mxu0 0.0
      %325 = vmatmul.mubr.f32.gmra.mrb[0].mxu0 %v242
      %v326 = vpop.f32.mrb[0].mxu0
      %v327 = vadd.f32 0.0, %v326
      %v328 = vpop.f32.mrb[0].mxu0
      %v329 = vadd.f32 0.0, %v328
      %330 = vmatprep.mubr.f32.mxu0 0.0
      %331 = vmatmul.mubr.f32.gmra.mrb[0].mxu0 %v245
      %v332 = vpop.f32.mrb[0].mxu0
      %v333 = vadd.f32 0.0, %v332
      %v334 = vpop.f32.mrb[0].mxu0
      %v335 = vadd.f32 0.0, %v334
      %336 = vdwg.mxu0
      %337 = vmatprep.subr.mxu0 0.0
      %338 = vmatpush1.msra.mxu0 %v222
      %339 = vmatprep.subr.mxu0 0.0
      %340 = vmatpush1.msra.mxu0 %v252
      %341 = vmatprep.subr.mxu0 0.0
      %342 = vmatpush1.msra.mxu0 0.0
      %343 = vmatprep.subr.mxu0 0.0
      %344 = vmatpush1.msra.mxu0 0.0
      %345 = vmatprep.subr.mxu0 0.0
      %346 = vmatpush1.msra.mxu0 0.0
      %347 = vmatprep.subr.mxu0 0.0
      %348 = vmatpush1.msra.mxu0 0.0
      %349 = vmatprep.subr.mxu0 0.0
      %350 = vmatpush1.msra.mxu0 0.0
      %351 = vmatprep.subr.mxu0 0.0
      %352 = vmatpush1.msra.mxu0 0.0
      %353 = vmatprep.subr.mxu0 0.0
      %354 = vmatpush1.msra.mxu0 0.0
      %355 = vmatprep.subr.mxu0 0.0
      %356 = vmatpush1.msra.mxu0 0.0
      %357 = vmatprep.subr.mxu0 0.0
      %358 = vmatpush1.msra.mxu0 0.0
      %359 = vmatprep.subr.mxu0 0.0
      %360 = vmatpush1.msra.mxu0 0.0
      %361 = vmatprep.subr.mxu0 0.0
      %362 = vmatpush1.msra.mxu0 0.0
      %363 = vmatprep.subr.mxu0 0.0
      %364 = vmatpush1.msra.mxu0 0.0
      %365 = vmatprep.subr.mxu0 0.0
      %366 = vmatpush1.msra.mxu0 0.0
      %367 = vmatprep.subr.mxu0 0.0
      %368 = vmatpush1.msra.mxu0 0.0
      %369 = vmatprep.subr.mxu0 0.0
      %370 = vmatpush1.msra.mxu0 0.0
      %371 = vmatprep.subr.mxu0 0.0
      %372 = vmatpush1.msra.mxu0 0.0
      %373 = vmatprep.subr.mxu0 0.0
      %374 = vmatpush1.msra.mxu0 0.0
      %375 = vmatprep.subr.mxu0 0.0
      %376 = vmatpush1.msra.mxu0 0.0
      %377 = vmatprep.subr.mxu0 0.0
      %378 = vmatpush1.msra.mxu0 0.0
      %379 = vmatprep.subr.mxu0 0.0
      %380 = vmatpush1.msra.mxu0 0.0
      %381 = vmatprep.subr.mxu0 0.0
      %382 = vmatpush1.msra.mxu0 0.0
      %383 = vmatprep.subr.mxu0 0.0
      %384 = vmatpush1.msra.mxu0 0.0
      %385 = vmatprep.subr.mxu0 0.0
      %386 = vmatpush1.msra.mxu0 0.0
      %387 = vmatprep.subr.mxu0 0.0
      %388 = vmatpush1.msra.mxu0 0.0
      %389 = vmatprep.subr.mxu0 0.0
      %390 = vmatpush1.msra.mxu0 0.0
      %391 = vmatprep.subr.mxu0 0.0
      %392 = vmatpush1.msra.mxu0 0.0
      %393 = vmatprep.subr.mxu0 0.0
      %394 = vmatpush1.msra.mxu0 0.0
      %395 = vmatprep.subr.mxu0 0.0
      %396 = vmatpush1.msra.mxu0 0.0
      %397 = vmatprep.subr.mxu0 0.0
      %398 = vmatpush1.msra.mxu0 0.0
      %399 = vmatprep.subr.mxu0 0.0
      %400 = vmatpush1.msra.mxu0 0.0
      %401 = vmatprep.mubr.f32.mxu0 0.0
      %402 = vmatmul.mubr.f32.gmra.mrb[0].mxu0 %v239
      %v403 = vpop.f32.mrb[0].mxu0
      %v404 = vadd.f32 0.0, %v403
      %v405 = vpop.f32.mrb[0].mxu0
      %406 = vmatprep.mubr.f32.mxu0 0.0
      %407 = vmatmul.mubr.f32.gmra.mrb[0].mxu0 %v242
      %v408 = vpop.f32.mrb[0].mxu0
      %v409 = vadd.f32 0.0, %v408
      %v410 = vpop.f32.mrb[0].mxu0
      %411 = vmatprep.mubr.f32.mxu0 0.0
      %412 = vmatmul.mubr.f32.gmra.mrb[0].mxu0 %v245
      %v413 = vpop.f32.mrb[0].mxu0
      %v414 = vadd.f32 0.0, %v413
      %v415 = vpop.f32.mrb[0].mxu0
      %416 = vdwg.mxu0
      %v418 = vsel %vm237, %v204, 0
      %v421 = vsel %vm237, %v205, 0
      %v424 = vsel %vm237, %v206, 0
      %v426 = vsel %vm247, %v201, 0
      %v428 = vsel %vm247, %v202, 0
      %v430 = vsel %vm247, %v203, 0
      %432 = vmatprep.subr.mxu0 %v199
      %433 = vmatpush1.msra.mxu0 %v198
      %434 = vmatprep.subr.mxu0 %v428
      %435 = vmatpush1.msra.mxu0 %v426
      %436 = vmatprep.subr.mxu0 0.0
      %437 = vmatpush1.msra.mxu0 0.0
      %438 = vmatprep.subr.mxu0 0.0
      %439 = vmatpush1.msra.mxu0 0.0
      %440 = vmatprep.subr.mxu0 0.0
      %441 = vmatpush1.msra.mxu0 0.0
      %442 = vmatprep.subr.mxu0 0.0
      %443 = vmatpush1.msra.mxu0 0.0
      %444 = vmatprep.subr.mxu0 0.0
      %445 = vmatpush1.msra.mxu0 0.0
      %446 = vmatprep.subr.mxu0 0.0
      %447 = vmatpush1.msra.mxu0 0.0
      %448 = vmatprep.subr.mxu0 0.0
      %449 = vmatpush1.msra.mxu0 0.0
      %450 = vmatprep.subr.mxu0 0.0
      %451 = vmatpush1.msra.mxu0 0.0
      %452 = vmatprep.subr.mxu0 0.0
      %453 = vmatpush1.msra.mxu0 0.0
      %454 = vmatprep.subr.mxu0 0.0
      %455 = vmatpush1.msra.mxu0 0.0
      %456 = vmatprep.subr.mxu0 0.0
      %457 = vmatpush1.msra.mxu0 0.0
      %458 = vmatprep.subr.mxu0 0.0
      %459 = vmatpush1.msra.mxu0 0.0
      %460 = vmatprep.subr.mxu0 0.0
      %461 = vmatpush1.msra.mxu0 0.0
      %462 = vmatprep.subr.mxu0 0.0
      %463 = vmatpush1.msra.mxu0 0.0
      %464 = vmatprep.subr.mxu0 0.0
      %465 = vmatpush1.msra.mxu0 0.0
      %466 = vmatprep.subr.mxu0 0.0
      %467 = vmatpush1.msra.mxu0 0.0
      %468 = vmatprep.subr.mxu0 0.0
      %469 = vmatpush1.msra.mxu0 0.0
      %470 = vmatprep.subr.mxu0 0.0
      %471 = vmatpush1.msra.mxu0 0.0
      %472 = vmatprep.subr.mxu0 0.0
      %473 = vmatpush1.msra.mxu0 0.0
      %474 = vmatprep.subr.mxu0 0.0
      %475 = vmatpush1.msra.mxu0 0.0
      %476 = vmatprep.subr.mxu0 0.0
      %477 = vmatpush1.msra.mxu0 0.0
      %478 = vmatprep.subr.mxu0 0.0
      %479 = vmatpush1.msra.mxu0 0.0
      %480 = vmatprep.subr.mxu0 0.0
      %481 = vmatpush1.msra.mxu0 0.0
      %482 = vmatprep.subr.mxu0 0.0
      %483 = vmatpush1.msra.mxu0 0.0
      %484 = vmatprep.subr.mxu0 0.0
      %485 = vmatpush1.msra.mxu0 0.0
      %486 = vmatprep.subr.mxu0 0.0
      %487 = vmatpush1.msra.mxu0 0.0
      %488 = vmatprep.subr.mxu0 0.0
      %489 = vmatpush1.msra.mxu0 0.0
      %490 = vmatprep.subr.mxu0 0.0
      %491 = vmatpush1.msra.mxu0 0.0
      %492 = vmatprep.subr.mxu0 0.0
      %493 = vmatpush1.msra.mxu0 0.0
      %494 = vmatprep.subr.mxu0 0.0
      %495 = vmatpush1.msra.mxu0 0.0
      %496 = vmatprep.mubr.f32.mxu0 0.0
      %497 = vmatmul.mubr.f32.gmra.mrb[0].mxu0 %v418
      %v498 = vpop.f32.mrb[0].mxu0
      %v499 = vadd.f32 %v321, %v498
      %v500 = vpop.f32.mrb[0].mxu0
      %v501 = vadd.f32 %v323, %v500
      %502 = vmatprep.mubr.f32.mxu0 0.0
      %503 = vmatmul.mubr.f32.gmra.mrb[0].mxu0 %v421
      %v504 = vpop.f32.mrb[0].mxu0
      %v505 = vadd.f32 %v327, %v504
      %v506 = vpop.f32.mrb[0].mxu0
      %v507 = vadd.f32 %v329, %v506
      %508 = vmatprep.mubr.f32.mxu0 0.0
      %509 = vmatmul.mubr.f32.gmra.mrb[0].mxu0 %v424
      %v510 = vpop.f32.mrb[0].mxu0
      %v511 = vadd.f32 %v333, %v510
      %v512 = vpop.f32.mrb[0].mxu0
      %v513 = vadd.f32 %v335, %v512
      %514 = vdwg.mxu0
      %515 = vmatprep.subr.mxu0 0.0
      %516 = vmatpush1.msra.mxu0 %v200
      %517 = vmatprep.subr.mxu0 0.0
      %518 = vmatpush1.msra.mxu0 %v430
      %519 = vmatprep.subr.mxu0 0.0
      %520 = vmatpush1.msra.mxu0 0.0
      %521 = vmatprep.subr.mxu0 0.0
      %522 = vmatpush1.msra.mxu0 0.0
      %523 = vmatprep.subr.mxu0 0.0
      %524 = vmatpush1.msra.mxu0 0.0
      %525 = vmatprep.subr.mxu0 0.0
      %526 = vmatpush1.msra.mxu0 0.0
      %527 = vmatprep.subr.mxu0 0.0
      %528 = vmatpush1.msra.mxu0 0.0
      %529 = vmatprep.subr.mxu0 0.0
      %530 = vmatpush1.msra.mxu0 0.0
      %531 = vmatprep.subr.mxu0 0.0
      %532 = vmatpush1.msra.mxu0 0.0
      %533 = vmatprep.subr.mxu0 0.0
      %534 = vmatpush1.msra.mxu0 0.0
      %535 = vmatprep.subr.mxu0 0.0
      %536 = vmatpush1.msra.mxu0 0.0
      %537 = vmatprep.subr.mxu0 0.0
      %538 = vmatpush1.msra.mxu0 0.0
      %539 = vmatprep.subr.mxu0 0.0
      %540 = vmatpush1.msra.mxu0 0.0
      %541 = vmatprep.subr.mxu0 0.0
      %542 = vmatpush1.msra.mxu0 0.0
      %543 = vmatprep.subr.mxu0 0.0
      %544 = vmatpush1.msra.mxu0 0.0
      %545 = vmatprep.subr.mxu0 0.0
      %546 = vmatpush1.msra.mxu0 0.0
      %547 = vmatprep.subr.mxu0 0.0
      %548 = vmatpush1.msra.mxu0 0.0
      %549 = vmatprep.subr.mxu0 0.0
      %550 = vmatpush1.msra.mxu0 0.0
      %551 = vmatprep.subr.mxu0 0.0
      %552 = vmatpush1.msra.mxu0 0.0
      %553 = vmatprep.subr.mxu0 0.0
      %554 = vmatpush1.msra.mxu0 0.0
      %555 = vmatprep.subr.mxu0 0.0
      %556 = vmatpush1.msra.mxu0 0.0
      %557 = vmatprep.subr.mxu0 0.0
      %558 = vmatpush1.msra.mxu0 0.0
      %559 = vmatprep.subr.mxu0 0.0
      %560 = vmatpush1.msra.mxu0 0.0
      %561 = vmatprep.subr.mxu0 0.0
      %562 = vmatpush1.msra.mxu0 0.0
      %563 = vmatprep.subr.mxu0 0.0
      %564 = vmatpush1.msra.mxu0 0.0
      %565 = vmatprep.subr.mxu0 0.0
      %566 = vmatpush1.msra.mxu0 0.0
      %567 = vmatprep.subr.mxu0 0.0
      %568 = vmatpush1.msra.mxu0 0.0
      %569 = vmatprep.subr.mxu0 0.0
      %570 = vmatpush1.msra.mxu0 0.0
      %571 = vmatprep.subr.mxu0 0.0
      %572 = vmatpush1.msra.mxu0 0.0
      %573 = vmatprep.subr.mxu0 0.0
      %574 = vmatpush1.msra.mxu0 0.0
      %575 = vmatprep.subr.mxu0 0.0
      %576 = vmatpush1.msra.mxu0 0.0
      %577 = vmatprep.subr.mxu0 0.0
      %578 = vmatpush1.msra.mxu0 0.0
      %579 = vmatprep.mubr.f32.mxu0 0.0
      %580 = vmatmul.mubr.f32.gmra.mrb[0].mxu0 %v418
      %v581 = vpop.f32.mrb[0].mxu0
      %v582 = vadd.f32 %v404, %v581
      %v583 = vpop.f32.mrb[0].mxu0
      %584 = vmatprep.mubr.f32.mxu0 0.0
      %585 = vmatmul.mubr.f32.gmra.mrb[0].mxu0 %v421
      %v586 = vpop.f32.mrb[0].mxu0
      %v587 = vadd.f32 %v409, %v586
      %v588 = vpop.f32.mrb[0].mxu0
      %589 = vmatprep.mubr.f32.mxu0 0.0
      %590 = vmatmul.mubr.f32.gmra.mrb[0].mxu0 %v424
      %v591 = vpop.f32.mrb[0].mxu0
      %v592 = vadd.f32 %v414, %v591
      %v593 = vpop.f32.mrb[0].mxu0
      %594 = vdwg.mxu0
      %s595 = scalar_lea.vmem %s1, 48
      %v596 = vld [vmem:[%s595] sm:$0xff]
      %v597 = vld [vmem:[%s595 + $0x8] sm:$0xff]
      %v598 = vld [vmem:[%s595 + $0x10] sm:$0xff]
      %599 = vrot.lane.b32.xlu0 %v198, 126
      %v600 = vpop.permute.xlu0 %599
      %601 = vrot.lane.b32.xlu0 %v199, 126
      %v602 = vpop.permute.xlu0 %601
      %603 = vrot.lane.b32.xlu0 %v200, 126
      %v604 = vpop.permute.xlu0 %603
      %605 = vrot.lane.b32.xlu0 %v201, 126
      %v606 = vpop.permute.xlu0 %605
      %607 = vrot.lane.b32.xlu0 %v202, 126
      %v608 = vpop.permute.xlu0 %607
      %609 = vrot.lane.b32.xlu0 %v203, 126
      %v610 = vpop.permute.xlu0 %609
      %vm611 = vcmask 1031168
      %v612 = vsel %vm611, %v600, %v602
      %v613 = vsel %vm611, %v602, %v604
      %v614 = vsel %vm611, %v606, %v608
      %v615 = vsel %vm611, %v608, %v610
      %v620 = vsel %vm237, %v596, 0
      %v623 = vsel %vm237, %v597, 0
      %v626 = vsel %vm237, %v598, 0
      %v628 = vsel %vm247, %v614, 0
      %v630 = vsel %vm247, %v615, 0
      %v632 = vsel %vm247, %v610, 0
      %634 = vmatprep.subr.mxu0 %v613
      %635 = vmatpush1.msra.mxu0 %v612
      %636 = vmatprep.subr.mxu0 %v630
      %637 = vmatpush1.msra.mxu0 %v628
      %638 = vmatprep.subr.mxu0 0.0
      %639 = vmatpush1.msra.mxu0 0.0
      %640 = vmatprep.subr.mxu0 0.0
      %641 = vmatpush1.msra.mxu0 0.0
      %642 = vmatprep.subr.mxu0 0.0
      %643 = vmatpush1.msra.mxu0 0.0
      %644 = vmatprep.subr.mxu0 0.0
      %645 = vmatpush1.msra.mxu0 0.0
      %646 = vmatprep.subr.mxu0 0.0
      %647 = vmatpush1.msra.mxu0 0.0
      %648 = vmatprep.subr.mxu0 0.0
      %649 = vmatpush1.msra.mxu0 0.0
      %650 = vmatprep.subr.mxu0 0.0
      %651 = vmatpush1.msra.mxu0 0.0
      %652 = vmatprep.subr.mxu0 0.0
      %653 = vmatpush1.msra.mxu0 0.0
      %654 = vmatprep.subr.mxu0 0.0
      %655 = vmatpush1.msra.mxu0 0.0
      %656 = vmatprep.subr.mxu0 0.0
      %657 = vmatpush1.msra.mxu0 0.0
      %658 = vmatprep.subr.mxu0 0.0
      %659 = vmatpush1.msra.mxu0 0.0
      %660 = vmatprep.subr.mxu0 0.0
      %661 = vmatpush1.msra.mxu0 0.0
      %662 = vmatprep.subr.mxu0 0.0
      %663 = vmatpush1.msra.mxu0 0.0
      %664 = vmatprep.subr.mxu0 0.0
      %665 = vmatpush1.msra.mxu0 0.0
      %666 = vmatprep.subr.mxu0 0.0
      %667 = vmatpush1.msra.mxu0 0.0
      %668 = vmatprep.subr.mxu0 0.0
      %669 = vmatpush1.msra.mxu0 0.0
      %670 = vmatprep.subr.mxu0 0.0
      %671 = vmatpush1.msra.mxu0 0.0
      %672 = vmatprep.subr.mxu0 0.0
      %673 = vmatpush1.msra.mxu0 0.0
      %674 = vmatprep.subr.mxu0 0.0
      %675 = vmatpush1.msra.mxu0 0.0
      %676 = vmatprep.subr.mxu0 0.0
      %677 = vmatpush1.msra.mxu0 0.0
      %678 = vmatprep.subr.mxu0 0.0
      %679 = vmatpush1.msra.mxu0 0.0
      %680 = vmatprep.subr.mxu0 0.0
      %681 = vmatpush1.msra.mxu0 0.0
      %682 = vmatprep.subr.mxu0 0.0
      %683 = vmatpush1.msra.mxu0 0.0
      %684 = vmatprep.subr.mxu0 0.0
      %685 = vmatpush1.msra.mxu0 0.0
      %686 = vmatprep.subr.mxu0 0.0
      %687 = vmatpush1.msra.mxu0 0.0
      %688 = vmatprep.subr.mxu0 0.0
      %689 = vmatpush1.msra.mxu0 0.0
      %690 = vmatprep.subr.mxu0 0.0
      %691 = vmatpush1.msra.mxu0 0.0
      %692 = vmatprep.subr.mxu0 0.0
      %693 = vmatpush1.msra.mxu0 0.0
      %694 = vmatprep.subr.mxu0 0.0
      %695 = vmatpush1.msra.mxu0 0.0
      %696 = vmatprep.subr.mxu0 0.0
      %697 = vmatpush1.msra.mxu0 0.0
      %698 = vmatprep.mubr.f32.mxu0 0.0
      %699 = vmatmul.mubr.f32.gmra.mrb[0].mxu0 %v620
      %v700 = vpop.f32.mrb[0].mxu0
      %v701 = vadd.f32 0.0, %v700
      %v702 = vpop.f32.mrb[0].mxu0
      %v703 = vadd.f32 0.0, %v702
      %704 = vmatprep.mubr.f32.mxu0 0.0
      %705 = vmatmul.mubr.f32.gmra.mrb[0].mxu0 %v623
      %v706 = vpop.f32.mrb[0].mxu0
      %v707 = vadd.f32 0.0, %v706
      %v708 = vpop.f32.mrb[0].mxu0
      %v709 = vadd.f32 0.0, %v708
      %710 = vmatprep.mubr.f32.mxu0 0.0
      %711 = vmatmul.mubr.f32.gmra.mrb[0].mxu0 %v626
      %v712 = vpop.f32.mrb[0].mxu0
      %v713 = vadd.f32 0.0, %v712
      %v714 = vpop.f32.mrb[0].mxu0
      %v715 = vadd.f32 0.0, %v714
      %716 = vdwg.mxu0
      %717 = vmatprep.subr.mxu0 0.0
      %718 = vmatpush1.msra.mxu0 %v604
      %719 = vmatprep.subr.mxu0 0.0
      %720 = vmatpush1.msra.mxu0 %v632
      %721 = vmatprep.subr.mxu0 0.0
      %722 = vmatpush1.msra.mxu0 0.0
      %723 = vmatprep.subr.mxu0 0.0
      %724 = vmatpush1.msra.mxu0 0.0
      %725 = vmatprep.subr.mxu0 0.0
      %726 = vmatpush1.msra.mxu0 0.0
      %727 = vmatprep.subr.mxu0 0.0
      %728 = vmatpush1.msra.mxu0 0.0
      %729 = vmatprep.subr.mxu0 0.0
      %730 = vmatpush1.msra.mxu0 0.0
      %731 = vmatprep.subr.mxu0 0.0
      %732 = vmatpush1.msra.mxu0 0.0
      %733 = vmatprep.subr.mxu0 0.0
      %734 = vmatpush1.msra.mxu0 0.0
      %735 = vmatprep.subr.mxu0 0.0
      %736 = vmatpush1.msra.mxu0 0.0
      %737 = vmatprep.subr.mxu0 0.0
      %738 = vmatpush1.msra.mxu0 0.0
      %739 = vmatprep.subr.mxu0 0.0
      %740 = vmatpush1.msra.mxu0 0.0
      %741 = vmatprep.subr.mxu0 0.0
      %742 = vmatpush1.msra.mxu0 0.0
      %743 = vmatprep.subr.mxu0 0.0
      %744 = vmatpush1.msra.mxu0 0.0
      %745 = vmatprep.subr.mxu0 0.0
      %746 = vmatpush1.msra.mxu0 0.0
      %747 = vmatprep.subr.mxu0 0.0
      %748 = vmatpush1.msra.mxu0 0.0
      %749 = vmatprep.subr.mxu0 0.0
      %750 = vmatpush1.msra.mxu0 0.0
      %751 = vmatprep.subr.mxu0 0.0
      %752 = vmatpush1.msra.mxu0 0.0
      %753 = vmatprep.subr.mxu0 0.0
      %754 = vmatpush1.msra.mxu0 0.0
      %755 = vmatprep.subr.mxu0 0.0
      %756 = vmatpush1.msra.mxu0 0.0
      %757 = vmatprep.subr.mxu0 0.0
      %758 = vmatpush1.msra.mxu0 0.0
      %759 = vmatprep.subr.mxu0 0.0
      %760 = vmatpush1.msra.mxu0 0.0
      %761 = vmatprep.subr.mxu0 0.0
      %762 = vmatpush1.msra.mxu0 0.0
      %763 = vmatprep.subr.mxu0 0.0
      %764 = vmatpush1.msra.mxu0 0.0
      %765 = vmatprep.subr.mxu0 0.0
      %766 = vmatpush1.msra.mxu0 0.0
      %767 = vmatprep.subr.mxu0 0.0
      %768 = vmatpush1.msra.mxu0 0.0
      %769 = vmatprep.subr.mxu0 0.0
      %770 = vmatpush1.msra.mxu0 0.0
      %771 = vmatprep.subr.mxu0 0.0
      %772 = vmatpush1.msra.mxu0 0.0
      %773 = vmatprep.subr.mxu0 0.0
      %774 = vmatpush1.msra.mxu0 0.0
      %775 = vmatprep.subr.mxu0 0.0
      %776 = vmatpush1.msra.mxu0 0.0
      %777 = vmatprep.subr.mxu0 0.0
      %778 = vmatpush1.msra.mxu0 0.0
      %779 = vmatprep.subr.mxu0 0.0
      %780 = vmatpush1.msra.mxu0 0.0
      %781 = vmatprep.mubr.f32.mxu0 0.0
      %782 = vmatmul.mubr.f32.gmra.mrb[0].mxu0 %v620
      %v783 = vpop.f32.mrb[0].mxu0
      %v784 = vadd.f32 0.0, %v783
      %v785 = vpop.f32.mrb[0].mxu0
      %786 = vmatprep.mubr.f32.mxu0 0.0
      %787 = vmatmul.mubr.f32.gmra.mrb[0].mxu0 %v623
      %v788 = vpop.f32.mrb[0].mxu0
      %v789 = vadd.f32 0.0, %v788
      %v790 = vpop.f32.mrb[0].mxu0
      %791 = vmatprep.mubr.f32.mxu0 0.0
      %792 = vmatmul.mubr.f32.gmra.mrb[0].mxu0 %v626
      %v793 = vpop.f32.mrb[0].mxu0
      %v794 = vadd.f32 0.0, %v793
      %v795 = vpop.f32.mrb[0].mxu0
      %796 = vdwg.mxu0
      %v797 = vadd.f32 %v499, %v701
      %v798 = vadd.f32 %v501, %v703
      %v799 = vadd.f32 %v582, %v784
      %v800 = vadd.f32 %v505, %v707
      %v801 = vadd.f32 %v507, %v709
      %v802 = vadd.f32 %v587, %v789
      %v803 = vadd.f32 %v511, %v713
      %v804 = vadd.f32 %v513, %v715
      %v805 = vadd.f32 %v592, %v794
      %s806 = scalar_lea.vmem %s1, 72
      %v807 = vld [vmem:[%s806] sm:$0xff]
      %v808 = vld [vmem:[%s806 + $0x8] sm:$0xff]
      %v809 = vld [vmem:[%s806 + $0x10] sm:$0xff]
      %810 = vrot.lane.b32.xlu0 %v198, 110
      %v811 = vpop.permute.xlu0 %810
      %812 = vrot.lane.b32.xlu0 %v199, 110
      %v813 = vpop.permute.xlu0 %812
      %814 = vrot.lane.b32.xlu0 %v200, 110
      %v815 = vpop.permute.xlu0 %814
      %816 = vrot.lane.b32.xlu0 %v201, 110
      %v817 = vpop.permute.xlu0 %816
      %818 = vrot.lane.b32.xlu0 %v202, 110
      %v819 = vpop.permute.xlu0 %818
      %820 = vrot.lane.b32.xlu0 %v203, 110
      %v821 = vpop.permute.xlu0 %820
      %vm822 = vcmask 900096
      %v823 = vsel %vm822, %v811, %v813
      %v824 = vsel %vm822, %v813, %v815
      %v825 = vsel %vm822, %v817, %v819
      %v826 = vsel %vm822, %v819, %v821
      %v831 = vsel %vm237, %v807, 0
      %v834 = vsel %vm237, %v808, 0
      %v837 = vsel %vm237, %v809, 0
      %v839 = vsel %vm247, %v825, 0
      %v841 = vsel %vm247, %v826, 0
      %v843 = vsel %vm247, %v821, 0
      %845 = vmatprep.subr.mxu0 %v824
      %846 = vmatpush1.msra.mxu0 %v823
      %847 = vmatprep.subr.mxu0 %v841
      %848 = vmatpush1.msra.mxu0 %v839
      %849 = vmatprep.subr.mxu0 0.0
      %850 = vmatpush1.msra.mxu0 0.0
      %851 = vmatprep.subr.mxu0 0.0
      %852 = vmatpush1.msra.mxu0 0.0
      %853 = vmatprep.subr.mxu0 0.0
      %854 = vmatpush1.msra.mxu0 0.0
      %855 = vmatprep.subr.mxu0 0.0
      %856 = vmatpush1.msra.mxu0 0.0
      %857 = vmatprep.subr.mxu0 0.0
      %858 = vmatpush1.msra.mxu0 0.0
      %859 = vmatprep.subr.mxu0 0.0
      %860 = vmatpush1.msra.mxu0 0.0
      %861 = vmatprep.subr.mxu0 0.0
      %862 = vmatpush1.msra.mxu0 0.0
      %863 = vmatprep.subr.mxu0 0.0
      %864 = vmatpush1.msra.mxu0 0.0
      %865 = vmatprep.subr.mxu0 0.0
      %866 = vmatpush1.msra.mxu0 0.0
      %867 = vmatprep.subr.mxu0 0.0
      %868 = vmatpush1.msra.mxu0 0.0
      %869 = vmatprep.subr.mxu0 0.0
      %870 = vmatpush1.msra.mxu0 0.0
      %871 = vmatprep.subr.mxu0 0.0
      %872 = vmatpush1.msra.mxu0 0.0
      %873 = vmatprep.subr.mxu0 0.0
      %874 = vmatpush1.msra.mxu0 0.0
      %875 = vmatprep.subr.mxu0 0.0
      %876 = vmatpush1.msra.mxu0 0.0
      %877 = vmatprep.subr.mxu0 0.0
      %878 = vmatpush1.msra.mxu0 0.0
      %879 = vmatprep.subr.mxu0 0.0
      %880 = vmatpush1.msra.mxu0 0.0
      %881 = vmatprep.subr.mxu0 0.0
      %882 = vmatpush1.msra.mxu0 0.0
      %883 = vmatprep.subr.mxu0 0.0
      %884 = vmatpush1.msra.mxu0 0.0
      %885 = vmatprep.subr.mxu0 0.0
      %886 = vmatpush1.msra.mxu0 0.0
      %887 = vmatprep.subr.mxu0 0.0
      %888 = vmatpush1.msra.mxu0 0.0
      %889 = vmatprep.subr.mxu0 0.0
      %890 = vmatpush1.msra.mxu0 0.0
      %891 = vmatprep.subr.mxu0 0.0
      %892 = vmatpush1.msra.mxu0 0.0
      %893 = vmatprep.subr.mxu0 0.0
      %894 = vmatpush1.msra.mxu0 0.0
      %895 = vmatprep.subr.mxu0 0.0
      %896 = vmatpush1.msra.mxu0 0.0
      %897 = vmatprep.subr.mxu0 0.0
      %898 = vmatpush1.msra.mxu0 0.0
      %899 = vmatprep.subr.mxu0 0.0
      %900 = vmatpush1.msra.mxu0 0.0
      %901 = vmatprep.subr.mxu0 0.0
      %902 = vmatpush1.msra.mxu0 0.0
      %903 = vmatprep.subr.mxu0 0.0
      %904 = vmatpush1.msra.mxu0 0.0
      %905 = vmatprep.subr.mxu0 0.0
      %906 = vmatpush1.msra.mxu0 0.0
      %907 = vmatprep.subr.mxu0 0.0
      %908 = vmatpush1.msra.mxu0 0.0
      %909 = vmatprep.mubr.f32.mxu0 0.0
      %910 = vmatmul.mubr.f32.gmra.mrb[0].mxu0 %v831
      %v911 = vpop.f32.mrb[0].mxu0
      %v912 = vadd.f32 0.0, %v911
      %v913 = vpop.f32.mrb[0].mxu0
      %v914 = vadd.f32 0.0, %v913
      %915 = vmatprep.mubr.f32.mxu0 0.0
      %916 = vmatmul.mubr.f32.gmra.mrb[0].mxu0 %v834
      %v917 = vpop.f32.mrb[0].mxu0
      %v918 = vadd.f32 0.0, %v917
      %v919 = vpop.f32.mrb[0].mxu0
      %v920 = vadd.f32 0.0, %v919
      %921 = vmatprep.mubr.f32.mxu0 0.0
      %922 = vmatmul.mubr.f32.gmra.mrb[0].mxu0 %v837
      %v923 = vpop.f32.mrb[0].mxu0
      %v924 = vadd.f32 0.0, %v923
      %v925 = vpop.f32.mrb[0].mxu0
      %v926 = vadd.f32 0.0, %v925
      %927 = vdwg.mxu0
      %928 = vmatprep.subr.mxu0 0.0
      %929 = vmatpush1.msra.mxu0 %v815
      %930 = vmatprep.subr.mxu0 0.0
      %931 = vmatpush1.msra.mxu0 %v843
      %932 = vmatprep.subr.mxu0 0.0
      %933 = vmatpush1.msra.mxu0 0.0
      %934 = vmatprep.subr.mxu0 0.0
      %935 = vmatpush1.msra.mxu0 0.0
      %936 = vmatprep.subr.mxu0 0.0
      %937 = vmatpush1.msra.mxu0 0.0
      %938 = vmatprep.subr.mxu0 0.0
      %939 = vmatpush1.msra.mxu0 0.0
      %940 = vmatprep.subr.mxu0 0.0
      %941 = vmatpush1.msra.mxu0 0.0
      %942 = vmatprep.subr.mxu0 0.0
      %943 = vmatpush1.msra.mxu0 0.0
      %944 = vmatprep.subr.mxu0 0.0
      %945 = vmatpush1.msra.mxu0 0.0
      %946 = vmatprep.subr.mxu0 0.0
      %947 = vmatpush1.msra.mxu0 0.0
      %948 = vmatprep.subr.mxu0 0.0
      %949 = vmatpush1.msra.mxu0 0.0
      %950 = vmatprep.subr.mxu0 0.0
      %951 = vmatpush1.msra.mxu0 0.0
      %952 = vmatprep.subr.mxu0 0.0
      %953 = vmatpush1.msra.mxu0 0.0
      %954 = vmatprep.subr.mxu0 0.0
      %955 = vmatpush1.msra.mxu0 0.0
      %956 = vmatprep.subr.mxu0 0.0
      %957 = vmatpush1.msra.mxu0 0.0
      %958 = vmatprep.subr.mxu0 0.0
      %959 = vmatpush1.msra.mxu0 0.0
      %960 = vmatprep.subr.mxu0 0.0
      %961 = vmatpush1.msra.mxu0 0.0
      %962 = vmatprep.subr.mxu0 0.0
      %963 = vmatpush1.msra.mxu0 0.0
      %964 = vmatprep.subr.mxu0 0.0
      %965 = vmatpush1.msra.mxu0 0.0
      %966 = vmatprep.subr.mxu0 0.0
      %967 = vmatpush1.msra.mxu0 0.0
      %968 = vmatprep.subr.mxu0 0.0
      %969 = vmatpush1.msra.mxu0 0.0
      %970 = vmatprep.subr.mxu0 0.0
      %971 = vmatpush1.msra.mxu0 0.0
      %972 = vmatprep.subr.mxu0 0.0
      %973 = vmatpush1.msra.mxu0 0.0
      %974 = vmatprep.subr.mxu0 0.0
      %975 = vmatpush1.msra.mxu0 0.0
      %976 = vmatprep.subr.mxu0 0.0
      %977 = vmatpush1.msra.mxu0 0.0
      %978 = vmatprep.subr.mxu0 0.0
      %979 = vmatpush1.msra.mxu0 0.0
      %980 = vmatprep.subr.mxu0 0.0
      %981 = vmatpush1.msra.mxu0 0.0
      %982 = vmatprep.subr.mxu0 0.0
      %983 = vmatpush1.msra.mxu0 0.0
      %984 = vmatprep.subr.mxu0 0.0
      %985 = vmatpush1.msra.mxu0 0.0
      %986 = vmatprep.subr.mxu0 0.0
      %987 = vmatpush1.msra.mxu0 0.0
      %988 = vmatprep.subr.mxu0 0.0
      %989 = vmatpush1.msra.mxu0 0.0
      %990 = vmatprep.subr.mxu0 0.0
      %991 = vmatpush1.msra.mxu0 0.0
      %992 = vmatprep.mubr.f32.mxu0 0.0
      %993 = vmatmul.mubr.f32.gmra.mrb[0].mxu0 %v831
      %v994 = vpop.f32.mrb[0].mxu0
      %v995 = vadd.f32 0.0, %v994
      %v996 = vpop.f32.mrb[0].mxu0
      %997 = vmatprep.mubr.f32.mxu0 0.0
      %998 = vmatmul.mubr.f32.gmra.mrb[0].mxu0 %v834
      %v999 = vpop.f32.mrb[0].mxu0
      %v1000 = vadd.f32 0.0, %v999
      %v1001 = vpop.f32.mrb[0].mxu0
      %1002 = vmatprep.mubr.f32.mxu0 0.0
      %1003 = vmatmul.mubr.f32.gmra.mrb[0].mxu0 %v837
      %v1004 = vpop.f32.mrb[0].mxu0
      %v1005 = vadd.f32 0.0, %v1004
      %v1006 = vpop.f32.mrb[0].mxu0
      %1007 = vdwg.mxu0
      %v1008 = vadd.f32 %v797, %v912
      %v1009 = vadd.f32 %v798, %v914
      %v1010 = vadd.f32 %v799, %v995
      %v1011 = vadd.f32 %v800, %v918
      %v1012 = vadd.f32 %v801, %v920
      %v1013 = vadd.f32 %v802, %v1000
      %v1014 = vadd.f32 %v803, %v924
      %v1015 = vadd.f32 %v804, %v926
      %v1016 = vadd.f32 %v805, %v1005
      %s1017 = scalar_lea.vmem %s1, 96
      %v1018 = vld [vmem:[%s1017] sm:$0xff]
      %v1019 = vld [vmem:[%s1017 + $0x8] sm:$0xff]
      %v1020 = vld [vmem:[%s1017 + $0x10] sm:$0xff]
      %1021 = vrot.lane.b32.xlu0 %v198, 109
      %v1022 = vpop.permute.xlu0 %1021
      %1023 = vrot.lane.b32.xlu0 %v199, 109
      %v1024 = vpop.permute.xlu0 %1023
      %1025 = vrot.lane.b32.xlu0 %v200, 109
      %v1026 = vpop.permute.xlu0 %1025
      %1027 = vrot.lane.b32.xlu0 %v201, 109
      %v1028 = vpop.permute.xlu0 %1027
      %1029 = vrot.lane.b32.xlu0 %v202, 109
      %v1030 = vpop.permute.xlu0 %1029
      %1031 = vrot.lane.b32.xlu0 %v203, 109
      %v1032 = vpop.permute.xlu0 %1031
      %vm1033 = vcmask 891904
      %v1034 = vsel %vm1033, %v1022, %v1024
      %v1035 = vsel %vm1033, %v1024, %v1026
      %v1036 = vsel %vm1033, %v1028, %v1030
      %v1037 = vsel %vm1033, %v1030, %v1032
      %v1042 = vsel %vm237, %v1018, 0
      %v1045 = vsel %vm237, %v1019, 0
      %v1048 = vsel %vm237, %v1020, 0
      %v1050 = vsel %vm247, %v1036, 0
      %v1052 = vsel %vm247, %v1037, 0
      %v1054 = vsel %vm247, %v1032, 0
      %1056 = vmatprep.subr.mxu0 %v1035
      %1057 = vmatpush1.msra.mxu0 %v1034
      %1058 = vmatprep.subr.mxu0 %v1052
      %1059 = vmatpush1.msra.mxu0 %v1050
      %1060 = vmatprep.subr.mxu0 0.0
      %1061 = vmatpush1.msra.mxu0 0.0
      %1062 = vmatprep.subr.mxu0 0.0
      %1063 = vmatpush1.msra.mxu0 0.0
      %1064 = vmatprep.subr.mxu0 0.0
      %1065 = vmatpush1.msra.mxu0 0.0
      %1066 = vmatprep.subr.mxu0 0.0
      %1067 = vmatpush1.msra.mxu0 0.0
      %1068 = vmatprep.subr.mxu0 0.0
      %1069 = vmatpush1.msra.mxu0 0.0
      %1070 = vmatprep.subr.mxu0 0.0
      %1071 = vmatpush1.msra.mxu0 0.0
      %1072 = vmatprep.subr.mxu0 0.0
      %1073 = vmatpush1.msra.mxu0 0.0
      %1074 = vmatprep.subr.mxu0 0.0
      %1075 = vmatpush1.msra.mxu0 0.0
      %1076 = vmatprep.subr.mxu0 0.0
      %1077 = vmatpush1.msra.mxu0 0.0
      %1078 = vmatprep.subr.mxu0 0.0
      %1079 = vmatpush1.msra.mxu0 0.0
      %1080 = vmatprep.subr.mxu0 0.0
      %1081 = vmatpush1.msra.mxu0 0.0
      %1082 = vmatprep.subr.mxu0 0.0
      %1083 = vmatpush1.msra.mxu0 0.0
      %1084 = vmatprep.subr.mxu0 0.0
      %1085 = vmatpush1.msra.mxu0 0.0
      %1086 = vmatprep.subr.mxu0 0.0
      %1087 = vmatpush1.msra.mxu0 0.0
      %1088 = vmatprep.subr.mxu0 0.0
      %1089 = vmatpush1.msra.mxu0 0.0
      %1090 = vmatprep.subr.mxu0 0.0
      %1091 = vmatpush1.msra.mxu0 0.0
      %1092 = vmatprep.subr.mxu0 0.0
      %1093 = vmatpush1.msra.mxu0 0.0
      %1094 = vmatprep.subr.mxu0 0.0
      %1095 = vmatpush1.msra.mxu0 0.0
      %1096 = vmatprep.subr.mxu0 0.0
      %1097 = vmatpush1.msra.mxu0 0.0
      %1098 = vmatprep.subr.mxu0 0.0
      %1099 = vmatpush1.msra.mxu0 0.0
      %1100 = vmatprep.subr.mxu0 0.0
      %1101 = vmatpush1.msra.mxu0 0.0
      %1102 = vmatprep.subr.mxu0 0.0
      %1103 = vmatpush1.msra.mxu0 0.0
      %1104 = vmatprep.subr.mxu0 0.0
      %1105 = vmatpush1.msra.mxu0 0.0
      %1106 = vmatprep.subr.mxu0 0.0
      %1107 = vmatpush1.msra.mxu0 0.0
      %1108 = vmatprep.subr.mxu0 0.0
      %1109 = vmatpush1.msra.mxu0 0.0
      %1110 = vmatprep.subr.mxu0 0.0
      %1111 = vmatpush1.msra.mxu0 0.0
      %1112 = vmatprep.subr.mxu0 0.0
      %1113 = vmatpush1.msra.mxu0 0.0
      %1114 = vmatprep.subr.mxu0 0.0
      %1115 = vmatpush1.msra.mxu0 0.0
      %1116 = vmatprep.subr.mxu0 0.0
      %1117 = vmatpush1.msra.mxu0 0.0
      %1118 = vmatprep.subr.mxu0 0.0
      %1119 = vmatpush1.msra.mxu0 0.0
      %1120 = vmatprep.mubr.f32.mxu0 0.0
      %1121 = vmatmul.mubr.f32.gmra.mrb[0].mxu0 %v1042
      %v1122 = vpop.f32.mrb[0].mxu0
      %v1123 = vadd.f32 0.0, %v1122
      %v1124 = vpop.f32.mrb[0].mxu0
      %v1125 = vadd.f32 0.0, %v1124
      %1126 = vmatprep.mubr.f32.mxu0 0.0
      %1127 = vmatmul.mubr.f32.gmra.mrb[0].mxu0 %v1045
      %v1128 = vpop.f32.mrb[0].mxu0
      %v1129 = vadd.f32 0.0, %v1128
      %v1130 = vpop.f32.mrb[0].mxu0
      %v1131 = vadd.f32 0.0, %v1130
      %1132 = vmatprep.mubr.f32.mxu0 0.0
      %1133 = vmatmul.mubr.f32.gmra.mrb[0].mxu0 %v1048
      %v1134 = vpop.f32.mrb[0].mxu0
      %v1135 = vadd.f32 0.0, %v1134
      %v1136 = vpop.f32.mrb[0].mxu0
      %v1137 = vadd.f32 0.0, %v1136
      %1138 = vdwg.mxu0
      %1139 = vmatprep.subr.mxu0 0.0
      %1140 = vmatpush1.msra.mxu0 %v1026
      %1141 = vmatprep.subr.mxu0 0.0
      %1142 = vmatpush1.msra.mxu0 %v1054
      %1143 = vmatprep.subr.mxu0 0.0
      %1144 = vmatpush1.msra.mxu0 0.0
      %1145 = vmatprep.subr.mxu0 0.0
      %1146 = vmatpush1.msra.mxu0 0.0
      %1147 = vmatprep.subr.mxu0 0.0
      %1148 = vmatpush1.msra.mxu0 0.0
      %1149 = vmatprep.subr.mxu0 0.0
      %1150 = vmatpush1.msra.mxu0 0.0
      %1151 = vmatprep.subr.mxu0 0.0
      %1152 = vmatpush1.msra.mxu0 0.0
      %1153 = vmatprep.subr.mxu0 0.0
      %1154 = vmatpush1.msra.mxu0 0.0
      %1155 = vmatprep.subr.mxu0 0.0
      %1156 = vmatpush1.msra.mxu0 0.0
      %1157 = vmatprep.subr.mxu0 0.0
      %1158 = vmatpush1.msra.mxu0 0.0
      %1159 = vmatprep.subr.mxu0 0.0
      %1160 = vmatpush1.msra.mxu0 0.0
      %1161 = vmatprep.subr.mxu0 0.0
      %1162 = vmatpush1.msra.mxu0 0.0
      %1163 = vmatprep.subr.mxu0 0.0
      %1164 = vmatpush1.msra.mxu0 0.0
      %1165 = vmatprep.subr.mxu0 0.0
      %1166 = vmatpush1.msra.mxu0 0.0
      %1167 = vmatprep.subr.mxu0 0.0
      %1168 = vmatpush1.msra.mxu0 0.0
      %1169 = vmatprep.subr.mxu0 0.0
      %1170 = vmatpush1.msra.mxu0 0.0
      %1171 = vmatprep.subr.mxu0 0.0
      %1172 = vmatpush1.msra.mxu0 0.0
      %1173 = vmatprep.subr.mxu0 0.0
      %1174 = vmatpush1.msra.mxu0 0.0
      %1175 = vmatprep.subr.mxu0 0.0
      %1176 = vmatpush1.msra.mxu0 0.0
      %1177 = vmatprep.subr.mxu0 0.0
      %1178 = vmatpush1.msra.mxu0 0.0
      %1179 = vmatprep.subr.mxu0 0.0
      %1180 = vmatpush1.msra.mxu0 0.0
      %1181 = vmatprep.subr.mxu0 0.0
      %1182 = vmatpush1.msra.mxu0 0.0
      %1183 = vmatprep.subr.mxu0 0.0
      %1184 = vmatpush1.msra.mxu0 0.0
      %1185 = vmatprep.subr.mxu0 0.0
      %1186 = vmatpush1.msra.mxu0 0.0
      %1187 = vmatprep.subr.mxu0 0.0
      %1188 = vmatpush1.msra.mxu0 0.0
      %1189 = vmatprep.subr.mxu0 0.0
      %1190 = vmatpush1.msra.mxu0 0.0
      %1191 = vmatprep.subr.mxu0 0.0
      %1192 = vmatpush1.msra.mxu0 0.0
      %1193 = vmatprep.subr.mxu0 0.0
      %1194 = vmatpush1.msra.mxu0 0.0
      %1195 = vmatprep.subr.mxu0 0.0
      %1196 = vmatpush1.msra.mxu0 0.0
      %1197 = vmatprep.subr.mxu0 0.0
      %1198 = vmatpush1.msra.mxu0 0.0
      %1199 = vmatprep.subr.mxu0 0.0
      %1200 = vmatpush1.msra.mxu0 0.0
      %1201 = vmatprep.subr.mxu0 0.0
      %1202 = vmatpush1.msra.mxu0 0.0
      %1203 = vmatprep.mubr.f32.mxu0 0.0
      %1204 = vmatmul.mubr.f32.gmra.mrb[0].mxu0 %v1042
      %v1205 = vpop.f32.mrb[0].mxu0
      %v1206 = vadd.f32 0.0, %v1205
      %v1207 = vpop.f32.mrb[0].mxu0
      %1208 = vmatprep.mubr.f32.mxu0 0.0
      %1209 = vmatmul.mubr.f32.gmra.mrb[0].mxu0 %v1045
      %v1210 = vpop.f32.mrb[0].mxu0
      %v1211 = vadd.f32 0.0, %v1210
      %v1212 = vpop.f32.mrb[0].mxu0
      %1213 = vmatprep.mubr.f32.mxu0 0.0
      %1214 = vmatmul.mubr.f32.gmra.mrb[0].mxu0 %v1048
      %v1215 = vpop.f32.mrb[0].mxu0
      %v1216 = vadd.f32 0.0, %v1215
      %v1217 = vpop.f32.mrb[0].mxu0
      %1218 = vdwg.mxu0
      %v1219 = vadd.f32 %v1008, %v1123
      %v1220 = vadd.f32 %v1009, %v1125
      %v1221 = vadd.f32 %v1010, %v1206
      %v1222 = vadd.f32 %v1011, %v1129
      %v1223 = vadd.f32 %v1012, %v1131
      %v1224 = vadd.f32 %v1013, %v1211
      %v1225 = vadd.f32 %v1014, %v1135
      %v1226 = vadd.f32 %v1015, %v1137
      %v1227 = vadd.f32 %v1016, %v1216
      %s1228 = scalar_lea.vmem %s1, 120
      %v1229 = vld [vmem:[%s1228] sm:$0xff]
      %v1230 = vld [vmem:[%s1228 + $0x8] sm:$0xff]
      %v1231 = vld [vmem:[%s1228 + $0x10] sm:$0xff]
      %1232 = vrot.lane.b32.xlu0 %v198, 108
      %v1233 = vpop.permute.xlu0 %1232
      %1234 = vrot.lane.b32.xlu0 %v199, 108
      %v1235 = vpop.permute.xlu0 %1234
      %1236 = vrot.lane.b32.xlu0 %v200, 108
      %v1237 = vpop.permute.xlu0 %1236
      %1238 = vrot.lane.b32.xlu0 %v201, 108
      %v1239 = vpop.permute.xlu0 %1238
      %1240 = vrot.lane.b32.xlu0 %v202, 108
      %v1241 = vpop.permute.xlu0 %1240
      %1242 = vrot.lane.b32.xlu0 %v203, 108
      %v1243 = vpop.permute.xlu0 %1242
      %vm1244 = vcmask 883712
      %v1245 = vsel %vm1244, %v1233, %v1235
      %v1246 = vsel %vm1244, %v1235, %v1237
      %v1247 = vsel %vm1244, %v1239, %v1241
      %v1248 = vsel %vm1244, %v1241, %v1243
      %v1253 = vsel %vm237, %v1229, 0
      %v1256 = vsel %vm237, %v1230, 0
      %v1259 = vsel %vm237, %v1231, 0
      %v1261 = vsel %vm247, %v1247, 0
      %v1263 = vsel %vm247, %v1248, 0
      %v1265 = vsel %vm247, %v1243, 0
      %1267 = vmatprep.subr.mxu0 %v1246
      %1268 = vmatpush1.msra.mxu0 %v1245
      %1269 = vmatprep.subr.mxu0 %v1263
      %1270 = vmatpush1.msra.mxu0 %v1261
      %1271 = vmatprep.subr.mxu0 0.0
      %1272 = vmatpush1.msra.mxu0 0.0
      %1273 = vmatprep.subr.mxu0 0.0
      %1274 = vmatpush1.msra.mxu0 0.0
      %1275 = vmatprep.subr.mxu0 0.0
      %1276 = vmatpush1.msra.mxu0 0.0
      %1277 = vmatprep.subr.mxu0 0.0
      %1278 = vmatpush1.msra.mxu0 0.0
      %1279 = vmatprep.subr.mxu0 0.0
      %1280 = vmatpush1.msra.mxu0 0.0
      %1281 = vmatprep.subr.mxu0 0.0
      %1282 = vmatpush1.msra.mxu0 0.0
      %1283 = vmatprep.subr.mxu0 0.0
      %1284 = vmatpush1.msra.mxu0 0.0
      %1285 = vmatprep.subr.mxu0 0.0
      %1286 = vmatpush1.msra.mxu0 0.0
      %1287 = vmatprep.subr.mxu0 0.0
      %1288 = vmatpush1.msra.mxu0 0.0
      %1289 = vmatprep.subr.mxu0 0.0
      %1290 = vmatpush1.msra.mxu0 0.0
      %1291 = vmatprep.subr.mxu0 0.0
      %1292 = vmatpush1.msra.mxu0 0.0
      %1293 = vmatprep.subr.mxu0 0.0
      %1294 = vmatpush1.msra.mxu0 0.0
      %1295 = vmatprep.subr.mxu0 0.0
      %1296 = vmatpush1.msra.mxu0 0.0
      %1297 = vmatprep.subr.mxu0 0.0
      %1298 = vmatpush1.msra.mxu0 0.0
      %1299 = vmatprep.subr.mxu0 0.0
      %1300 = vmatpush1.msra.mxu0 0.0
      %1301 = vmatprep.subr.mxu0 0.0
      %1302 = vmatpush1.msra.mxu0 0.0
      %1303 = vmatprep.subr.mxu0 0.0
      %1304 = vmatpush1.msra.mxu0 0.0
      %1305 = vmatprep.subr.mxu0 0.0
      %1306 = vmatpush1.msra.mxu0 0.0
      %1307 = vmatprep.subr.mxu0 0.0
      %1308 = vmatpush1.msra.mxu0 0.0
      %1309 = vmatprep.subr.mxu0 0.0
      %1310 = vmatpush1.msra.mxu0 0.0
      %1311 = vmatprep.subr.mxu0 0.0
      %1312 = vmatpush1.msra.mxu0 0.0
      %1313 = vmatprep.subr.mxu0 0.0
      %1314 = vmatpush1.msra.mxu0 0.0
      %1315 = vmatprep.subr.mxu0 0.0
      %1316 = vmatpush1.msra.mxu0 0.0
      %1317 = vmatprep.subr.mxu0 0.0
      %1318 = vmatpush1.msra.mxu0 0.0
      %1319 = vmatprep.subr.mxu0 0.0
      %1320 = vmatpush1.msra.mxu0 0.0
      %1321 = vmatprep.subr.mxu0 0.0
      %1322 = vmatpush1.msra.mxu0 0.0
      %1323 = vmatprep.subr.mxu0 0.0
      %1324 = vmatpush1.msra.mxu0 0.0
      %1325 = vmatprep.subr.mxu0 0.0
      %1326 = vmatpush1.msra.mxu0 0.0
      %1327 = vmatprep.subr.mxu0 0.0
      %1328 = vmatpush1.msra.mxu0 0.0
      %1329 = vmatprep.subr.mxu0 0.0
      %1330 = vmatpush1.msra.mxu0 0.0
      %1331 = vmatprep.mubr.f32.mxu0 0.0
      %1332 = vmatmul.mubr.f32.gmra.mrb[0].mxu0 %v1253
      %v1333 = vpop.f32.mrb[0].mxu0
      %v1334 = vadd.f32 0.0, %v1333
      %v1335 = vpop.f32.mrb[0].mxu0
      %v1336 = vadd.f32 0.0, %v1335
      %1337 = vmatprep.mubr.f32.mxu0 0.0
      %1338 = vmatmul.mubr.f32.gmra.mrb[0].mxu0 %v1256
      %v1339 = vpop.f32.mrb[0].mxu0
      %v1340 = vadd.f32 0.0, %v1339
      %v1341 = vpop.f32.mrb[0].mxu0
      %v1342 = vadd.f32 0.0, %v1341
      %1343 = vmatprep.mubr.f32.mxu0 0.0
      %1344 = vmatmul.mubr.f32.gmra.mrb[0].mxu0 %v1259
      %v1345 = vpop.f32.mrb[0].mxu0
      %v1346 = vadd.f32 0.0, %v1345
      %v1347 = vpop.f32.mrb[0].mxu0
      %v1348 = vadd.f32 0.0, %v1347
      %1349 = vdwg.mxu0
      %1350 = vmatprep.subr.mxu0 0.0
      %1351 = vmatpush1.msra.mxu0 %v1237
      %1352 = vmatprep.subr.mxu0 0.0
      %1353 = vmatpush1.msra.mxu0 %v1265
      %1354 = vmatprep.subr.mxu0 0.0
      %1355 = vmatpush1.msra.mxu0 0.0
      %1356 = vmatprep.subr.mxu0 0.0
      %1357 = vmatpush1.msra.mxu0 0.0
      %1358 = vmatprep.subr.mxu0 0.0
      %1359 = vmatpush1.msra.mxu0 0.0
      %1360 = vmatprep.subr.mxu0 0.0
      %1361 = vmatpush1.msra.mxu0 0.0
      %1362 = vmatprep.subr.mxu0 0.0
      %1363 = vmatpush1.msra.mxu0 0.0
      %1364 = vmatprep.subr.mxu0 0.0
      %1365 = vmatpush1.msra.mxu0 0.0
      %1366 = vmatprep.subr.mxu0 0.0
      %1367 = vmatpush1.msra.mxu0 0.0
      %1368 = vmatprep.subr.mxu0 0.0
      %1369 = vmatpush1.msra.mxu0 0.0
      %1370 = vmatprep.subr.mxu0 0.0
      %1371 = vmatpush1.msra.mxu0 0.0
      %1372 = vmatprep.subr.mxu0 0.0
      %1373 = vmatpush1.msra.mxu0 0.0
      %1374 = vmatprep.subr.mxu0 0.0
      %1375 = vmatpush1.msra.mxu0 0.0
      %1376 = vmatprep.subr.mxu0 0.0
      %1377 = vmatpush1.msra.mxu0 0.0
      %1378 = vmatprep.subr.mxu0 0.0
      %1379 = vmatpush1.msra.mxu0 0.0
      %1380 = vmatprep.subr.mxu0 0.0
      %1381 = vmatpush1.msra.mxu0 0.0
      %1382 = vmatprep.subr.mxu0 0.0
      %1383 = vmatpush1.msra.mxu0 0.0
      %1384 = vmatprep.subr.mxu0 0.0
      %1385 = vmatpush1.msra.mxu0 0.0
      %1386 = vmatprep.subr.mxu0 0.0
      %1387 = vmatpush1.msra.mxu0 0.0
      %1388 = vmatprep.subr.mxu0 0.0
      %1389 = vmatpush1.msra.mxu0 0.0
      %1390 = vmatprep.subr.mxu0 0.0
      %1391 = vmatpush1.msra.mxu0 0.0
      %1392 = vmatprep.subr.mxu0 0.0
      %1393 = vmatpush1.msra.mxu0 0.0
      %1394 = vmatprep.subr.mxu0 0.0
      %1395 = vmatpush1.msra.mxu0 0.0
      %1396 = vmatprep.subr.mxu0 0.0
      %1397 = vmatpush1.msra.mxu0 0.0
      %1398 = vmatprep.subr.mxu0 0.0
      %1399 = vmatpush1.msra.mxu0 0.0
      %1400 = vmatprep.subr.mxu0 0.0
      %1401 = vmatpush1.msra.mxu0 0.0
      %1402 = vmatprep.subr.mxu0 0.0
      %1403 = vmatpush1.msra.mxu0 0.0
      %1404 = vmatprep.subr.mxu0 0.0
      %1405 = vmatpush1.msra.mxu0 0.0
      %1406 = vmatprep.subr.mxu0 0.0
      %1407 = vmatpush1.msra.mxu0 0.0
      %1408 = vmatprep.subr.mxu0 0.0
      %1409 = vmatpush1.msra.mxu0 0.0
      %1410 = vmatprep.subr.mxu0 0.0
      %1411 = vmatpush1.msra.mxu0 0.0
      %1412 = vmatprep.subr.mxu0 0.0
      %1413 = vmatpush1.msra.mxu0 0.0
      %1414 = vmatprep.mubr.f32.mxu0 0.0
      %1415 = vmatmul.mubr.f32.gmra.mrb[0].mxu0 %v1253
      %v1416 = vpop.f32.mrb[0].mxu0
      %v1417 = vadd.f32 0.0, %v1416
      %v1418 = vpop.f32.mrb[0].mxu0
      %1419 = vmatprep.mubr.f32.mxu0 0.0
      %1420 = vmatmul.mubr.f32.gmra.mrb[0].mxu0 %v1256
      %v1421 = vpop.f32.mrb[0].mxu0
      %v1422 = vadd.f32 0.0, %v1421
      %v1423 = vpop.f32.mrb[0].mxu0
      %1424 = vmatprep.mubr.f32.mxu0 0.0
      %1425 = vmatmul.mubr.f32.gmra.mrb[0].mxu0 %v1259
      %v1426 = vpop.f32.mrb[0].mxu0
      %v1427 = vadd.f32 0.0, %v1426
      %v1428 = vpop.f32.mrb[0].mxu0
      %1429 = vdwg.mxu0
      %v1430 = vadd.f32 %v1219, %v1334
      %v1431 = vadd.f32 %v1220, %v1336
      %v1432 = vadd.f32 %v1221, %v1417
      %v1433 = vadd.f32 %v1222, %v1340
      %v1434 = vadd.f32 %v1223, %v1342
      %v1435 = vadd.f32 %v1224, %v1422
      %v1436 = vadd.f32 %v1225, %v1346
      %v1437 = vadd.f32 %v1226, %v1348
      %v1438 = vadd.f32 %v1227, %v1427
      %s1439 = scalar_lea.vmem %s1, 144
      %v1440 = vld [vmem:[%s1439] sm:$0xff]
      %v1441 = vld [vmem:[%s1439 + $0x8] sm:$0xff]
      %v1442 = vld [vmem:[%s1439 + $0x10] sm:$0xff]
      %1443 = vrot.lane.b32.xlu0 %v198, 92
      %v1444 = vpop.permute.xlu0 %1443
      %1445 = vrot.lane.b32.xlu0 %v199, 92
      %v1446 = vpop.permute.xlu0 %1445
      %1447 = vrot.lane.b32.xlu0 %v200, 92
      %v1448 = vpop.permute.xlu0 %1447
      %1449 = vrot.lane.b32.xlu0 %v201, 92
      %v1450 = vpop.permute.xlu0 %1449
      %1451 = vrot.lane.b32.xlu0 %v202, 92
      %v1452 = vpop.permute.xlu0 %1451
      %1453 = vrot.lane.b32.xlu0 %v203, 92
      %v1454 = vpop.permute.xlu0 %1453
      %vm1455 = vcmask 752640
      %v1456 = vsel %vm1455, %v1444, %v1446
      %v1457 = vsel %vm1455, %v1446, %v1448
      %v1458 = vsel %vm1455, %v1450, %v1452
      %v1459 = vsel %vm1455, %v1452, %v1454
      %v1464 = vsel %vm237, %v1440, 0
      %v1467 = vsel %vm237, %v1441, 0
      %v1470 = vsel %vm237, %v1442, 0
      %v1472 = vsel %vm247, %v1458, 0
      %v1474 = vsel %vm247, %v1459, 0
      %v1476 = vsel %vm247, %v1454, 0
      %1478 = vmatprep.subr.mxu0 %v1457
      %1479 = vmatpush1.msra.mxu0 %v1456
      %1480 = vmatprep.subr.mxu0 %v1474
      %1481 = vmatpush1.msra.mxu0 %v1472
      %1482 = vmatprep.subr.mxu0 0.0
      %1483 = vmatpush1.msra.mxu0 0.0
      %1484 = vmatprep.subr.mxu0 0.0
      %1485 = vmatpush1.msra.mxu0 0.0
      %1486 = vmatprep.subr.mxu0 0.0
      %1487 = vmatpush1.msra.mxu0 0.0
      %1488 = vmatprep.subr.mxu0 0.0
      %1489 = vmatpush1.msra.mxu0 0.0
      %1490 = vmatprep.subr.mxu0 0.0
      %1491 = vmatpush1.msra.mxu0 0.0
      %1492 = vmatprep.subr.mxu0 0.0
      %1493 = vmatpush1.msra.mxu0 0.0
      %1494 = vmatprep.subr.mxu0 0.0
      %1495 = vmatpush1.msra.mxu0 0.0
      %1496 = vmatprep.subr.mxu0 0.0
      %1497 = vmatpush1.msra.mxu0 0.0
      %1498 = vmatprep.subr.mxu0 0.0
      %1499 = vmatpush1.msra.mxu0 0.0
      %1500 = vmatprep.subr.mxu0 0.0
      %1501 = vmatpush1.msra.mxu0 0.0
      %1502 = vmatprep.subr.mxu0 0.0
      %1503 = vmatpush1.msra.mxu0 0.0
      %1504 = vmatprep.subr.mxu0 0.0
      %1505 = vmatpush1.msra.mxu0 0.0
      %1506 = vmatprep.subr.mxu0 0.0
      %1507 = vmatpush1.msra.mxu0 0.0
      %1508 = vmatprep.subr.mxu0 0.0
      %1509 = vmatpush1.msra.mxu0 0.0
      %1510 = vmatprep.subr.mxu0 0.0
      %1511 = vmatpush1.msra.mxu0 0.0
      %1512 = vmatprep.subr.mxu0 0.0
      %1513 = vmatpush1.msra.mxu0 0.0
      %1514 = vmatprep.subr.mxu0 0.0
      %1515 = vmatpush1.msra.mxu0 0.0
      %1516 = vmatprep.subr.mxu0 0.0
      %1517 = vmatpush1.msra.mxu0 0.0
      %1518 = vmatprep.subr.mxu0 0.0
      %1519 = vmatpush1.msra.mxu0 0.0
      %1520 = vmatprep.subr.mxu0 0.0
      %1521 = vmatpush1.msra.mxu0 0.0
      %1522 = vmatprep.subr.mxu0 0.0
      %1523 = vmatpush1.msra.mxu0 0.0
      %1524 = vmatprep.subr.mxu0 0.0
      %1525 = vmatpush1.msra.mxu0 0.0
      %1526 = vmatprep.subr.mxu0 0.0
      %1527 = vmatpush1.msra.mxu0 0.0
      %1528 = vmatprep.subr.mxu0 0.0
      %1529 = vmatpush1.msra.mxu0 0.0
      %1530 = vmatprep.subr.mxu0 0.0
      %1531 = vmatpush1.msra.mxu0 0.0
      %1532 = vmatprep.subr.mxu0 0.0
      %1533 = vmatpush1.msra.mxu0 0.0
      %1534 = vmatprep.subr.mxu0 0.0
      %1535 = vmatpush1.msra.mxu0 0.0
      %1536 = vmatprep.subr.mxu0 0.0
      %1537 = vmatpush1.msra.mxu0 0.0
      %1538 = vmatprep.subr.mxu0 0.0
      %1539 = vmatpush1.msra.mxu0 0.0
      %1540 = vmatprep.subr.mxu0 0.0
      %1541 = vmatpush1.msra.mxu0 0.0
      %1542 = vmatprep.mubr.f32.mxu0 0.0
      %1543 = vmatmul.mubr.f32.gmra.mrb[0].mxu0 %v1464
      %v1544 = vpop.f32.mrb[0].mxu0
      %v1545 = vadd.f32 0.0, %v1544
      %v1546 = vpop.f32.mrb[0].mxu0
      %v1547 = vadd.f32 0.0, %v1546
      %1548 = vmatprep.mubr.f32.mxu0 0.0
      %1549 = vmatmul.mubr.f32.gmra.mrb[0].mxu0 %v1467
      %v1550 = vpop.f32.mrb[0].mxu0
      %v1551 = vadd.f32 0.0, %v1550
      %v1552 = vpop.f32.mrb[0].mxu0
      %v1553 = vadd.f32 0.0, %v1552
      %1554 = vmatprep.mubr.f32.mxu0 0.0
      %1555 = vmatmul.mubr.f32.gmra.mrb[0].mxu0 %v1470
      %v1556 = vpop.f32.mrb[0].mxu0
      %v1557 = vadd.f32 0.0, %v1556
      %v1558 = vpop.f32.mrb[0].mxu0
      %v1559 = vadd.f32 0.0, %v1558
      %1560 = vdwg.mxu0
      %1561 = vmatprep.subr.mxu0 0.0
      %1562 = vmatpush1.msra.mxu0 %v1448
      %1563 = vmatprep.subr.mxu0 0.0
      %1564 = vmatpush1.msra.mxu0 %v1476
      %1565 = vmatprep.subr.mxu0 0.0
      %1566 = vmatpush1.msra.mxu0 0.0
      %1567 = vmatprep.subr.mxu0 0.0
      %1568 = vmatpush1.msra.mxu0 0.0
      %1569 = vmatprep.subr.mxu0 0.0
      %1570 = vmatpush1.msra.mxu0 0.0
      %1571 = vmatprep.subr.mxu0 0.0
      %1572 = vmatpush1.msra.mxu0 0.0
      %1573 = vmatprep.subr.mxu0 0.0
      %1574 = vmatpush1.msra.mxu0 0.0
      %1575 = vmatprep.subr.mxu0 0.0
      %1576 = vmatpush1.msra.mxu0 0.0
      %1577 = vmatprep.subr.mxu0 0.0
      %1578 = vmatpush1.msra.mxu0 0.0
      %1579 = vmatprep.subr.mxu0 0.0
      %1580 = vmatpush1.msra.mxu0 0.0
      %1581 = vmatprep.subr.mxu0 0.0
      %1582 = vmatpush1.msra.mxu0 0.0
      %1583 = vmatprep.subr.mxu0 0.0
      %1584 = vmatpush1.msra.mxu0 0.0
      %1585 = vmatprep.subr.mxu0 0.0
      %1586 = vmatpush1.msra.mxu0 0.0
      %1587 = vmatprep.subr.mxu0 0.0
      %1588 = vmatpush1.msra.mxu0 0.0
      %1589 = vmatprep.subr.mxu0 0.0
      %1590 = vmatpush1.msra.mxu0 0.0
      %1591 = vmatprep.subr.mxu0 0.0
      %1592 = vmatpush1.msra.mxu0 0.0
      %1593 = vmatprep.subr.mxu0 0.0
      %1594 = vmatpush1.msra.mxu0 0.0
      %1595 = vmatprep.subr.mxu0 0.0
      %1596 = vmatpush1.msra.mxu0 0.0
      %1597 = vmatprep.subr.mxu0 0.0
      %1598 = vmatpush1.msra.mxu0 0.0
      %1599 = vmatprep.subr.mxu0 0.0
      %1600 = vmatpush1.msra.mxu0 0.0
      %1601 = vmatprep.subr.mxu0 0.0
      %1602 = vmatpush1.msra.mxu0 0.0
      %1603 = vmatprep.subr.mxu0 0.0
      %1604 = vmatpush1.msra.mxu0 0.0
      %1605 = vmatprep.subr.mxu0 0.0
      %1606 = vmatpush1.msra.mxu0 0.0
      %1607 = vmatprep.subr.mxu0 0.0
      %1608 = vmatpush1.msra.mxu0 0.0
      %1609 = vmatprep.subr.mxu0 0.0
      %1610 = vmatpush1.msra.mxu0 0.0
      %1611 = vmatprep.subr.mxu0 0.0
      %1612 = vmatpush1.msra.mxu0 0.0
      %1613 = vmatprep.subr.mxu0 0.0
      %1614 = vmatpush1.msra.mxu0 0.0
      %1615 = vmatprep.subr.mxu0 0.0
      %1616 = vmatpush1.msra.mxu0 0.0
      %1617 = vmatprep.subr.mxu0 0.0
      %1618 = vmatpush1.msra.mxu0 0.0
      %1619 = vmatprep.subr.mxu0 0.0
      %1620 = vmatpush1.msra.mxu0 0.0
      %1621 = vmatprep.subr.mxu0 0.0
      %1622 = vmatpush1.msra.mxu0 0.0
      %1623 = vmatprep.subr.mxu0 0.0
      %1624 = vmatpush1.msra.mxu0 0.0
      %1625 = vmatprep.mubr.f32.mxu0 0.0
      %1626 = vmatmul.mubr.f32.gmra.mrb[0].mxu0 %v1464
      %v1627 = vpop.f32.mrb[0].mxu0
      %v1628 = vadd.f32 0.0, %v1627
      %v1629 = vpop.f32.mrb[0].mxu0
      %1630 = vmatprep.mubr.f32.mxu0 0.0
      %1631 = vmatmul.mubr.f32.gmra.mrb[0].mxu0 %v1467
      %v1632 = vpop.f32.mrb[0].mxu0
      %v1633 = vadd.f32 0.0, %v1632
      %v1634 = vpop.f32.mrb[0].mxu0
      %1635 = vmatprep.mubr.f32.mxu0 0.0
      %1636 = vmatmul.mubr.f32.gmra.mrb[0].mxu0 %v1470
      %v1637 = vpop.f32.mrb[0].mxu0
      %v1638 = vadd.f32 0.0, %v1637
      %v1639 = vpop.f32.mrb[0].mxu0
      %1640 = vdwg.mxu0
      %v1641 = vadd.f32 %v1430, %v1545
      %v1642 = vadd.f32 %v1431, %v1547
      %v1643 = vadd.f32 %v1432, %v1628
      %v1644 = vadd.f32 %v1433, %v1551
      %v1645 = vadd.f32 %v1434, %v1553
      %v1646 = vadd.f32 %v1435, %v1633
      %v1647 = vadd.f32 %v1436, %v1557
      %v1648 = vadd.f32 %v1437, %v1559
      %v1649 = vadd.f32 %v1438, %v1638
      %s1650 = scalar_lea.vmem %s1, 168
      %v1651 = vld [vmem:[%s1650] sm:$0xff]
      %v1652 = vld [vmem:[%s1650 + $0x8] sm:$0xff]
      %v1653 = vld [vmem:[%s1650 + $0x10] sm:$0xff]
      %1654 = vrot.lane.b32.xlu0 %v198, 91
      %v1655 = vpop.permute.xlu0 %1654
      %1656 = vrot.lane.b32.xlu0 %v199, 91
      %v1657 = vpop.permute.xlu0 %1656
      %1658 = vrot.lane.b32.xlu0 %v200, 91
      %v1659 = vpop.permute.xlu0 %1658
      %1660 = vrot.lane.b32.xlu0 %v201, 91
      %v1661 = vpop.permute.xlu0 %1660
      %1662 = vrot.lane.b32.xlu0 %v202, 91
      %v1663 = vpop.permute.xlu0 %1662
      %1664 = vrot.lane.b32.xlu0 %v203, 91
      %v1665 = vpop.permute.xlu0 %1664
      %vm1666 = vcmask 744448
      %v1667 = vsel %vm1666, %v1655, %v1657
      %v1668 = vsel %vm1666, %v1657, %v1659
      %v1669 = vsel %vm1666, %v1661, %v1663
      %v1670 = vsel %vm1666, %v1663, %v1665
      %v1675 = vsel %vm237, %v1651, 0
      %v1678 = vsel %vm237, %v1652, 0
      %v1681 = vsel %vm237, %v1653, 0
      %v1683 = vsel %vm247, %v1669, 0
      %v1685 = vsel %vm247, %v1670, 0
      %v1687 = vsel %vm247, %v1665, 0
      %1689 = vmatprep.subr.mxu0 %v1668
      %1690 = vmatpush1.msra.mxu0 %v1667
      %1691 = vmatprep.subr.mxu0 %v1685
      %1692 = vmatpush1.msra.mxu0 %v1683
      %1693 = vmatprep.subr.mxu0 0.0
      %1694 = vmatpush1.msra.mxu0 0.0
      %1695 = vmatprep.subr.mxu0 0.0
      %1696 = vmatpush1.msra.mxu0 0.0
      %1697 = vmatprep.subr.mxu0 0.0
      %1698 = vmatpush1.msra.mxu0 0.0
      %1699 = vmatprep.subr.mxu0 0.0
      %1700 = vmatpush1.msra.mxu0 0.0
      %1701 = vmatprep.subr.mxu0 0.0
      %1702 = vmatpush1.msra.mxu0 0.0
      %1703 = vmatprep.subr.mxu0 0.0
      %1704 = vmatpush1.msra.mxu0 0.0
      %1705 = vmatprep.subr.mxu0 0.0
      %1706 = vmatpush1.msra.mxu0 0.0
      %1707 = vmatprep.subr.mxu0 0.0
      %1708 = vmatpush1.msra.mxu0 0.0
      %1709 = vmatprep.subr.mxu0 0.0
      %1710 = vmatpush1.msra.mxu0 0.0
      %1711 = vmatprep.subr.mxu0 0.0
      %1712 = vmatpush1.msra.mxu0 0.0
      %1713 = vmatprep.subr.mxu0 0.0
      %1714 = vmatpush1.msra.mxu0 0.0
      %1715 = vmatprep.subr.mxu0 0.0
      %1716 = vmatpush1.msra.mxu0 0.0
      %1717 = vmatprep.subr.mxu0 0.0
      %1718 = vmatpush1.msra.mxu0 0.0
      %1719 = vmatprep.subr.mxu0 0.0
      %1720 = vmatpush1.msra.mxu0 0.0
      %1721 = vmatprep.subr.mxu0 0.0
      %1722 = vmatpush1.msra.mxu0 0.0
      %1723 = vmatprep.subr.mxu0 0.0
      %1724 = vmatpush1.msra.mxu0 0.0
      %1725 = vmatprep.subr.mxu0 0.0
      %1726 = vmatpush1.msra.mxu0 0.0
      %1727 = vmatprep.subr.mxu0 0.0
      %1728 = vmatpush1.msra.mxu0 0.0
      %1729 = vmatprep.subr.mxu0 0.0
      %1730 = vmatpush1.msra.mxu0 0.0
      %1731 = vmatprep.subr.mxu0 0.0
      %1732 = vmatpush1.msra.mxu0 0.0
      %1733 = vmatprep.subr.mxu0 0.0
      %1734 = vmatpush1.msra.mxu0 0.0
      %1735 = vmatprep.subr.mxu0 0.0
      %1736 = vmatpush1.msra.mxu0 0.0
      %1737 = vmatprep.subr.mxu0 0.0
      %1738 = vmatpush1.msra.mxu0 0.0
      %1739 = vmatprep.subr.mxu0 0.0
      %1740 = vmatpush1.msra.mxu0 0.0
      %1741 = vmatprep.subr.mxu0 0.0
      %1742 = vmatpush1.msra.mxu0 0.0
      %1743 = vmatprep.subr.mxu0 0.0
      %1744 = vmatpush1.msra.mxu0 0.0
      %1745 = vmatprep.subr.mxu0 0.0
      %1746 = vmatpush1.msra.mxu0 0.0
      %1747 = vmatprep.subr.mxu0 0.0
      %1748 = vmatpush1.msra.mxu0 0.0
      %1749 = vmatprep.subr.mxu0 0.0
      %1750 = vmatpush1.msra.mxu0 0.0
      %1751 = vmatprep.subr.mxu0 0.0
      %1752 = vmatpush1.msra.mxu0 0.0
      %1753 = vmatprep.mubr.f32.mxu0 0.0
      %1754 = vmatmul.mubr.f32.gmra.mrb[0].mxu0 %v1675
      %v1755 = vpop.f32.mrb[0].mxu0
      %v1756 = vadd.f32 0.0, %v1755
      %v1757 = vpop.f32.mrb[0].mxu0
      %v1758 = vadd.f32 0.0, %v1757
      %1759 = vmatprep.mubr.f32.mxu0 0.0
      %1760 = vmatmul.mubr.f32.gmra.mrb[0].mxu0 %v1678
      %v1761 = vpop.f32.mrb[0].mxu0
      %v1762 = vadd.f32 0.0, %v1761
      %v1763 = vpop.f32.mrb[0].mxu0
      %v1764 = vadd.f32 0.0, %v1763
      %1765 = vmatprep.mubr.f32.mxu0 0.0
      %1766 = vmatmul.mubr.f32.gmra.mrb[0].mxu0 %v1681
      %v1767 = vpop.f32.mrb[0].mxu0
      %v1768 = vadd.f32 0.0, %v1767
      %v1769 = vpop.f32.mrb[0].mxu0
      %v1770 = vadd.f32 0.0, %v1769
      %1771 = vdwg.mxu0
      %1772 = vmatprep.subr.mxu0 0.0
      %1773 = vmatpush1.msra.mxu0 %v1659
      %1774 = vmatprep.subr.mxu0 0.0
      %1775 = vmatpush1.msra.mxu0 %v1687
      %1776 = vmatprep.subr.mxu0 0.0
      %1777 = vmatpush1.msra.mxu0 0.0
      %1778 = vmatprep.subr.mxu0 0.0
      %1779 = vmatpush1.msra.mxu0 0.0
      %1780 = vmatprep.subr.mxu0 0.0
      %1781 = vmatpush1.msra.mxu0 0.0
      %1782 = vmatprep.subr.mxu0 0.0
      %1783 = vmatpush1.msra.mxu0 0.0
      %1784 = vmatprep.subr.mxu0 0.0
      %1785 = vmatpush1.msra.mxu0 0.0
      %1786 = vmatprep.subr.mxu0 0.0
      %1787 = vmatpush1.msra.mxu0 0.0
      %1788 = vmatprep.subr.mxu0 0.0
      %1789 = vmatpush1.msra.mxu0 0.0
      %1790 = vmatprep.subr.mxu0 0.0
      %1791 = vmatpush1.msra.mxu0 0.0
      %1792 = vmatprep.subr.mxu0 0.0
      %1793 = vmatpush1.msra.mxu0 0.0
      %1794 = vmatprep.subr.mxu0 0.0
      %1795 = vmatpush1.msra.mxu0 0.0
      %1796 = vmatprep.subr.mxu0 0.0
      %1797 = vmatpush1.msra.mxu0 0.0
      %1798 = vmatprep.subr.mxu0 0.0
      %1799 = vmatpush1.msra.mxu0 0.0
      %1800 = vmatprep.subr.mxu0 0.0
      %1801 = vmatpush1.msra.mxu0 0.0
      %1802 = vmatprep.subr.mxu0 0.0
      %1803 = vmatpush1.msra.mxu0 0.0
      %1804 = vmatprep.subr.mxu0 0.0
      %1805 = vmatpush1.msra.mxu0 0.0
      %1806 = vmatprep.subr.mxu0 0.0
      %1807 = vmatpush1.msra.mxu0 0.0
      %1808 = vmatprep.subr.mxu0 0.0
      %1809 = vmatpush1.msra.mxu0 0.0
      %1810 = vmatprep.subr.mxu0 0.0
      %1811 = vmatpush1.msra.mxu0 0.0
      %1812 = vmatprep.subr.mxu0 0.0
      %1813 = vmatpush1.msra.mxu0 0.0
      %1814 = vmatprep.subr.mxu0 0.0
      %1815 = vmatpush1.msra.mxu0 0.0
      %1816 = vmatprep.subr.mxu0 0.0
      %1817 = vmatpush1.msra.mxu0 0.0
      %1818 = vmatprep.subr.mxu0 0.0
      %1819 = vmatpush1.msra.mxu0 0.0
      %1820 = vmatprep.subr.mxu0 0.0
      %1821 = vmatpush1.msra.mxu0 0.0
      %1822 = vmatprep.subr.mxu0 0.0
      %1823 = vmatpush1.msra.mxu0 0.0
      %1824 = vmatprep.subr.mxu0 0.0
      %1825 = vmatpush1.msra.mxu0 0.0
      %1826 = vmatprep.subr.mxu0 0.0
      %1827 = vmatpush1.msra.mxu0 0.0
      %1828 = vmatprep.subr.mxu0 0.0
      %1829 = vmatpush1.msra.mxu0 0.0
      %1830 = vmatprep.subr.mxu0 0.0
      %1831 = vmatpush1.msra.mxu0 0.0
      %1832 = vmatprep.subr.mxu0 0.0
      %1833 = vmatpush1.msra.mxu0 0.0
      %1834 = vmatprep.subr.mxu0 0.0
      %1835 = vmatpush1.msra.mxu0 0.0
      %1836 = vmatprep.mubr.f32.mxu0 0.0
      %1837 = vmatmul.mubr.f32.gmra.mrb[0].mxu0 %v1675
      %v1838 = vpop.f32.mrb[0].mxu0
      %v1839 = vadd.f32 0.0, %v1838
      %v1840 = vpop.f32.mrb[0].mxu0
      %1841 = vmatprep.mubr.f32.mxu0 0.0
      %1842 = vmatmul.mubr.f32.gmra.mrb[0].mxu0 %v1678
      %v1843 = vpop.f32.mrb[0].mxu0
      %v1844 = vadd.f32 0.0, %v1843
      %v1845 = vpop.f32.mrb[0].mxu0
      %1846 = vmatprep.mubr.f32.mxu0 0.0
      %1847 = vmatmul.mubr.f32.gmra.mrb[0].mxu0 %v1681
      %v1848 = vpop.f32.mrb[0].mxu0
      %v1849 = vadd.f32 0.0, %v1848
      %v1850 = vpop.f32.mrb[0].mxu0
      %1851 = vdwg.mxu0
      %v1852 = vadd.f32 %v1641, %v1756
      %v1853 = vadd.f32 %v1642, %v1758
      %v1854 = vadd.f32 %v1643, %v1839
      %v1855 = vadd.f32 %v1644, %v1762
      %v1856 = vadd.f32 %v1645, %v1764
      %v1857 = vadd.f32 %v1646, %v1844
      %v1858 = vadd.f32 %v1647, %v1768
      %v1859 = vadd.f32 %v1648, %v1770
      %v1860 = vadd.f32 %v1649, %v1849
      %s1861 = scalar_lea.vmem %s1, 192
      %v1862 = vld [vmem:[%s1861] sm:$0xff]
      %v1863 = vld [vmem:[%s1861 + $0x8] sm:$0xff]
      %v1864 = vld [vmem:[%s1861 + $0x10] sm:$0xff]
      %1865 = vrot.lane.b32.xlu0 %v198, 90
      %v1866 = vpop.permute.xlu0 %1865
      %1867 = vrot.lane.b32.xlu0 %v199, 90
      %v1868 = vpop.permute.xlu0 %1867
      %1869 = vrot.lane.b32.xlu0 %v200, 90
      %v1870 = vpop.permute.xlu0 %1869
      %1871 = vrot.lane.b32.xlu0 %v201, 90
      %v1872 = vpop.permute.xlu0 %1871
      %1873 = vrot.lane.b32.xlu0 %v202, 90
      %v1874 = vpop.permute.xlu0 %1873
      %1875 = vrot.lane.b32.xlu0 %v203, 90
      %v1876 = vpop.permute.xlu0 %1875
      %vm1877 = vcmask 736256
      %v1878 = vsel %vm1877, %v1866, %v1868
      %v1879 = vsel %vm1877, %v1868, %v1870
      %v1880 = vsel %vm1877, %v1872, %v1874
      %v1881 = vsel %vm1877, %v1874, %v1876
      %v1886 = vsel %vm237, %v1862, 0
      %v1889 = vsel %vm237, %v1863, 0
      %v1892 = vsel %vm237, %v1864, 0
      %v1894 = vsel %vm247, %v1880, 0
      %v1896 = vsel %vm247, %v1881, 0
      %v1898 = vsel %vm247, %v1876, 0
      %1900 = vmatprep.subr.mxu0 %v1879
      %1901 = vmatpush1.msra.mxu0 %v1878
      %1902 = vmatprep.subr.mxu0 %v1896
      %1903 = vmatpush1.msra.mxu0 %v1894
      %1904 = vmatprep.subr.mxu0 0.0
      %1905 = vmatpush1.msra.mxu0 0.0
      %1906 = vmatprep.subr.mxu0 0.0
      %1907 = vmatpush1.msra.mxu0 0.0
      %1908 = vmatprep.subr.mxu0 0.0
      %1909 = vmatpush1.msra.mxu0 0.0
      %1910 = vmatprep.subr.mxu0 0.0
      %1911 = vmatpush1.msra.mxu0 0.0
      %1912 = vmatprep.subr.mxu0 0.0
      %1913 = vmatpush1.msra.mxu0 0.0
      %1914 = vmatprep.subr.mxu0 0.0
      %1915 = vmatpush1.msra.mxu0 0.0
      %1916 = vmatprep.subr.mxu0 0.0
      %1917 = vmatpush1.msra.mxu0 0.0
      %1918 = vmatprep.subr.mxu0 0.0
      %1919 = vmatpush1.msra.mxu0 0.0
      %1920 = vmatprep.subr.mxu0 0.0
      %1921 = vmatpush1.msra.mxu0 0.0
      %1922 = vmatprep.subr.mxu0 0.0
      %1923 = vmatpush1.msra.mxu0 0.0
      %1924 = vmatprep.subr.mxu0 0.0
      %1925 = vmatpush1.msra.mxu0 0.0
      %1926 = vmatprep.subr.mxu0 0.0
      %1927 = vmatpush1.msra.mxu0 0.0
      %1928 = vmatprep.subr.mxu0 0.0
      %1929 = vmatpush1.msra.mxu0 0.0
      %1930 = vmatprep.subr.mxu0 0.0
      %1931 = vmatpush1.msra.mxu0 0.0
      %1932 = vmatprep.subr.mxu0 0.0
      %1933 = vmatpush1.msra.mxu0 0.0
      %1934 = vmatprep.subr.mxu0 0.0
      %1935 = vmatpush1.msra.mxu0 0.0
      %1936 = vmatprep.subr.mxu0 0.0
      %1937 = vmatpush1.msra.mxu0 0.0
      %1938 = vmatprep.subr.mxu0 0.0
      %1939 = vmatpush1.msra.mxu0 0.0
      %1940 = vmatprep.subr.mxu0 0.0
      %1941 = vmatpush1.msra.mxu0 0.0
      %1942 = vmatprep.subr.mxu0 0.0
      %1943 = vmatpush1.msra.mxu0 0.0
      %1944 = vmatprep.subr.mxu0 0.0
      %1945 = vmatpush1.msra.mxu0 0.0
      %1946 = vmatprep.subr.mxu0 0.0
      %1947 = vmatpush1.msra.mxu0 0.0
      %1948 = vmatprep.subr.mxu0 0.0
      %1949 = vmatpush1.msra.mxu0 0.0
      %1950 = vmatprep.subr.mxu0 0.0
      %1951 = vmatpush1.msra.mxu0 0.0
      %1952 = vmatprep.subr.mxu0 0.0
      %1953 = vmatpush1.msra.mxu0 0.0
      %1954 = vmatprep.subr.mxu0 0.0
      %1955 = vmatpush1.msra.mxu0 0.0
      %1956 = vmatprep.subr.mxu0 0.0
      %1957 = vmatpush1.msra.mxu0 0.0
      %1958 = vmatprep.subr.mxu0 0.0
      %1959 = vmatpush1.msra.mxu0 0.0
      %1960 = vmatprep.subr.mxu0 0.0
      %1961 = vmatpush1.msra.mxu0 0.0
      %1962 = vmatprep.subr.mxu0 0.0
      %1963 = vmatpush1.msra.mxu0 0.0
      %1964 = vmatprep.mubr.f32.mxu0 0.0
      %1965 = vmatmul.mubr.f32.gmra.mrb[0].mxu0 %v1886
      %v1966 = vpop.f32.mrb[0].mxu0
      %v1967 = vadd.f32 0.0, %v1966
      %v1968 = vpop.f32.mrb[0].mxu0
      %v1969 = vadd.f32 0.0, %v1968
      %1970 = vmatprep.mubr.f32.mxu0 0.0
      %1971 = vmatmul.mubr.f32.gmra.mrb[0].mxu0 %v1889
      %v1972 = vpop.f32.mrb[0].mxu0
      %v1973 = vadd.f32 0.0, %v1972
      %v1974 = vpop.f32.mrb[0].mxu0
      %v1975 = vadd.f32 0.0, %v1974
      %1976 = vmatprep.mubr.f32.mxu0 0.0
      %1977 = vmatmul.mubr.f32.gmra.mrb[0].mxu0 %v1892
      %v1978 = vpop.f32.mrb[0].mxu0
      %v1979 = vadd.f32 0.0, %v1978
      %v1980 = vpop.f32.mrb[0].mxu0
      %v1981 = vadd.f32 0.0, %v1980
      %1982 = vdwg.mxu0
      %1983 = vmatprep.subr.mxu0 0.0
      %1984 = vmatpush1.msra.mxu0 %v1870
      %1985 = vmatprep.subr.mxu0 0.0
      %1986 = vmatpush1.msra.mxu0 %v1898
      %1987 = vmatprep.subr.mxu0 0.0
      %1988 = vmatpush1.msra.mxu0 0.0
      %1989 = vmatprep.subr.mxu0 0.0
      %1990 = vmatpush1.msra.mxu0 0.0
      %1991 = vmatprep.subr.mxu0 0.0
      %1992 = vmatpush1.msra.mxu0 0.0
      %1993 = vmatprep.subr.mxu0 0.0
      %1994 = vmatpush1.msra.mxu0 0.0
      %1995 = vmatprep.subr.mxu0 0.0
      %1996 = vmatpush1.msra.mxu0 0.0
      %1997 = vmatprep.subr.mxu0 0.0
      %1998 = vmatpush1.msra.mxu0 0.0
      %1999 = vmatprep.subr.mxu0 0.0
      %2000 = vmatpush1.msra.mxu0 0.0
      %2001 = vmatprep.subr.mxu0 0.0
      %2002 = vmatpush1.msra.mxu0 0.0
      %2003 = vmatprep.subr.mxu0 0.0
      %2004 = vmatpush1.msra.mxu0 0.0
      %2005 = vmatprep.subr.mxu0 0.0
      %2006 = vmatpush1.msra.mxu0 0.0
      %2007 = vmatprep.subr.mxu0 0.0
      %2008 = vmatpush1.msra.mxu0 0.0
      %2009 = vmatprep.subr.mxu0 0.0
      %2010 = vmatpush1.msra.mxu0 0.0
      %2011 = vmatprep.subr.mxu0 0.0
      %2012 = vmatpush1.msra.mxu0 0.0
      %2013 = vmatprep.subr.mxu0 0.0
      %2014 = vmatpush1.msra.mxu0 0.0
      %2015 = vmatprep.subr.mxu0 0.0
      %2016 = vmatpush1.msra.mxu0 0.0
      %2017 = vmatprep.subr.mxu0 0.0
      %2018 = vmatpush1.msra.mxu0 0.0
      %2019 = vmatprep.subr.mxu0 0.0
      %2020 = vmatpush1.msra.mxu0 0.0
      %2021 = vmatprep.subr.mxu0 0.0
      %2022 = vmatpush1.msra.mxu0 0.0
      %2023 = vmatprep.subr.mxu0 0.0
      %2024 = vmatpush1.msra.mxu0 0.0
      %2025 = vmatprep.subr.mxu0 0.0
      %2026 = vmatpush1.msra.mxu0 0.0
      %2027 = vmatprep.subr.mxu0 0.0
      %2028 = vmatpush1.msra.mxu0 0.0
      %2029 = vmatprep.subr.mxu0 0.0
      %2030 = vmatpush1.msra.mxu0 0.0
      %2031 = vmatprep.subr.mxu0 0.0
      %2032 = vmatpush1.msra.mxu0 0.0
      %2033 = vmatprep.subr.mxu0 0.0
      %2034 = vmatpush1.msra.mxu0 0.0
      %2035 = vmatprep.subr.mxu0 0.0
      %2036 = vmatpush1.msra.mxu0 0.0
      %2037 = vmatprep.subr.mxu0 0.0
      %2038 = vmatpush1.msra.mxu0 0.0
      %2039 = vmatprep.subr.mxu0 0.0
      %2040 = vmatpush1.msra.mxu0 0.0
      %2041 = vmatprep.subr.mxu0 0.0
      %2042 = vmatpush1.msra.mxu0 0.0
      %2043 = vmatprep.subr.mxu0 0.0
      %2044 = vmatpush1.msra.mxu0 0.0
      %2045 = vmatprep.subr.mxu0 0.0
      %2046 = vmatpush1.msra.mxu0 0.0
      %2047 = vmatprep.mubr.f32.mxu0 0.0
      %2048 = vmatmul.mubr.f32.gmra.mrb[0].mxu0 %v1886
      %v2049 = vpop.f32.mrb[0].mxu0
      %v2050 = vadd.f32 0.0, %v2049
      %v2051 = vpop.f32.mrb[0].mxu0
      %2052 = vmatprep.mubr.f32.mxu0 0.0
      %2053 = vmatmul.mubr.f32.gmra.mrb[0].mxu0 %v1889
      %v2054 = vpop.f32.mrb[0].mxu0
      %v2055 = vadd.f32 0.0, %v2054
      %v2056 = vpop.f32.mrb[0].mxu0
      %2057 = vmatprep.mubr.f32.mxu0 0.0
      %2058 = vmatmul.mubr.f32.gmra.mrb[0].mxu0 %v1892
      %v2059 = vpop.f32.mrb[0].mxu0
      %v2060 = vadd.f32 0.0, %v2059
      %v2061 = vpop.f32.mrb[0].mxu0
      %2062 = vdwg.mxu0
      %v2063 = vadd.f32 %v1852, %v1967
      %v2064 = vadd.f32 %v1853, %v1969
      %v2065 = vadd.f32 %v1854, %v2050
      %v2066 = vadd.f32 %v1855, %v1973
      %v2067 = vadd.f32 %v1856, %v1975
      %v2068 = vadd.f32 %v1857, %v2055
      %v2069 = vadd.f32 %v1858, %v1979
      %v2070 = vadd.f32 %v1859, %v1981
      %v2071 = vadd.f32 %v1860, %v2060
      %v2072 = vld [vmem:[%s3] sm:$0xff]
      %v2073 = vld [vmem:[%s3 + $0x8] sm:$0xff]
      %v2074 = vld [vmem:[%s3 + $0x10] sm:$0xff]
      %2076 = vset.pattern.permute.xlu0 0
      %2077 = vperm.xlu0 %2076, %v2072
      %v2078 = vpop.permute.xlu0 %2077
      %2081 = vset.pattern.permute.xlu0 0
      %2082 = vperm.xlu0 %2081, %v2073
      %v2083 = vpop.permute.xlu0 %2082
      %2086 = vset.pattern.permute.xlu0 0
      %2087 = vperm.xlu0 %2086, %v2074
      %v2088 = vpop.permute.xlu0 %2087
      %v2090 = vadd.f32 %v2063, %v2078
      %v2091 = vadd.f32 %v2064, %v2078
      %v2092 = vadd.f32 %v2065, %v2078
      %v2093 = vadd.f32 %v2066, %v2083
      %v2094 = vadd.f32 %v2067, %v2083
      %v2095 = vadd.f32 %v2068, %v2083
      %v2096 = vadd.f32 %v2069, %v2088
      %v2097 = vadd.f32 %v2070, %v2088
      %v2098 = vadd.f32 %v2071, %v2088
      %v2099 = vxor.u32 %v2090, 2147483648
      %v2100 = vxor.u32 %v2091, 2147483648
      %v2101 = vxor.u32 %v2092, 2147483648
      %v2102 = vmul.f32 %v2099, 1.442695
      %v2103 = vpow.pop %v2102
      %v2104 = vmul.f32 %v2100, 1.442695
      %v2105 = vpow.pop %v2104
      %v2106 = vmul.f32 %v2101, 1.442695
      %v2107 = vpow.pop %v2106
      %v2108 = vadd.f32 %v2103, 1.0
      %v2109 = vadd.f32 %v2105, 1.0
      %v2110 = vadd.f32 %v2107, 1.0
      %v2111 = vrcp.pop %v2108
      %v2112 = vmul.f32 1.0, %v2111
      %v2113 = vrcp.pop %v2109
      %v2114 = vmul.f32 1.0, %v2113
      %v2115 = vrcp.pop %v2110
      %v2116 = vmul.f32 1.0, %v2115
      %v2117 = vxor.u32 %v2093, 2147483648
      %v2118 = vxor.u32 %v2094, 2147483648
      %v2119 = vxor.u32 %v2095, 2147483648
      %v2120 = vmul.f32 %v2117, 1.442695
      %v2121 = vpow.pop %v2120
      %v2122 = vmul.f32 %v2118, 1.442695
      %v2123 = vpow.pop %v2122
      %v2124 = vmul.f32 %v2119, 1.442695
      %v2125 = vpow.pop %v2124
      %v2126 = vadd.f32 %v2121, 1.0
      %v2127 = vadd.f32 %v2123, 1.0
      %v2128 = vadd.f32 %v2125, 1.0
      %v2129 = vrcp.pop %v2126
      %v2130 = vmul.f32 1.0, %v2129
      %v2131 = vrcp.pop %v2127
      %v2132 = vmul.f32 1.0, %v2131
      %v2133 = vrcp.pop %v2128
      %v2134 = vmul.f32 1.0, %v2133
      %2135 = vst [vmem:[#allocation2] sm:$0xff] 0.0
      %2136 = vst [vmem:[#allocation2 + $0x8] sm:$0xff] 0.0
      %2137 = vst [vmem:[#allocation2 + $0x10] sm:$0xff] 0.0
      %v2138 = vmul.f32 %v2112, %v1034
      %v2139 = vmul.f32 %v2114, %v1035
      %v2140 = vmul.f32 %v2116, %v1026
      %2144 = vrot.lane.b32.xlu0 %v2138, 19
      %v2145 = vpop.permute.xlu0 %2144
      %2146 = vrot.lane.b32.xlu0 %v2139, 19
      %v2147 = vpop.permute.xlu0 %2146
      %2148 = vrot.lane.b32.xlu0 %v2140, 19
      %v2149 = vpop.permute.xlu0 %2148
      %vm2150 = vcmask 154624
      %v2151 = vsel %vm2150, %v2145, %v2147
      %v2152 = vsel %vm2150, %v2147, %v2149
      %vm2156 = vcmask 1047704
      %2157 = vst.msk [vmem:[#allocation2] sm:$0xff] %vm2156, %v2145
      %2158 = vst [vmem:[#allocation2 + $0x8] sm:$0xff] %v2151
      %vm2159 = vcmask 416768
      %2160 = vst.msk [vmem:[#allocation2 + $0x10] sm:$0xff] %vm2159, %v2152
      %v2161 = vld [vmem:[#allocation2] sm:$0xff]
      %v2162 = vld [vmem:[#allocation2 + $0x8] sm:$0xff]
      %v2163 = vld [vmem:[#allocation2 + $0x10] sm:$0xff]
      %v2164 = vld [vmem:[%s2] sm:$0xff]
      %s2165 = scalar_lea.vmem %s2, 8
      %v2166 = vld [vmem:[%s2165] sm:$0xff]
      %2170 = vrot.lane.b32.xlu0 %v2161, 127
      %v2171 = vpop.permute.xlu0 %2170
      %2172 = vrot.lane.b32.xlu0 %v2162, 127
      %v2173 = vpop.permute.xlu0 %2172
      %2174 = vrot.lane.b32.xlu0 %v2163, 127
      %v2175 = vpop.permute.xlu0 %2174
      %v2176 = vsel %vm229, %v2171, %v2173
      %v2177 = vsel %vm229, %v2173, %v2175
      %vm2181 = vcmask 64512
      %v2183 = vsel %vm2181, %v2166, 0
      %2185 = vmatprep.subr.mxu0 %v2177
      %2186 = vmatpush1.msra.mxu0 %v2176
      %2187 = vmatprep.subr.mxu0 0.0
      %2188 = vmatpush1.msra.mxu0 0.0
      %2189 = vmatprep.subr.mxu0 0.0
      %2190 = vmatpush1.msra.mxu0 0.0
      %2191 = vmatprep.subr.mxu0 0.0
      %2192 = vmatpush1.msra.mxu0 0.0
      %2193 = vmatprep.subr.mxu0 0.0
      %2194 = vmatpush1.msra.mxu0 0.0
      %2195 = vmatprep.subr.mxu0 0.0
      %2196 = vmatpush1.msra.mxu0 0.0
      %2197 = vmatprep.subr.mxu0 0.0
      %2198 = vmatpush1.msra.mxu0 0.0
      %2199 = vmatprep.subr.mxu0 0.0
      %2200 = vmatpush1.msra.mxu0 0.0
      %2201 = vmatprep.subr.mxu0 0.0
      %2202 = vmatpush1.msra.mxu0 0.0
      %2203 = vmatprep.subr.mxu0 0.0
      %2204 = vmatpush1.msra.mxu0 0.0
      %2205 = vmatprep.subr.mxu0 0.0
      %2206 = vmatpush1.msra.mxu0 0.0
      %2207 = vmatprep.subr.mxu0 0.0
      %2208 = vmatpush1.msra.mxu0 0.0
      %2209 = vmatprep.subr.mxu0 0.0
      %2210 = vmatpush1.msra.mxu0 0.0
      %2211 = vmatprep.subr.mxu0 0.0
      %2212 = vmatpush1.msra.mxu0 0.0
      %2213 = vmatprep.subr.mxu0 0.0
      %2214 = vmatpush1.msra.mxu0 0.0
      %2215 = vmatprep.subr.mxu0 0.0
      %2216 = vmatpush1.msra.mxu0 0.0
      %2217 = vmatprep.subr.mxu0 0.0
      %2218 = vmatpush1.msra.mxu0 0.0
      %2219 = vmatprep.subr.mxu0 0.0
      %2220 = vmatpush1.msra.mxu0 0.0
      %2221 = vmatprep.subr.mxu0 0.0
      %2222 = vmatpush1.msra.mxu0 0.0
      %2223 = vmatprep.subr.mxu0 0.0
      %2224 = vmatpush1.msra.mxu0 0.0
      %2225 = vmatprep.subr.mxu0 0.0
      %2226 = vmatpush1.msra.mxu0 0.0
      %2227 = vmatprep.subr.mxu0 0.0
      %2228 = vmatpush1.msra.mxu0 0.0
      %2229 = vmatprep.subr.mxu0 0.0
      %2230 = vmatpush1.msra.mxu0 0.0
      %2231 = vmatprep.subr.mxu0 0.0
      %2232 = vmatpush1.msra.mxu0 0.0
      %2233 = vmatprep.subr.mxu0 0.0
      %2234 = vmatpush1.msra.mxu0 0.0
      %2235 = vmatprep.subr.mxu0 0.0
      %2236 = vmatpush1.msra.mxu0 0.0
      %2237 = vmatprep.subr.mxu0 0.0
      %2238 = vmatpush1.msra.mxu0 0.0
      %2239 = vmatprep.subr.mxu0 0.0
      %2240 = vmatpush1.msra.mxu0 0.0
      %2241 = vmatprep.subr.mxu0 0.0
      %2242 = vmatpush1.msra.mxu0 0.0
      %2243 = vmatprep.subr.mxu0 0.0
      %2244 = vmatpush1.msra.mxu0 0.0
      %2245 = vmatprep.subr.mxu0 0.0
      %2246 = vmatpush1.msra.mxu0 0.0
      %2247 = vmatprep.subr.mxu0 0.0
      %2248 = vmatpush1.msra.mxu0 0.0
      %2249 = vmatprep.mubr.f32.mxu0 0.0
      %2250 = vmatmul.mubr.f32.gmra.mrb[0].mxu0 %v2183
      %v2251 = vpop.f32.mrb[0].mxu0
      %v2252 = vadd.f32 0.0, %v2251
      %v2253 = vpop.f32.mrb[0].mxu0
      %v2254 = vadd.f32 0.0, %v2253
      %2255 = vdwg.mxu0
      %2256 = vmatprep.subr.mxu0 0.0
      %2257 = vmatpush1.msra.mxu0 %v2175
      %2258 = vmatprep.subr.mxu0 0.0
      %2259 = vmatpush1.msra.mxu0 0.0
      %2260 = vmatprep.subr.mxu0 0.0
      %2261 = vmatpush1.msra.mxu0 0.0
      %2262 = vmatprep.subr.mxu0 0.0
      %2263 = vmatpush1.msra.mxu0 0.0
      %2264 = vmatprep.subr.mxu0 0.0
      %2265 = vmatpush1.msra.mxu0 0.0
      %2266 = vmatprep.subr.mxu0 0.0
      %2267 = vmatpush1.msra.mxu0 0.0
      %2268 = vmatprep.subr.mxu0 0.0
      %2269 = vmatpush1.msra.mxu0 0.0
      %2270 = vmatprep.subr.mxu0 0.0
      %2271 = vmatpush1.msra.mxu0 0.0
      %2272 = vmatprep.subr.mxu0 0.0
      %2273 = vmatpush1.msra.mxu0 0.0
      %2274 = vmatprep.subr.mxu0 0.0
      %2275 = vmatpush1.msra.mxu0 0.0
      %2276 = vmatprep.subr.mxu0 0.0
      %2277 = vmatpush1.msra.mxu0 0.0
      %2278 = vmatprep.subr.mxu0 0.0
      %2279 = vmatpush1.msra.mxu0 0.0
      %2280 = vmatprep.subr.mxu0 0.0
      %2281 = vmatpush1.msra.mxu0 0.0
      %2282 = vmatprep.subr.mxu0 0.0
      %2283 = vmatpush1.msra.mxu0 0.0
      %2284 = vmatprep.subr.mxu0 0.0
      %2285 = vmatpush1.msra.mxu0 0.0
      %2286 = vmatprep.subr.mxu0 0.0
      %2287 = vmatpush1.msra.mxu0 0.0
      %2288 = vmatprep.subr.mxu0 0.0
      %2289 = vmatpush1.msra.mxu0 0.0
      %2290 = vmatprep.subr.mxu0 0.0
      %2291 = vmatpush1.msra.mxu0 0.0
      %2292 = vmatprep.subr.mxu0 0.0
      %2293 = vmatpush1.msra.mxu0 0.0
      %2294 = vmatprep.subr.mxu0 0.0
      %2295 = vmatpush1.msra.mxu0 0.0
      %2296 = vmatprep.subr.mxu0 0.0
      %2297 = vmatpush1.msra.mxu0 0.0
      %2298 = vmatprep.subr.mxu0 0.0
      %2299 = vmatpush1.msra.mxu0 0.0
      %2300 = vmatprep.subr.mxu0 0.0
      %2301 = vmatpush1.msra.mxu0 0.0
      %2302 = vmatprep.subr.mxu0 0.0
      %2303 = vmatpush1.msra.mxu0 0.0
      %2304 = vmatprep.subr.mxu0 0.0
      %2305 = vmatpush1.msra.mxu0 0.0
      %2306 = vmatprep.subr.mxu0 0.0
      %2307 = vmatpush1.msra.mxu0 0.0
      %2308 = vmatprep.subr.mxu0 0.0
      %2309 = vmatpush1.msra.mxu0 0.0
      %2310 = vmatprep.subr.mxu0 0.0
      %2311 = vmatpush1.msra.mxu0 0.0
      %2312 = vmatprep.subr.mxu0 0.0
      %2313 = vmatpush1.msra.mxu0 0.0
      %2314 = vmatprep.subr.mxu0 0.0
      %2315 = vmatpush1.msra.mxu0 0.0
      %2316 = vmatprep.subr.mxu0 0.0
      %2317 = vmatpush1.msra.mxu0 0.0
      %2318 = vmatprep.subr.mxu0 0.0
      %2319 = vmatpush1.msra.mxu0 0.0
      %2320 = vmatprep.mubr.f32.mxu0 0.0
      %2321 = vmatmul.mubr.f32.gmra.mrb[0].mxu0 %v2183
      %v2322 = vpop.f32.mrb[0].mxu0
      %v2323 = vadd.f32 0.0, %v2322
      %v2324 = vpop.f32.mrb[0].mxu0
      %2325 = vdwg.mxu0
      %v2327 = vsel %vm2181, %v2164, 0
      %2329 = vmatprep.subr.mxu0 %v2162
      %2330 = vmatpush1.msra.mxu0 %v2161
      %2331 = vmatprep.subr.mxu0 0.0
      %2332 = vmatpush1.msra.mxu0 0.0
      %2333 = vmatprep.subr.mxu0 0.0
      %2334 = vmatpush1.msra.mxu0 0.0
      %2335 = vmatprep.subr.mxu0 0.0
      %2336 = vmatpush1.msra.mxu0 0.0
      %2337 = vmatprep.subr.mxu0 0.0
      %2338 = vmatpush1.msra.mxu0 0.0
      %2339 = vmatprep.subr.mxu0 0.0
      %2340 = vmatpush1.msra.mxu0 0.0
      %2341 = vmatprep.subr.mxu0 0.0
      %2342 = vmatpush1.msra.mxu0 0.0
      %2343 = vmatprep.subr.mxu0 0.0
      %2344 = vmatpush1.msra.mxu0 0.0
      %2345 = vmatprep.subr.mxu0 0.0
      %2346 = vmatpush1.msra.mxu0 0.0
      %2347 = vmatprep.subr.mxu0 0.0
      %2348 = vmatpush1.msra.mxu0 0.0
      %2349 = vmatprep.subr.mxu0 0.0
      %2350 = vmatpush1.msra.mxu0 0.0
      %2351 = vmatprep.subr.mxu0 0.0
      %2352 = vmatpush1.msra.mxu0 0.0
      %2353 = vmatprep.subr.mxu0 0.0
      %2354 = vmatpush1.msra.mxu0 0.0
      %2355 = vmatprep.subr.mxu0 0.0
      %2356 = vmatpush1.msra.mxu0 0.0
      %2357 = vmatprep.subr.mxu0 0.0
      %2358 = vmatpush1.msra.mxu0 0.0
      %2359 = vmatprep.subr.mxu0 0.0
      %2360 = vmatpush1.msra.mxu0 0.0
      %2361 = vmatprep.subr.mxu0 0.0
      %2362 = vmatpush1.msra.mxu0 0.0
      %2363 = vmatprep.subr.mxu0 0.0
      %2364 = vmatpush1.msra.mxu0 0.0
      %2365 = vmatprep.subr.mxu0 0.0
      %2366 = vmatpush1.msra.mxu0 0.0
      %2367 = vmatprep.subr.mxu0 0.0
      %2368 = vmatpush1.msra.mxu0 0.0
      %2369 = vmatprep.subr.mxu0 0.0
      %2370 = vmatpush1.msra.mxu0 0.0
      %2371 = vmatprep.subr.mxu0 0.0
      %2372 = vmatpush1.msra.mxu0 0.0
      %2373 = vmatprep.subr.mxu0 0.0
      %2374 = vmatpush1.msra.mxu0 0.0
      %2375 = vmatprep.subr.mxu0 0.0
      %2376 = vmatpush1.msra.mxu0 0.0
      %2377 = vmatprep.subr.mxu0 0.0
      %2378 = vmatpush1.msra.mxu0 0.0
      %2379 = vmatprep.subr.mxu0 0.0
      %2380 = vmatpush1.msra.mxu0 0.0
      %2381 = vmatprep.subr.mxu0 0.0
      %2382 = vmatpush1.msra.mxu0 0.0
      %2383 = vmatprep.subr.mxu0 0.0
      %2384 = vmatpush1.msra.mxu0 0.0
      %2385 = vmatprep.subr.mxu0 0.0
      %2386 = vmatpush1.msra.mxu0 0.0
      %2387 = vmatprep.subr.mxu0 0.0
      %2388 = vmatpush1.msra.mxu0 0.0
      %2389 = vmatprep.subr.mxu0 0.0
      %2390 = vmatpush1.msra.mxu0 0.0
      %2391 = vmatprep.subr.mxu0 0.0
      %2392 = vmatpush1.msra.mxu0 0.0
      %2393 = vmatprep.mubr.f32.mxu0 0.0
      %2394 = vmatmul.mubr.f32.gmra.mrb[0].mxu0 %v2327
      %v2395 = vpop.f32.mrb[0].mxu0
      %v2396 = vadd.f32 %v2252, %v2395
      %v2397 = vpop.f32.mrb[0].mxu0
      %v2398 = vadd.f32 %v2254, %v2397
      %2399 = vdwg.mxu0
      %2400 = vmatprep.subr.mxu0 0.0
      %2401 = vmatpush1.msra.mxu0 %v2163
      %2402 = vmatprep.subr.mxu0 0.0
      %2403 = vmatpush1.msra.mxu0 0.0
      %2404 = vmatprep.subr.mxu0 0.0
      %2405 = vmatpush1.msra.mxu0 0.0
      %2406 = vmatprep.subr.mxu0 0.0
      %2407 = vmatpush1.msra.mxu0 0.0
      %2408 = vmatprep.subr.mxu0 0.0
      %2409 = vmatpush1.msra.mxu0 0.0
      %2410 = vmatprep.subr.mxu0 0.0
      %2411 = vmatpush1.msra.mxu0 0.0
      %2412 = vmatprep.subr.mxu0 0.0
      %2413 = vmatpush1.msra.mxu0 0.0
      %2414 = vmatprep.subr.mxu0 0.0
      %2415 = vmatpush1.msra.mxu0 0.0
      %2416 = vmatprep.subr.mxu0 0.0
      %2417 = vmatpush1.msra.mxu0 0.0
      %2418 = vmatprep.subr.mxu0 0.0
      %2419 = vmatpush1.msra.mxu0 0.0
      %2420 = vmatprep.subr.mxu0 0.0
      %2421 = vmatpush1.msra.mxu0 0.0
      %2422 = vmatprep.subr.mxu0 0.0
      %2423 = vmatpush1.msra.mxu0 0.0
      %2424 = vmatprep.subr.mxu0 0.0
      %2425 = vmatpush1.msra.mxu0 0.0
      %2426 = vmatprep.subr.mxu0 0.0
      %2427 = vmatpush1.msra.mxu0 0.0
      %2428 = vmatprep.subr.mxu0 0.0
      %2429 = vmatpush1.msra.mxu0 0.0
      %2430 = vmatprep.subr.mxu0 0.0
      %2431 = vmatpush1.msra.mxu0 0.0
      %2432 = vmatprep.subr.mxu0 0.0
      %2433 = vmatpush1.msra.mxu0 0.0
      %2434 = vmatprep.subr.mxu0 0.0
      %2435 = vmatpush1.msra.mxu0 0.0
      %2436 = vmatprep.subr.mxu0 0.0
      %2437 = vmatpush1.msra.mxu0 0.0
      %2438 = vmatprep.subr.mxu0 0.0
      %2439 = vmatpush1.msra.mxu0 0.0
      %2440 = vmatprep.subr.mxu0 0.0
      %2441 = vmatpush1.msra.mxu0 0.0
      %2442 = vmatprep.subr.mxu0 0.0
      %2443 = vmatpush1.msra.mxu0 0.0
      %2444 = vmatprep.subr.mxu0 0.0
      %2445 = vmatpush1.msra.mxu0 0.0
      %2446 = vmatprep.subr.mxu0 0.0
      %2447 = vmatpush1.msra.mxu0 0.0
      %2448 = vmatprep.subr.mxu0 0.0
      %2449 = vmatpush1.msra.mxu0 0.0
      %2450 = vmatprep.subr.mxu0 0.0
      %2451 = vmatpush1.msra.mxu0 0.0
      %2452 = vmatprep.subr.mxu0 0.0
      %2453 = vmatpush1.msra.mxu0 0.0
      %2454 = vmatprep.subr.mxu0 0.0
      %2455 = vmatpush1.msra.mxu0 0.0
      %2456 = vmatprep.subr.mxu0 0.0
      %2457 = vmatpush1.msra.mxu0 0.0
      %2458 = vmatprep.subr.mxu0 0.0
      %2459 = vmatpush1.msra.mxu0 0.0
      %2460 = vmatprep.subr.mxu0 0.0
      %2461 = vmatpush1.msra.mxu0 0.0
      %2462 = vmatprep.subr.mxu0 0.0
      %2463 = vmatpush1.msra.mxu0 0.0
      %2464 = vmatprep.mubr.f32.mxu0 0.0
      %2465 = vmatmul.mubr.f32.gmra.mrb[0].mxu0 %v2327
      %v2466 = vpop.f32.mrb[0].mxu0
      %v2467 = vadd.f32 %v2323, %v2466
      %v2468 = vpop.f32.mrb[0].mxu0
      %2469 = vdwg.mxu0
      %s2470 = scalar_lea.vmem %s2, 16
      %v2471 = vld [vmem:[%s2470] sm:$0xff]
      %2472 = vrot.lane.b32.xlu0 %v2161, 126
      %v2473 = vpop.permute.xlu0 %2472
      %2474 = vrot.lane.b32.xlu0 %v2162, 126
      %v2475 = vpop.permute.xlu0 %2474
      %2476 = vrot.lane.b32.xlu0 %v2163, 126
      %v2477 = vpop.permute.xlu0 %2476
      %v2478 = vsel %vm611, %v2473, %v2475
      %v2479 = vsel %vm611, %v2475, %v2477
      %v2484 = vsel %vm2181, %v2471, 0
      %2486 = vmatprep.subr.mxu0 %v2479
      %2487 = vmatpush1.msra.mxu0 %v2478
      %2488 = vmatprep.subr.mxu0 0.0
      %2489 = vmatpush1.msra.mxu0 0.0
      %2490 = vmatprep.subr.mxu0 0.0
      %2491 = vmatpush1.msra.mxu0 0.0
      %2492 = vmatprep.subr.mxu0 0.0
      %2493 = vmatpush1.msra.mxu0 0.0
      %2494 = vmatprep.subr.mxu0 0.0
      %2495 = vmatpush1.msra.mxu0 0.0
      %2496 = vmatprep.subr.mxu0 0.0
      %2497 = vmatpush1.msra.mxu0 0.0
      %2498 = vmatprep.subr.mxu0 0.0
      %2499 = vmatpush1.msra.mxu0 0.0
      %2500 = vmatprep.subr.mxu0 0.0
      %2501 = vmatpush1.msra.mxu0 0.0
      %2502 = vmatprep.subr.mxu0 0.0
      %2503 = vmatpush1.msra.mxu0 0.0
      %2504 = vmatprep.subr.mxu0 0.0
      %2505 = vmatpush1.msra.mxu0 0.0
      %2506 = vmatprep.subr.mxu0 0.0
      %2507 = vmatpush1.msra.mxu0 0.0
      %2508 = vmatprep.subr.mxu0 0.0
      %2509 = vmatpush1.msra.mxu0 0.0
      %2510 = vmatprep.subr.mxu0 0.0
      %2511 = vmatpush1.msra.mxu0 0.0
      %2512 = vmatprep.subr.mxu0 0.0
      %2513 = vmatpush1.msra.mxu0 0.0
      %2514 = vmatprep.subr.mxu0 0.0
      %2515 = vmatpush1.msra.mxu0 0.0
      %2516 = vmatprep.subr.mxu0 0.0
      %2517 = vmatpush1.msra.mxu0 0.0
      %2518 = vmatprep.subr.mxu0 0.0
      %2519 = vmatpush1.msra.mxu0 0.0
      %2520 = vmatprep.subr.mxu0 0.0
      %2521 = vmatpush1.msra.mxu0 0.0
      %2522 = vmatprep.subr.mxu0 0.0
      %2523 = vmatpush1.msra.mxu0 0.0
      %2524 = vmatprep.subr.mxu0 0.0
      %2525 = vmatpush1.msra.mxu0 0.0
      %2526 = vmatprep.subr.mxu0 0.0
      %2527 = vmatpush1.msra.mxu0 0.0
      %2528 = vmatprep.subr.mxu0 0.0
      %2529 = vmatpush1.msra.mxu0 0.0
      %2530 = vmatprep.subr.mxu0 0.0
      %2531 = vmatpush1.msra.mxu0 0.0
      %2532 = vmatprep.subr.mxu0 0.0
      %2533 = vmatpush1.msra.mxu0 0.0
      %2534 = vmatprep.subr.mxu0 0.0
      %2535 = vmatpush1.msra.mxu0 0.0
      %2536 = vmatprep.subr.mxu0 0.0
      %2537 = vmatpush1.msra.mxu0 0.0
      %2538 = vmatprep.subr.mxu0 0.0
      %2539 = vmatpush1.msra.mxu0 0.0
      %2540 = vmatprep.subr.mxu0 0.0
      %2541 = vmatpush1.msra.mxu0 0.0
      %2542 = vmatprep.subr.mxu0 0.0
      %2543 = vmatpush1.msra.mxu0 0.0
      %2544 = vmatprep.subr.mxu0 0.0
      %2545 = vmatpush1.msra.mxu0 0.0
      %2546 = vmatprep.subr.mxu0 0.0
      %2547 = vmatpush1.msra.mxu0 0.0
      %2548 = vmatprep.subr.mxu0 0.0
      %2549 = vmatpush1.msra.mxu0 0.0
      %2550 = vmatprep.mubr.f32.mxu0 0.0
      %2551 = vmatmul.mubr.f32.gmra.mrb[0].mxu0 %v2484
      %v2552 = vpop.f32.mrb[0].mxu0
      %v2553 = vadd.f32 0.0, %v2552
      %v2554 = vpop.f32.mrb[0].mxu0
      %v2555 = vadd.f32 0.0, %v2554
      %2556 = vdwg.mxu0
      %2557 = vmatprep.subr.mxu0 0.0
      %2558 = vmatpush1.msra.mxu0 %v2477
      %2559 = vmatprep.subr.mxu0 0.0
      %2560 = vmatpush1.msra.mxu0 0.0
      %2561 = vmatprep.subr.mxu0 0.0
      %2562 = vmatpush1.msra.mxu0 0.0
      %2563 = vmatprep.subr.mxu0 0.0
      %2564 = vmatpush1.msra.mxu0 0.0
      %2565 = vmatprep.subr.mxu0 0.0
      %2566 = vmatpush1.msra.mxu0 0.0
      %2567 = vmatprep.subr.mxu0 0.0
      %2568 = vmatpush1.msra.mxu0 0.0
      %2569 = vmatprep.subr.mxu0 0.0
      %2570 = vmatpush1.msra.mxu0 0.0
      %2571 = vmatprep.subr.mxu0 0.0
      %2572 = vmatpush1.msra.mxu0 0.0
      %2573 = vmatprep.subr.mxu0 0.0
      %2574 = vmatpush1.msra.mxu0 0.0
      %2575 = vmatprep.subr.mxu0 0.0
      %2576 = vmatpush1.msra.mxu0 0.0
      %2577 = vmatprep.subr.mxu0 0.0
      %2578 = vmatpush1.msra.mxu0 0.0
      %2579 = vmatprep.subr.mxu0 0.0
      %2580 = vmatpush1.msra.mxu0 0.0
      %2581 = vmatprep.subr.mxu0 0.0
      %2582 = vmatpush1.msra.mxu0 0.0
      %2583 = vmatprep.subr.mxu0 0.0
      %2584 = vmatpush1.msra.mxu0 0.0
      %2585 = vmatprep.subr.mxu0 0.0
      %2586 = vmatpush1.msra.mxu0 0.0
      %2587 = vmatprep.subr.mxu0 0.0
      %2588 = vmatpush1.msra.mxu0 0.0
      %2589 = vmatprep.subr.mxu0 0.0
      %2590 = vmatpush1.msra.mxu0 0.0
      %2591 = vmatprep.subr.mxu0 0.0
      %2592 = vmatpush1.msra.mxu0 0.0
      %2593 = vmatprep.subr.mxu0 0.0
      %2594 = vmatpush1.msra.mxu0 0.0
      %2595 = vmatprep.subr.mxu0 0.0
      %2596 = vmatpush1.msra.mxu0 0.0
      %2597 = vmatprep.subr.mxu0 0.0
      %2598 = vmatpush1.msra.mxu0 0.0
      %2599 = vmatprep.subr.mxu0 0.0
      %2600 = vmatpush1.msra.mxu0 0.0
      %2601 = vmatprep.subr.mxu0 0.0
      %2602 = vmatpush1.msra.mxu0 0.0
      %2603 = vmatprep.subr.mxu0 0.0
      %2604 = vmatpush1.msra.mxu0 0.0
      %2605 = vmatprep.subr.mxu0 0.0
      %2606 = vmatpush1.msra.mxu0 0.0
      %2607 = vmatprep.subr.mxu0 0.0
      %2608 = vmatpush1.msra.mxu0 0.0
      %2609 = vmatprep.subr.mxu0 0.0
      %2610 = vmatpush1.msra.mxu0 0.0
      %2611 = vmatprep.subr.mxu0 0.0
      %2612 = vmatpush1.msra.mxu0 0.0
      %2613 = vmatprep.subr.mxu0 0.0
      %2614 = vmatpush1.msra.mxu0 0.0
      %2615 = vmatprep.subr.mxu0 0.0
      %2616 = vmatpush1.msra.mxu0 0.0
      %2617 = vmatprep.subr.mxu0 0.0
      %2618 = vmatpush1.msra.mxu0 0.0
      %2619 = vmatprep.subr.mxu0 0.0
      %2620 = vmatpush1.msra.mxu0 0.0
      %2621 = vmatprep.mubr.f32.mxu0 0.0
      %2622 = vmatmul.mubr.f32.gmra.mrb[0].mxu0 %v2484
      %v2623 = vpop.f32.mrb[0].mxu0
      %v2624 = vadd.f32 0.0, %v2623
      %v2625 = vpop.f32.mrb[0].mxu0
      %2626 = vdwg.mxu0
      %v2627 = vadd.f32 %v2396, %v2553
      %v2628 = vadd.f32 %v2398, %v2555
      %v2629 = vadd.f32 %v2467, %v2624
      %s2630 = scalar_lea.vmem %s2, 24
      %v2631 = vld [vmem:[%s2630] sm:$0xff]
      %2632 = vrot.lane.b32.xlu0 %v2161, 110
      %v2633 = vpop.permute.xlu0 %2632
      %2634 = vrot.lane.b32.xlu0 %v2162, 110
      %v2635 = vpop.permute.xlu0 %2634
      %2636 = vrot.lane.b32.xlu0 %v2163, 110
      %v2637 = vpop.permute.xlu0 %2636
      %v2638 = vsel %vm822, %v2633, %v2635
      %v2639 = vsel %vm822, %v2635, %v2637
      %v2644 = vsel %vm2181, %v2631, 0
      %2646 = vmatprep.subr.mxu0 %v2639
      %2647 = vmatpush1.msra.mxu0 %v2638
      %2648 = vmatprep.subr.mxu0 0.0
      %2649 = vmatpush1.msra.mxu0 0.0
      %2650 = vmatprep.subr.mxu0 0.0
      %2651 = vmatpush1.msra.mxu0 0.0
      %2652 = vmatprep.subr.mxu0 0.0
      %2653 = vmatpush1.msra.mxu0 0.0
      %2654 = vmatprep.subr.mxu0 0.0
      %2655 = vmatpush1.msra.mxu0 0.0
      %2656 = vmatprep.subr.mxu0 0.0
      %2657 = vmatpush1.msra.mxu0 0.0
      %2658 = vmatprep.subr.mxu0 0.0
      %2659 = vmatpush1.msra.mxu0 0.0
      %2660 = vmatprep.subr.mxu0 0.0
      %2661 = vmatpush1.msra.mxu0 0.0
      %2662 = vmatprep.subr.mxu0 0.0
      %2663 = vmatpush1.msra.mxu0 0.0
      %2664 = vmatprep.subr.mxu0 0.0
      %2665 = vmatpush1.msra.mxu0 0.0
      %2666 = vmatprep.subr.mxu0 0.0
      %2667 = vmatpush1.msra.mxu0 0.0
      %2668 = vmatprep.subr.mxu0 0.0
      %2669 = vmatpush1.msra.mxu0 0.0
      %2670 = vmatprep.subr.mxu0 0.0
      %2671 = vmatpush1.msra.mxu0 0.0
      %2672 = vmatprep.subr.mxu0 0.0
      %2673 = vmatpush1.msra.mxu0 0.0
      %2674 = vmatprep.subr.mxu0 0.0
      %2675 = vmatpush1.msra.mxu0 0.0
      %2676 = vmatprep.subr.mxu0 0.0
      %2677 = vmatpush1.msra.mxu0 0.0
      %2678 = vmatprep.subr.mxu0 0.0
      %2679 = vmatpush1.msra.mxu0 0.0
      %2680 = vmatprep.subr.mxu0 0.0
      %2681 = vmatpush1.msra.mxu0 0.0
      %2682 = vmatprep.subr.mxu0 0.0
      %2683 = vmatpush1.msra.mxu0 0.0
      %2684 = vmatprep.subr.mxu0 0.0
      %2685 = vmatpush1.msra.mxu0 0.0
      %2686 = vmatprep.subr.mxu0 0.0
      %2687 = vmatpush1.msra.mxu0 0.0
      %2688 = vmatprep.subr.mxu0 0.0
      %2689 = vmatpush1.msra.mxu0 0.0
      %2690 = vmatprep.subr.mxu0 0.0
      %2691 = vmatpush1.msra.mxu0 0.0
      %2692 = vmatprep.subr.mxu0 0.0
      %2693 = vmatpush1.msra.mxu0 0.0
      %2694 = vmatprep.subr.mxu0 0.0
      %2695 = vmatpush1.msra.mxu0 0.0
      %2696 = vmatprep.subr.mxu0 0.0
      %2697 = vmatpush1.msra.mxu0 0.0
      %2698 = vmatprep.subr.mxu0 0.0
      %2699 = vmatpush1.msra.mxu0 0.0
      %2700 = vmatprep.subr.mxu0 0.0
      %2701 = vmatpush1.msra.mxu0 0.0
      %2702 = vmatprep.subr.mxu0 0.0
      %2703 = vmatpush1.msra.mxu0 0.0
      %2704 = vmatprep.subr.mxu0 0.0
      %2705 = vmatpush1.msra.mxu0 0.0
      %2706 = vmatprep.subr.mxu0 0.0
      %2707 = vmatpush1.msra.mxu0 0.0
      %2708 = vmatprep.subr.mxu0 0.0
      %2709 = vmatpush1.msra.mxu0 0.0
      %2710 = vmatprep.mubr.f32.mxu0 0.0
      %2711 = vmatmul.mubr.f32.gmra.mrb[0].mxu0 %v2644
      %v2712 = vpop.f32.mrb[0].mxu0
      %v2713 = vadd.f32 0.0, %v2712
      %v2714 = vpop.f32.mrb[0].mxu0
      %v2715 = vadd.f32 0.0, %v2714
      %2716 = vdwg.mxu0
      %2717 = vmatprep.subr.mxu0 0.0
      %2718 = vmatpush1.msra.mxu0 %v2637
      %2719 = vmatprep.subr.mxu0 0.0
      %2720 = vmatpush1.msra.mxu0 0.0
      %2721 = vmatprep.subr.mxu0 0.0
      %2722 = vmatpush1.msra.mxu0 0.0
      %2723 = vmatprep.subr.mxu0 0.0
      %2724 = vmatpush1.msra.mxu0 0.0
      %2725 = vmatprep.subr.mxu0 0.0
      %2726 = vmatpush1.msra.mxu0 0.0
      %2727 = vmatprep.subr.mxu0 0.0
      %2728 = vmatpush1.msra.mxu0 0.0
      %2729 = vmatprep.subr.mxu0 0.0
      %2730 = vmatpush1.msra.mxu0 0.0
      %2731 = vmatprep.subr.mxu0 0.0
      %2732 = vmatpush1.msra.mxu0 0.0
      %2733 = vmatprep.subr.mxu0 0.0
      %2734 = vmatpush1.msra.mxu0 0.0
      %2735 = vmatprep.subr.mxu0 0.0
      %2736 = vmatpush1.msra.mxu0 0.0
      %2737 = vmatprep.subr.mxu0 0.0
      %2738 = vmatpush1.msra.mxu0 0.0
      %2739 = vmatprep.subr.mxu0 0.0
      %2740 = vmatpush1.msra.mxu0 0.0
      %2741 = vmatprep.subr.mxu0 0.0
      %2742 = vmatpush1.msra.mxu0 0.0
      %2743 = vmatprep.subr.mxu0 0.0
      %2744 = vmatpush1.msra.mxu0 0.0
      %2745 = vmatprep.subr.mxu0 0.0
      %2746 = vmatpush1.msra.mxu0 0.0
      %2747 = vmatprep.subr.mxu0 0.0
      %2748 = vmatpush1.msra.mxu0 0.0
      %2749 = vmatprep.subr.mxu0 0.0
      %2750 = vmatpush1.msra.mxu0 0.0
      %2751 = vmatprep.subr.mxu0 0.0
      %2752 = vmatpush1.msra.mxu0 0.0
      %2753 = vmatprep.subr.mxu0 0.0
      %2754 = vmatpush1.msra.mxu0 0.0
      %2755 = vmatprep.subr.mxu0 0.0
      %2756 = vmatpush1.msra.mxu0 0.0
      %2757 = vmatprep.subr.mxu0 0.0
      %2758 = vmatpush1.msra.mxu0 0.0
      %2759 = vmatprep.subr.mxu0 0.0
      %2760 = vmatpush1.msra.mxu0 0.0
      %2761 = vmatprep.subr.mxu0 0.0
      %2762 = vmatpush1.msra.mxu0 0.0
      %2763 = vmatprep.subr.mxu0 0.0
      %2764 = vmatpush1.msra.mxu0 0.0
      %2765 = vmatprep.subr.mxu0 0.0
      %2766 = vmatpush1.msra.mxu0 0.0
      %2767 = vmatprep.subr.mxu0 0.0
      %2768 = vmatpush1.msra.mxu0 0.0
      %2769 = vmatprep.subr.mxu0 0.0
      %2770 = vmatpush1.msra.mxu0 0.0
      %2771 = vmatprep.subr.mxu0 0.0
      %2772 = vmatpush1.msra.mxu0 0.0
      %2773 = vmatprep.subr.mxu0 0.0
      %2774 = vmatpush1.msra.mxu0 0.0
      %2775 = vmatprep.subr.mxu0 0.0
      %2776 = vmatpush1.msra.mxu0 0.0
      %2777 = vmatprep.subr.mxu0 0.0
      %2778 = vmatpush1.msra.mxu0 0.0
      %2779 = vmatprep.subr.mxu0 0.0
      %2780 = vmatpush1.msra.mxu0 0.0
      %2781 = vmatprep.mubr.f32.mxu0 0.0
      %2782 = vmatmul.mubr.f32.gmra.mrb[0].mxu0 %v2644
      %v2783 = vpop.f32.mrb[0].mxu0
      %v2784 = vadd.f32 0.0, %v2783
      %v2785 = vpop.f32.mrb[0].mxu0
      %2786 = vdwg.mxu0
      %v2787 = vadd.f32 %v2627, %v2713
      %v2788 = vadd.f32 %v2628, %v2715
      %v2789 = vadd.f32 %v2629, %v2784
      %s2790 = scalar_lea.vmem %s2, 32
      %v2791 = vld [vmem:[%s2790] sm:$0xff]
      %2792 = vrot.lane.b32.xlu0 %v2161, 109
      %v2793 = vpop.permute.xlu0 %2792
      %2794 = vrot.lane.b32.xlu0 %v2162, 109
      %v2795 = vpop.permute.xlu0 %2794
      %2796 = vrot.lane.b32.xlu0 %v2163, 109
      %v2797 = vpop.permute.xlu0 %2796
      %v2798 = vsel %vm1033, %v2793, %v2795
      %v2799 = vsel %vm1033, %v2795, %v2797
      %v2804 = vsel %vm2181, %v2791, 0
      %2806 = vmatprep.subr.mxu0 %v2799
      %2807 = vmatpush1.msra.mxu0 %v2798
      %2808 = vmatprep.subr.mxu0 0.0
      %2809 = vmatpush1.msra.mxu0 0.0
      %2810 = vmatprep.subr.mxu0 0.0
      %2811 = vmatpush1.msra.mxu0 0.0
      %2812 = vmatprep.subr.mxu0 0.0
      %2813 = vmatpush1.msra.mxu0 0.0
      %2814 = vmatprep.subr.mxu0 0.0
      %2815 = vmatpush1.msra.mxu0 0.0
      %2816 = vmatprep.subr.mxu0 0.0
      %2817 = vmatpush1.msra.mxu0 0.0
      %2818 = vmatprep.subr.mxu0 0.0
      %2819 = vmatpush1.msra.mxu0 0.0
      %2820 = vmatprep.subr.mxu0 0.0
      %2821 = vmatpush1.msra.mxu0 0.0
      %2822 = vmatprep.subr.mxu0 0.0
      %2823 = vmatpush1.msra.mxu0 0.0
      %2824 = vmatprep.subr.mxu0 0.0
      %2825 = vmatpush1.msra.mxu0 0.0
      %2826 = vmatprep.subr.mxu0 0.0
      %2827 = vmatpush1.msra.mxu0 0.0
      %2828 = vmatprep.subr.mxu0 0.0
      %2829 = vmatpush1.msra.mxu0 0.0
      %2830 = vmatprep.subr.mxu0 0.0
      %2831 = vmatpush1.msra.mxu0 0.0
      %2832 = vmatprep.subr.mxu0 0.0
      %2833 = vmatpush1.msra.mxu0 0.0
      %2834 = vmatprep.subr.mxu0 0.0
      %2835 = vmatpush1.msra.mxu0 0.0
      %2836 = vmatprep.subr.mxu0 0.0
      %2837 = vmatpush1.msra.mxu0 0.0
      %2838 = vmatprep.subr.mxu0 0.0
      %2839 = vmatpush1.msra.mxu0 0.0
      %2840 = vmatprep.subr.mxu0 0.0
      %2841 = vmatpush1.msra.mxu0 0.0
      %2842 = vmatprep.subr.mxu0 0.0
      %2843 = vmatpush1.msra.mxu0 0.0
      %2844 = vmatprep.subr.mxu0 0.0
      %2845 = vmatpush1.msra.mxu0 0.0
      %2846 = vmatprep.subr.mxu0 0.0
      %2847 = vmatpush1.msra.mxu0 0.0
      %2848 = vmatprep.subr.mxu0 0.0
      %2849 = vmatpush1.msra.mxu0 0.0
      %2850 = vmatprep.subr.mxu0 0.0
      %2851 = vmatpush1.msra.mxu0 0.0
      %2852 = vmatprep.subr.mxu0 0.0
      %2853 = vmatpush1.msra.mxu0 0.0
      %2854 = vmatprep.subr.mxu0 0.0
      %2855 = vmatpush1.msra.mxu0 0.0
      %2856 = vmatprep.subr.mxu0 0.0
      %2857 = vmatpush1.msra.mxu0 0.0
      %2858 = vmatprep.subr.mxu0 0.0
      %2859 = vmatpush1.msra.mxu0 0.0
      %2860 = vmatprep.subr.mxu0 0.0
      %2861 = vmatpush1.msra.mxu0 0.0
      %2862 = vmatprep.subr.mxu0 0.0
      %2863 = vmatpush1.msra.mxu0 0.0
      %2864 = vmatprep.subr.mxu0 0.0
      %2865 = vmatpush1.msra.mxu0 0.0
      %2866 = vmatprep.subr.mxu0 0.0
      %2867 = vmatpush1.msra.mxu0 0.0
      %2868 = vmatprep.subr.mxu0 0.0
      %2869 = vmatpush1.msra.mxu0 0.0
      %2870 = vmatprep.mubr.f32.mxu0 0.0
      %2871 = vmatmul.mubr.f32.gmra.mrb[0].mxu0 %v2804
      %v2872 = vpop.f32.mrb[0].mxu0
      %v2873 = vadd.f32 0.0, %v2872
      %v2874 = vpop.f32.mrb[0].mxu0
      %v2875 = vadd.f32 0.0, %v2874
      %2876 = vdwg.mxu0
      %2877 = vmatprep.subr.mxu0 0.0
      %2878 = vmatpush1.msra.mxu0 %v2797
      %2879 = vmatprep.subr.mxu0 0.0
      %2880 = vmatpush1.msra.mxu0 0.0
      %2881 = vmatprep.subr.mxu0 0.0
      %2882 = vmatpush1.msra.mxu0 0.0
      %2883 = vmatprep.subr.mxu0 0.0
      %2884 = vmatpush1.msra.mxu0 0.0
      %2885 = vmatprep.subr.mxu0 0.0
      %2886 = vmatpush1.msra.mxu0 0.0
      %2887 = vmatprep.subr.mxu0 0.0
      %2888 = vmatpush1.msra.mxu0 0.0
      %2889 = vmatprep.subr.mxu0 0.0
      %2890 = vmatpush1.msra.mxu0 0.0
      %2891 = vmatprep.subr.mxu0 0.0
      %2892 = vmatpush1.msra.mxu0 0.0
      %2893 = vmatprep.subr.mxu0 0.0
      %2894 = vmatpush1.msra.mxu0 0.0
      %2895 = vmatprep.subr.mxu0 0.0
      %2896 = vmatpush1.msra.mxu0 0.0
      %2897 = vmatprep.subr.mxu0 0.0
      %2898 = vmatpush1.msra.mxu0 0.0
      %2899 = vmatprep.subr.mxu0 0.0
      %2900 = vmatpush1.msra.mxu0 0.0
      %2901 = vmatprep.subr.mxu0 0.0
      %2902 = vmatpush1.msra.mxu0 0.0
      %2903 = vmatprep.subr.mxu0 0.0
      %2904 = vmatpush1.msra.mxu0 0.0
      %2905 = vmatprep.subr.mxu0 0.0
      %2906 = vmatpush1.msra.mxu0 0.0
      %2907 = vmatprep.subr.mxu0 0.0
      %2908 = vmatpush1.msra.mxu0 0.0
      %2909 = vmatprep.subr.mxu0 0.0
      %2910 = vmatpush1.msra.mxu0 0.0
      %2911 = vmatprep.subr.mxu0 0.0
      %2912 = vmatpush1.msra.mxu0 0.0
      %2913 = vmatprep.subr.mxu0 0.0
      %2914 = vmatpush1.msra.mxu0 0.0
      %2915 = vmatprep.subr.mxu0 0.0
      %2916 = vmatpush1.msra.mxu0 0.0
      %2917 = vmatprep.subr.mxu0 0.0
      %2918 = vmatpush1.msra.mxu0 0.0
      %2919 = vmatprep.subr.mxu0 0.0
      %2920 = vmatpush1.msra.mxu0 0.0
      %2921 = vmatprep.subr.mxu0 0.0
      %2922 = vmatpush1.msra.mxu0 0.0
      %2923 = vmatprep.subr.mxu0 0.0
      %2924 = vmatpush1.msra.mxu0 0.0
      %2925 = vmatprep.subr.mxu0 0.0
      %2926 = vmatpush1.msra.mxu0 0.0
      %2927 = vmatprep.subr.mxu0 0.0
      %2928 = vmatpush1.msra.mxu0 0.0
      %2929 = vmatprep.subr.mxu0 0.0
      %2930 = vmatpush1.msra.mxu0 0.0
      %2931 = vmatprep.subr.mxu0 0.0
      %2932 = vmatpush1.msra.mxu0 0.0
      %2933 = vmatprep.subr.mxu0 0.0
      %2934 = vmatpush1.msra.mxu0 0.0
      %2935 = vmatprep.subr.mxu0 0.0
      %2936 = vmatpush1.msra.mxu0 0.0
      %2937 = vmatprep.subr.mxu0 0.0
      %2938 = vmatpush1.msra.mxu0 0.0
      %2939 = vmatprep.subr.mxu0 0.0
      %2940 = vmatpush1.msra.mxu0 0.0
      %2941 = vmatprep.mubr.f32.mxu0 0.0
      %2942 = vmatmul.mubr.f32.gmra.mrb[0].mxu0 %v2804
      %v2943 = vpop.f32.mrb[0].mxu0
      %v2944 = vadd.f32 0.0, %v2943
      %v2945 = vpop.f32.mrb[0].mxu0
      %2946 = vdwg.mxu0
      %v2947 = vadd.f32 %v2787, %v2873
      %v2948 = vadd.f32 %v2788, %v2875
      %v2949 = vadd.f32 %v2789, %v2944
      %s2950 = scalar_lea.vmem %s2, 40
      %v2951 = vld [vmem:[%s2950] sm:$0xff]
      %2952 = vrot.lane.b32.xlu0 %v2161, 108
      %v2953 = vpop.permute.xlu0 %2952
      %2954 = vrot.lane.b32.xlu0 %v2162, 108
      %v2955 = vpop.permute.xlu0 %2954
      %2956 = vrot.lane.b32.xlu0 %v2163, 108
      %v2957 = vpop.permute.xlu0 %2956
      %v2958 = vsel %vm1244, %v2953, %v2955
      %v2959 = vsel %vm1244, %v2955, %v2957
      %v2964 = vsel %vm2181, %v2951, 0
      %2966 = vmatprep.subr.mxu0 %v2959
      %2967 = vmatpush1.msra.mxu0 %v2958
      %2968 = vmatprep.subr.mxu0 0.0
      %2969 = vmatpush1.msra.mxu0 0.0
      %2970 = vmatprep.subr.mxu0 0.0
      %2971 = vmatpush1.msra.mxu0 0.0
      %2972 = vmatprep.subr.mxu0 0.0
      %2973 = vmatpush1.msra.mxu0 0.0
      %2974 = vmatprep.subr.mxu0 0.0
      %2975 = vmatpush1.msra.mxu0 0.0
      %2976 = vmatprep.subr.mxu0 0.0
      %2977 = vmatpush1.msra.mxu0 0.0
      %2978 = vmatprep.subr.mxu0 0.0
      %2979 = vmatpush1.msra.mxu0 0.0
      %2980 = vmatprep.subr.mxu0 0.0
      %2981 = vmatpush1.msra.mxu0 0.0
      %2982 = vmatprep.subr.mxu0 0.0
      %2983 = vmatpush1.msra.mxu0 0.0
      %2984 = vmatprep.subr.mxu0 0.0
      %2985 = vmatpush1.msra.mxu0 0.0
      %2986 = vmatprep.subr.mxu0 0.0
      %2987 = vmatpush1.msra.mxu0 0.0
      %2988 = vmatprep.subr.mxu0 0.0
      %2989 = vmatpush1.msra.mxu0 0.0
      %2990 = vmatprep.subr.mxu0 0.0
      %2991 = vmatpush1.msra.mxu0 0.0
      %2992 = vmatprep.subr.mxu0 0.0
      %2993 = vmatpush1.msra.mxu0 0.0
      %2994 = vmatprep.subr.mxu0 0.0
      %2995 = vmatpush1.msra.mxu0 0.0
      %2996 = vmatprep.subr.mxu0 0.0
      %2997 = vmatpush1.msra.mxu0 0.0
      %2998 = vmatprep.subr.mxu0 0.0
      %2999 = vmatpush1.msra.mxu0 0.0
      %3000 = vmatprep.subr.mxu0 0.0
      %3001 = vmatpush1.msra.mxu0 0.0
      %3002 = vmatprep.subr.mxu0 0.0
      %3003 = vmatpush1.msra.mxu0 0.0
      %3004 = vmatprep.subr.mxu0 0.0
      %3005 = vmatpush1.msra.mxu0 0.0
      %3006 = vmatprep.subr.mxu0 0.0
      %3007 = vmatpush1.msra.mxu0 0.0
      %3008 = vmatprep.subr.mxu0 0.0
      %3009 = vmatpush1.msra.mxu0 0.0
      %3010 = vmatprep.subr.mxu0 0.0
      %3011 = vmatpush1.msra.mxu0 0.0
      %3012 = vmatprep.subr.mxu0 0.0
      %3013 = vmatpush1.msra.mxu0 0.0
      %3014 = vmatprep.subr.mxu0 0.0
      %3015 = vmatpush1.msra.mxu0 0.0
      %3016 = vmatprep.subr.mxu0 0.0
      %3017 = vmatpush1.msra.mxu0 0.0
      %3018 = vmatprep.subr.mxu0 0.0
      %3019 = vmatpush1.msra.mxu0 0.0
      %3020 = vmatprep.subr.mxu0 0.0
      %3021 = vmatpush1.msra.mxu0 0.0
      %3022 = vmatprep.subr.mxu0 0.0
      %3023 = vmatpush1.msra.mxu0 0.0
      %3024 = vmatprep.subr.mxu0 0.0
      %3025 = vmatpush1.msra.mxu0 0.0
      %3026 = vmatprep.subr.mxu0 0.0
      %3027 = vmatpush1.msra.mxu0 0.0
      %3028 = vmatprep.subr.mxu0 0.0
      %3029 = vmatpush1.msra.mxu0 0.0
      %3030 = vmatprep.mubr.f32.mxu0 0.0
      %3031 = vmatmul.mubr.f32.gmra.mrb[0].mxu0 %v2964
      %v3032 = vpop.f32.mrb[0].mxu0
      %v3033 = vadd.f32 0.0, %v3032
      %v3034 = vpop.f32.mrb[0].mxu0
      %v3035 = vadd.f32 0.0, %v3034
      %3036 = vdwg.mxu0
      %3037 = vmatprep.subr.mxu0 0.0
      %3038 = vmatpush1.msra.mxu0 %v2957
      %3039 = vmatprep.subr.mxu0 0.0
      %3040 = vmatpush1.msra.mxu0 0.0
      %3041 = vmatprep.subr.mxu0 0.0
      %3042 = vmatpush1.msra.mxu0 0.0
      %3043 = vmatprep.subr.mxu0 0.0
      %3044 = vmatpush1.msra.mxu0 0.0
      %3045 = vmatprep.subr.mxu0 0.0
      %3046 = vmatpush1.msra.mxu0 0.0
      %3047 = vmatprep.subr.mxu0 0.0
      %3048 = vmatpush1.msra.mxu0 0.0
      %3049 = vmatprep.subr.mxu0 0.0
      %3050 = vmatpush1.msra.mxu0 0.0
      %3051 = vmatprep.subr.mxu0 0.0
      %3052 = vmatpush1.msra.mxu0 0.0
      %3053 = vmatprep.subr.mxu0 0.0
      %3054 = vmatpush1.msra.mxu0 0.0
      %3055 = vmatprep.subr.mxu0 0.0
      %3056 = vmatpush1.msra.mxu0 0.0
      %3057 = vmatprep.subr.mxu0 0.0
      %3058 = vmatpush1.msra.mxu0 0.0
      %3059 = vmatprep.subr.mxu0 0.0
      %3060 = vmatpush1.msra.mxu0 0.0
      %3061 = vmatprep.subr.mxu0 0.0
      %3062 = vmatpush1.msra.mxu0 0.0
      %3063 = vmatprep.subr.mxu0 0.0
      %3064 = vmatpush1.msra.mxu0 0.0
      %3065 = vmatprep.subr.mxu0 0.0
      %3066 = vmatpush1.msra.mxu0 0.0
      %3067 = vmatprep.subr.mxu0 0.0
      %3068 = vmatpush1.msra.mxu0 0.0
      %3069 = vmatprep.subr.mxu0 0.0
      %3070 = vmatpush1.msra.mxu0 0.0
      %3071 = vmatprep.subr.mxu0 0.0
      %3072 = vmatpush1.msra.mxu0 0.0
      %3073 = vmatprep.subr.mxu0 0.0
      %3074 = vmatpush1.msra.mxu0 0.0
      %3075 = vmatprep.subr.mxu0 0.0
      %3076 = vmatpush1.msra.mxu0 0.0
      %3077 = vmatprep.subr.mxu0 0.0
      %3078 = vmatpush1.msra.mxu0 0.0
      %3079 = vmatprep.subr.mxu0 0.0
      %3080 = vmatpush1.msra.mxu0 0.0
      %3081 = vmatprep.subr.mxu0 0.0
      %3082 = vmatpush1.msra.mxu0 0.0
      %3083 = vmatprep.subr.mxu0 0.0
      %3084 = vmatpush1.msra.mxu0 0.0
      %3085 = vmatprep.subr.mxu0 0.0
      %3086 = vmatpush1.msra.mxu0 0.0
      %3087 = vmatprep.subr.mxu0 0.0
      %3088 = vmatpush1.msra.mxu0 0.0
      %3089 = vmatprep.subr.mxu0 0.0
      %3090 = vmatpush1.msra.mxu0 0.0
      %3091 = vmatprep.subr.mxu0 0.0
      %3092 = vmatpush1.msra.mxu0 0.0
      %3093 = vmatprep.subr.mxu0 0.0
      %3094 = vmatpush1.msra.mxu0 0.0
      %3095 = vmatprep.subr.mxu0 0.0
      %3096 = vmatpush1.msra.mxu0 0.0
      %3097 = vmatprep.subr.mxu0 0.0
      %3098 = vmatpush1.msra.mxu0 0.0
      %3099 = vmatprep.subr.mxu0 0.0
      %3100 = vmatpush1.msra.mxu0 0.0
      %3101 = vmatprep.mubr.f32.mxu0 0.0
      %3102 = vmatmul.mubr.f32.gmra.mrb[0].mxu0 %v2964
      %v3103 = vpop.f32.mrb[0].mxu0
      %v3104 = vadd.f32 0.0, %v3103
      %v3105 = vpop.f32.mrb[0].mxu0
      %3106 = vdwg.mxu0
      %v3107 = vadd.f32 %v2947, %v3033
      %v3108 = vadd.f32 %v2948, %v3035
      %v3109 = vadd.f32 %v2949, %v3104
      %s3110 = scalar_lea.vmem %s2, 48
      %v3111 = vld [vmem:[%s3110] sm:$0xff]
      %3112 = vrot.lane.b32.xlu0 %v2161, 92
      %v3113 = vpop.permute.xlu0 %3112
      %3114 = vrot.lane.b32.xlu0 %v2162, 92
      %v3115 = vpop.permute.xlu0 %3114
      %3116 = vrot.lane.b32.xlu0 %v2163, 92
      %v3117 = vpop.permute.xlu0 %3116
      %v3118 = vsel %vm1455, %v3113, %v3115
      %v3119 = vsel %vm1455, %v3115, %v3117
      %v3124 = vsel %vm2181, %v3111, 0
      %3126 = vmatprep.subr.mxu0 %v3119
      %3127 = vmatpush1.msra.mxu0 %v3118
      %3128 = vmatprep.subr.mxu0 0.0
      %3129 = vmatpush1.msra.mxu0 0.0
      %3130 = vmatprep.subr.mxu0 0.0
      %3131 = vmatpush1.msra.mxu0 0.0
      %3132 = vmatprep.subr.mxu0 0.0
      %3133 = vmatpush1.msra.mxu0 0.0
      %3134 = vmatprep.subr.mxu0 0.0
      %3135 = vmatpush1.msra.mxu0 0.0
      %3136 = vmatprep.subr.mxu0 0.0
      %3137 = vmatpush1.msra.mxu0 0.0
      %3138 = vmatprep.subr.mxu0 0.0
      %3139 = vmatpush1.msra.mxu0 0.0
      %3140 = vmatprep.subr.mxu0 0.0
      %3141 = vmatpush1.msra.mxu0 0.0
      %3142 = vmatprep.subr.mxu0 0.0
      %3143 = vmatpush1.msra.mxu0 0.0
      %3144 = vmatprep.subr.mxu0 0.0
      %3145 = vmatpush1.msra.mxu0 0.0
      %3146 = vmatprep.subr.mxu0 0.0
      %3147 = vmatpush1.msra.mxu0 0.0
      %3148 = vmatprep.subr.mxu0 0.0
      %3149 = vmatpush1.msra.mxu0 0.0
      %3150 = vmatprep.subr.mxu0 0.0
      %3151 = vmatpush1.msra.mxu0 0.0
      %3152 = vmatprep.subr.mxu0 0.0
      %3153 = vmatpush1.msra.mxu0 0.0
      %3154 = vmatprep.subr.mxu0 0.0
      %3155 = vmatpush1.msra.mxu0 0.0
      %3156 = vmatprep.subr.mxu0 0.0
      %3157 = vmatpush1.msra.mxu0 0.0
      %3158 = vmatprep.subr.mxu0 0.0
      %3159 = vmatpush1.msra.mxu0 0.0
      %3160 = vmatprep.subr.mxu0 0.0
      %3161 = vmatpush1.msra.mxu0 0.0
      %3162 = vmatprep.subr.mxu0 0.0
      %3163 = vmatpush1.msra.mxu0 0.0
      %3164 = vmatprep.subr.mxu0 0.0
      %3165 = vmatpush1.msra.mxu0 0.0
      %3166 = vmatprep.subr.mxu0 0.0
      %3167 = vmatpush1.msra.mxu0 0.0
      %3168 = vmatprep.subr.mxu0 0.0
      %3169 = vmatpush1.msra.mxu0 0.0
      %3170 = vmatprep.subr.mxu0 0.0
      %3171 = vmatpush1.msra.mxu0 0.0
      %3172 = vmatprep.subr.mxu0 0.0
      %3173 = vmatpush1.msra.mxu0 0.0
      %3174 = vmatprep.subr.mxu0 0.0
      %3175 = vmatpush1.msra.mxu0 0.0
      %3176 = vmatprep.subr.mxu0 0.0
      %3177 = vmatpush1.msra.mxu0 0.0
      %3178 = vmatprep.subr.mxu0 0.0
      %3179 = vmatpush1.msra.mxu0 0.0
      %3180 = vmatprep.subr.mxu0 0.0
      %3181 = vmatpush1.msra.mxu0 0.0
      %3182 = vmatprep.subr.mxu0 0.0
      %3183 = vmatpush1.msra.mxu0 0.0
      %3184 = vmatprep.subr.mxu0 0.0
      %3185 = vmatpush1.msra.mxu0 0.0
      %3186 = vmatprep.subr.mxu0 0.0
      %3187 = vmatpush1.msra.mxu0 0.0
      %3188 = vmatprep.subr.mxu0 0.0
      %3189 = vmatpush1.msra.mxu0 0.0
      %3190 = vmatprep.mubr.f32.mxu0 0.0
      %3191 = vmatmul.mubr.f32.gmra.mrb[0].mxu0 %v3124
      %v3192 = vpop.f32.mrb[0].mxu0
      %v3193 = vadd.f32 0.0, %v3192
      %v3194 = vpop.f32.mrb[0].mxu0
      %v3195 = vadd.f32 0.0, %v3194
      %3196 = vdwg.mxu0
      %3197 = vmatprep.subr.mxu0 0.0
      %3198 = vmatpush1.msra.mxu0 %v3117
      %3199 = vmatprep.subr.mxu0 0.0
      %3200 = vmatpush1.msra.mxu0 0.0
      %3201 = vmatprep.subr.mxu0 0.0
      %3202 = vmatpush1.msra.mxu0 0.0
      %3203 = vmatprep.subr.mxu0 0.0
      %3204 = vmatpush1.msra.mxu0 0.0
      %3205 = vmatprep.subr.mxu0 0.0
      %3206 = vmatpush1.msra.mxu0 0.0
      %3207 = vmatprep.subr.mxu0 0.0
      %3208 = vmatpush1.msra.mxu0 0.0
      %3209 = vmatprep.subr.mxu0 0.0
      %3210 = vmatpush1.msra.mxu0 0.0
      %3211 = vmatprep.subr.mxu0 0.0
      %3212 = vmatpush1.msra.mxu0 0.0
      %3213 = vmatprep.subr.mxu0 0.0
      %3214 = vmatpush1.msra.mxu0 0.0
      %3215 = vmatprep.subr.mxu0 0.0
      %3216 = vmatpush1.msra.mxu0 0.0
      %3217 = vmatprep.subr.mxu0 0.0
      %3218 = vmatpush1.msra.mxu0 0.0
      %3219 = vmatprep.subr.mxu0 0.0
      %3220 = vmatpush1.msra.mxu0 0.0
      %3221 = vmatprep.subr.mxu0 0.0
      %3222 = vmatpush1.msra.mxu0 0.0
      %3223 = vmatprep.subr.mxu0 0.0
      %3224 = vmatpush1.msra.mxu0 0.0
      %3225 = vmatprep.subr.mxu0 0.0
      %3226 = vmatpush1.msra.mxu0 0.0
      %3227 = vmatprep.subr.mxu0 0.0
      %3228 = vmatpush1.msra.mxu0 0.0
      %3229 = vmatprep.subr.mxu0 0.0
      %3230 = vmatpush1.msra.mxu0 0.0
      %3231 = vmatprep.subr.mxu0 0.0
      %3232 = vmatpush1.msra.mxu0 0.0
      %3233 = vmatprep.subr.mxu0 0.0
      %3234 = vmatpush1.msra.mxu0 0.0
      %3235 = vmatprep.subr.mxu0 0.0
      %3236 = vmatpush1.msra.mxu0 0.0
      %3237 = vmatprep.subr.mxu0 0.0
      %3238 = vmatpush1.msra.mxu0 0.0
      %3239 = vmatprep.subr.mxu0 0.0
      %3240 = vmatpush1.msra.mxu0 0.0
      %3241 = vmatprep.subr.mxu0 0.0
      %3242 = vmatpush1.msra.mxu0 0.0
      %3243 = vmatprep.subr.mxu0 0.0
      %3244 = vmatpush1.msra.mxu0 0.0
      %3245 = vmatprep.subr.mxu0 0.0
      %3246 = vmatpush1.msra.mxu0 0.0
      %3247 = vmatprep.subr.mxu0 0.0
      %3248 = vmatpush1.msra.mxu0 0.0
      %3249 = vmatprep.subr.mxu0 0.0
      %3250 = vmatpush1.msra.mxu0 0.0
      %3251 = vmatprep.subr.mxu0 0.0
      %3252 = vmatpush1.msra.mxu0 0.0
      %3253 = vmatprep.subr.mxu0 0.0
      %3254 = vmatpush1.msra.mxu0 0.0
      %3255 = vmatprep.subr.mxu0 0.0
      %3256 = vmatpush1.msra.mxu0 0.0
      %3257 = vmatprep.subr.mxu0 0.0
      %3258 = vmatpush1.msra.mxu0 0.0
      %3259 = vmatprep.subr.mxu0 0.0
      %3260 = vmatpush1.msra.mxu0 0.0
      %3261 = vmatprep.mubr.f32.mxu0 0.0
      %3262 = vmatmul.mubr.f32.gmra.mrb[0].mxu0 %v3124
      %v3263 = vpop.f32.mrb[0].mxu0
      %v3264 = vadd.f32 0.0, %v3263
      %v3265 = vpop.f32.mrb[0].mxu0
      %3266 = vdwg.mxu0
      %v3267 = vadd.f32 %v3107, %v3193
      %v3268 = vadd.f32 %v3108, %v3195
      %v3269 = vadd.f32 %v3109, %v3264
      %s3270 = scalar_lea.vmem %s2, 56
      %v3271 = vld [vmem:[%s3270] sm:$0xff]
      %3272 = vrot.lane.b32.xlu0 %v2161, 91
      %v3273 = vpop.permute.xlu0 %3272
      %3274 = vrot.lane.b32.xlu0 %v2162, 91
      %v3275 = vpop.permute.xlu0 %3274
      %3276 = vrot.lane.b32.xlu0 %v2163, 91
      %v3277 = vpop.permute.xlu0 %3276
      %v3278 = vsel %vm1666, %v3273, %v3275
      %v3279 = vsel %vm1666, %v3275, %v3277
      %v3284 = vsel %vm2181, %v3271, 0
      %3286 = vmatprep.subr.mxu0 %v3279
      %3287 = vmatpush1.msra.mxu0 %v3278
      %3288 = vmatprep.subr.mxu0 0.0
      %3289 = vmatpush1.msra.mxu0 0.0
      %3290 = vmatprep.subr.mxu0 0.0
      %3291 = vmatpush1.msra.mxu0 0.0
      %3292 = vmatprep.subr.mxu0 0.0
      %3293 = vmatpush1.msra.mxu0 0.0
      %3294 = vmatprep.subr.mxu0 0.0
      %3295 = vmatpush1.msra.mxu0 0.0
      %3296 = vmatprep.subr.mxu0 0.0
      %3297 = vmatpush1.msra.mxu0 0.0
      %3298 = vmatprep.subr.mxu0 0.0
      %3299 = vmatpush1.msra.mxu0 0.0
      %3300 = vmatprep.subr.mxu0 0.0
      %3301 = vmatpush1.msra.mxu0 0.0
      %3302 = vmatprep.subr.mxu0 0.0
      %3303 = vmatpush1.msra.mxu0 0.0
      %3304 = vmatprep.subr.mxu0 0.0
      %3305 = vmatpush1.msra.mxu0 0.0
      %3306 = vmatprep.subr.mxu0 0.0
      %3307 = vmatpush1.msra.mxu0 0.0
      %3308 = vmatprep.subr.mxu0 0.0
      %3309 = vmatpush1.msra.mxu0 0.0
      %3310 = vmatprep.subr.mxu0 0.0
      %3311 = vmatpush1.msra.mxu0 0.0
      %3312 = vmatprep.subr.mxu0 0.0
      %3313 = vmatpush1.msra.mxu0 0.0
      %3314 = vmatprep.subr.mxu0 0.0
      %3315 = vmatpush1.msra.mxu0 0.0
      %3316 = vmatprep.subr.mxu0 0.0
      %3317 = vmatpush1.msra.mxu0 0.0
      %3318 = vmatprep.subr.mxu0 0.0
      %3319 = vmatpush1.msra.mxu0 0.0
      %3320 = vmatprep.subr.mxu0 0.0
      %3321 = vmatpush1.msra.mxu0 0.0
      %3322 = vmatprep.subr.mxu0 0.0
      %3323 = vmatpush1.msra.mxu0 0.0
      %3324 = vmatprep.subr.mxu0 0.0
      %3325 = vmatpush1.msra.mxu0 0.0
      %3326 = vmatprep.subr.mxu0 0.0
      %3327 = vmatpush1.msra.mxu0 0.0
      %3328 = vmatprep.subr.mxu0 0.0
      %3329 = vmatpush1.msra.mxu0 0.0
      %3330 = vmatprep.subr.mxu0 0.0
      %3331 = vmatpush1.msra.mxu0 0.0
      %3332 = vmatprep.subr.mxu0 0.0
      %3333 = vmatpush1.msra.mxu0 0.0
      %3334 = vmatprep.subr.mxu0 0.0
      %3335 = vmatpush1.msra.mxu0 0.0
      %3336 = vmatprep.subr.mxu0 0.0
      %3337 = vmatpush1.msra.mxu0 0.0
      %3338 = vmatprep.subr.mxu0 0.0
      %3339 = vmatpush1.msra.mxu0 0.0
      %3340 = vmatprep.subr.mxu0 0.0
      %3341 = vmatpush1.msra.mxu0 0.0
      %3342 = vmatprep.subr.mxu0 0.0
      %3343 = vmatpush1.msra.mxu0 0.0
      %3344 = vmatprep.subr.mxu0 0.0
      %3345 = vmatpush1.msra.mxu0 0.0
      %3346 = vmatprep.subr.mxu0 0.0
      %3347 = vmatpush1.msra.mxu0 0.0
      %3348 = vmatprep.subr.mxu0 0.0
      %3349 = vmatpush1.msra.mxu0 0.0
      %3350 = vmatprep.mubr.f32.mxu0 0.0
      %3351 = vmatmul.mubr.f32.gmra.mrb[0].mxu0 %v3284
      %v3352 = vpop.f32.mrb[0].mxu0
      %v3353 = vadd.f32 0.0, %v3352
      %v3354 = vpop.f32.mrb[0].mxu0
      %v3355 = vadd.f32 0.0, %v3354
      %3356 = vdwg.mxu0
      %3357 = vmatprep.subr.mxu0 0.0
      %3358 = vmatpush1.msra.mxu0 %v3277
      %3359 = vmatprep.subr.mxu0 0.0
      %3360 = vmatpush1.msra.mxu0 0.0
      %3361 = vmatprep.subr.mxu0 0.0
      %3362 = vmatpush1.msra.mxu0 0.0
      %3363 = vmatprep.subr.mxu0 0.0
      %3364 = vmatpush1.msra.mxu0 0.0
      %3365 = vmatprep.subr.mxu0 0.0
      %3366 = vmatpush1.msra.mxu0 0.0
      %3367 = vmatprep.subr.mxu0 0.0
      %3368 = vmatpush1.msra.mxu0 0.0
      %3369 = vmatprep.subr.mxu0 0.0
      %3370 = vmatpush1.msra.mxu0 0.0
      %3371 = vmatprep.subr.mxu0 0.0
      %3372 = vmatpush1.msra.mxu0 0.0
      %3373 = vmatprep.subr.mxu0 0.0
      %3374 = vmatpush1.msra.mxu0 0.0
      %3375 = vmatprep.subr.mxu0 0.0
      %3376 = vmatpush1.msra.mxu0 0.0
      %3377 = vmatprep.subr.mxu0 0.0
      %3378 = vmatpush1.msra.mxu0 0.0
      %3379 = vmatprep.subr.mxu0 0.0
      %3380 = vmatpush1.msra.mxu0 0.0
      %3381 = vmatprep.subr.mxu0 0.0
      %3382 = vmatpush1.msra.mxu0 0.0
      %3383 = vmatprep.subr.mxu0 0.0
      %3384 = vmatpush1.msra.mxu0 0.0
      %3385 = vmatprep.subr.mxu0 0.0
      %3386 = vmatpush1.msra.mxu0 0.0
      %3387 = vmatprep.subr.mxu0 0.0
      %3388 = vmatpush1.msra.mxu0 0.0
      %3389 = vmatprep.subr.mxu0 0.0
      %3390 = vmatpush1.msra.mxu0 0.0
      %3391 = vmatprep.subr.mxu0 0.0
      %3392 = vmatpush1.msra.mxu0 0.0
      %3393 = vmatprep.subr.mxu0 0.0
      %3394 = vmatpush1.msra.mxu0 0.0
      %3395 = vmatprep.subr.mxu0 0.0
      %3396 = vmatpush1.msra.mxu0 0.0
      %3397 = vmatprep.subr.mxu0 0.0
      %3398 = vmatpush1.msra.mxu0 0.0
      %3399 = vmatprep.subr.mxu0 0.0
      %3400 = vmatpush1.msra.mxu0 0.0
      %3401 = vmatprep.subr.mxu0 0.0
      %3402 = vmatpush1.msra.mxu0 0.0
      %3403 = vmatprep.subr.mxu0 0.0
      %3404 = vmatpush1.msra.mxu0 0.0
      %3405 = vmatprep.subr.mxu0 0.0
      %3406 = vmatpush1.msra.mxu0 0.0
      %3407 = vmatprep.subr.mxu0 0.0
      %3408 = vmatpush1.msra.mxu0 0.0
      %3409 = vmatprep.subr.mxu0 0.0
      %3410 = vmatpush1.msra.mxu0 0.0
      %3411 = vmatprep.subr.mxu0 0.0
      %3412 = vmatpush1.msra.mxu0 0.0
      %3413 = vmatprep.subr.mxu0 0.0
      %3414 = vmatpush1.msra.mxu0 0.0
      %3415 = vmatprep.subr.mxu0 0.0
      %3416 = vmatpush1.msra.mxu0 0.0
      %3417 = vmatprep.subr.mxu0 0.0
      %3418 = vmatpush1.msra.mxu0 0.0
      %3419 = vmatprep.subr.mxu0 0.0
      %3420 = vmatpush1.msra.mxu0 0.0
      %3421 = vmatprep.mubr.f32.mxu0 0.0
      %3422 = vmatmul.mubr.f32.gmra.mrb[0].mxu0 %v3284
      %v3423 = vpop.f32.mrb[0].mxu0
      %v3424 = vadd.f32 0.0, %v3423
      %v3425 = vpop.f32.mrb[0].mxu0
      %3426 = vdwg.mxu0
      %v3427 = vadd.f32 %v3267, %v3353
      %v3428 = vadd.f32 %v3268, %v3355
      %v3429 = vadd.f32 %v3269, %v3424
      %s3430 = scalar_lea.vmem %s2, 64
      %v3431 = vld [vmem:[%s3430] sm:$0xff]
      %3432 = vrot.lane.b32.xlu0 %v2161, 90
      %v3433 = vpop.permute.xlu0 %3432
      %3434 = vrot.lane.b32.xlu0 %v2162, 90
      %v3435 = vpop.permute.xlu0 %3434
      %3436 = vrot.lane.b32.xlu0 %v2163, 90
      %v3437 = vpop.permute.xlu0 %3436
      %v3438 = vsel %vm1877, %v3433, %v3435
      %v3439 = vsel %vm1877, %v3435, %v3437
      %v3444 = vsel %vm2181, %v3431, 0
      %3446 = vmatprep.subr.mxu0 %v3439
      %3447 = vmatpush1.msra.mxu0 %v3438
      %3448 = vmatprep.subr.mxu0 0.0
      %3449 = vmatpush1.msra.mxu0 0.0
      %3450 = vmatprep.subr.mxu0 0.0
      %3451 = vmatpush1.msra.mxu0 0.0
      %3452 = vmatprep.subr.mxu0 0.0
      %3453 = vmatpush1.msra.mxu0 0.0
      %3454 = vmatprep.subr.mxu0 0.0
      %3455 = vmatpush1.msra.mxu0 0.0
      %3456 = vmatprep.subr.mxu0 0.0
      %3457 = vmatpush1.msra.mxu0 0.0
      %3458 = vmatprep.subr.mxu0 0.0
      %3459 = vmatpush1.msra.mxu0 0.0
      %3460 = vmatprep.subr.mxu0 0.0
      %3461 = vmatpush1.msra.mxu0 0.0
      %3462 = vmatprep.subr.mxu0 0.0
      %3463 = vmatpush1.msra.mxu0 0.0
      %3464 = vmatprep.subr.mxu0 0.0
      %3465 = vmatpush1.msra.mxu0 0.0
      %3466 = vmatprep.subr.mxu0 0.0
      %3467 = vmatpush1.msra.mxu0 0.0
      %3468 = vmatprep.subr.mxu0 0.0
      %3469 = vmatpush1.msra.mxu0 0.0
      %3470 = vmatprep.subr.mxu0 0.0
      %3471 = vmatpush1.msra.mxu0 0.0
      %3472 = vmatprep.subr.mxu0 0.0
      %3473 = vmatpush1.msra.mxu0 0.0
      %3474 = vmatprep.subr.mxu0 0.0
      %3475 = vmatpush1.msra.mxu0 0.0
      %3476 = vmatprep.subr.mxu0 0.0
      %3477 = vmatpush1.msra.mxu0 0.0
      %3478 = vmatprep.subr.mxu0 0.0
      %3479 = vmatpush1.msra.mxu0 0.0
      %3480 = vmatprep.subr.mxu0 0.0
      %3481 = vmatpush1.msra.mxu0 0.0
      %3482 = vmatprep.subr.mxu0 0.0
      %3483 = vmatpush1.msra.mxu0 0.0
      %3484 = vmatprep.subr.mxu0 0.0
      %3485 = vmatpush1.msra.mxu0 0.0
      %3486 = vmatprep.subr.mxu0 0.0
      %3487 = vmatpush1.msra.mxu0 0.0
      %3488 = vmatprep.subr.mxu0 0.0
      %3489 = vmatpush1.msra.mxu0 0.0
      %3490 = vmatprep.subr.mxu0 0.0
      %3491 = vmatpush1.msra.mxu0 0.0
      %3492 = vmatprep.subr.mxu0 0.0
      %3493 = vmatpush1.msra.mxu0 0.0
      %3494 = vmatprep.subr.mxu0 0.0
      %3495 = vmatpush1.msra.mxu0 0.0
      %3496 = vmatprep.subr.mxu0 0.0
      %3497 = vmatpush1.msra.mxu0 0.0
      %3498 = vmatprep.subr.mxu0 0.0
      %3499 = vmatpush1.msra.mxu0 0.0
      %3500 = vmatprep.subr.mxu0 0.0
      %3501 = vmatpush1.msra.mxu0 0.0
      %3502 = vmatprep.subr.mxu0 0.0
      %3503 = vmatpush1.msra.mxu0 0.0
      %3504 = vmatprep.subr.mxu0 0.0
      %3505 = vmatpush1.msra.mxu0 0.0
      %3506 = vmatprep.subr.mxu0 0.0
      %3507 = vmatpush1.msra.mxu0 0.0
      %3508 = vmatprep.subr.mxu0 0.0
      %3509 = vmatpush1.msra.mxu0 0.0
      %3510 = vmatprep.mubr.f32.mxu0 0.0
      %3511 = vmatmul.mubr.f32.gmra.mrb[0].mxu0 %v3444
      %v3512 = vpop.f32.mrb[0].mxu0
      %v3513 = vadd.f32 0.0, %v3512
      %v3514 = vpop.f32.mrb[0].mxu0
      %v3515 = vadd.f32 0.0, %v3514
      %3516 = vdwg.mxu0
      %3517 = vmatprep.subr.mxu0 0.0
      %3518 = vmatpush1.msra.mxu0 %v3437
      %3519 = vmatprep.subr.mxu0 0.0
      %3520 = vmatpush1.msra.mxu0 0.0
      %3521 = vmatprep.subr.mxu0 0.0
      %3522 = vmatpush1.msra.mxu0 0.0
      %3523 = vmatprep.subr.mxu0 0.0
      %3524 = vmatpush1.msra.mxu0 0.0
      %3525 = vmatprep.subr.mxu0 0.0
      %3526 = vmatpush1.msra.mxu0 0.0
      %3527 = vmatprep.subr.mxu0 0.0
      %3528 = vmatpush1.msra.mxu0 0.0
      %3529 = vmatprep.subr.mxu0 0.0
      %3530 = vmatpush1.msra.mxu0 0.0
      %3531 = vmatprep.subr.mxu0 0.0
      %3532 = vmatpush1.msra.mxu0 0.0
      %3533 = vmatprep.subr.mxu0 0.0
      %3534 = vmatpush1.msra.mxu0 0.0
      %3535 = vmatprep.subr.mxu0 0.0
      %3536 = vmatpush1.msra.mxu0 0.0
      %3537 = vmatprep.subr.mxu0 0.0
      %3538 = vmatpush1.msra.mxu0 0.0
      %3539 = vmatprep.subr.mxu0 0.0
      %3540 = vmatpush1.msra.mxu0 0.0
      %3541 = vmatprep.subr.mxu0 0.0
      %3542 = vmatpush1.msra.mxu0 0.0
      %3543 = vmatprep.subr.mxu0 0.0
      %3544 = vmatpush1.msra.mxu0 0.0
      %3545 = vmatprep.subr.mxu0 0.0
      %3546 = vmatpush1.msra.mxu0 0.0
      %3547 = vmatprep.subr.mxu0 0.0
      %3548 = vmatpush1.msra.mxu0 0.0
      %3549 = vmatprep.subr.mxu0 0.0
      %3550 = vmatpush1.msra.mxu0 0.0
      %3551 = vmatprep.subr.mxu0 0.0
      %3552 = vmatpush1.msra.mxu0 0.0
      %3553 = vmatprep.subr.mxu0 0.0
      %3554 = vmatpush1.msra.mxu0 0.0
      %3555 = vmatprep.subr.mxu0 0.0
      %3556 = vmatpush1.msra.mxu0 0.0
      %3557 = vmatprep.subr.mxu0 0.0
      %3558 = vmatpush1.msra.mxu0 0.0
      %3559 = vmatprep.subr.mxu0 0.0
      %3560 = vmatpush1.msra.mxu0 0.0
      %3561 = vmatprep.subr.mxu0 0.0
      %3562 = vmatpush1.msra.mxu0 0.0
      %3563 = vmatprep.subr.mxu0 0.0
      %3564 = vmatpush1.msra.mxu0 0.0
      %3565 = vmatprep.subr.mxu0 0.0
      %3566 = vmatpush1.msra.mxu0 0.0
      %3567 = vmatprep.subr.mxu0 0.0
      %3568 = vmatpush1.msra.mxu0 0.0
      %3569 = vmatprep.subr.mxu0 0.0
      %3570 = vmatpush1.msra.mxu0 0.0
      %3571 = vmatprep.subr.mxu0 0.0
      %3572 = vmatpush1.msra.mxu0 0.0
      %3573 = vmatprep.subr.mxu0 0.0
      %3574 = vmatpush1.msra.mxu0 0.0
      %3575 = vmatprep.subr.mxu0 0.0
      %3576 = vmatpush1.msra.mxu0 0.0
      %3577 = vmatprep.subr.mxu0 0.0
      %3578 = vmatpush1.msra.mxu0 0.0
      %3579 = vmatprep.subr.mxu0 0.0
      %3580 = vmatpush1.msra.mxu0 0.0
      %3581 = vmatprep.mubr.f32.mxu0 0.0
      %3582 = vmatmul.mubr.f32.gmra.mrb[0].mxu0 %v3444
      %v3583 = vpop.f32.mrb[0].mxu0
      %v3584 = vadd.f32 0.0, %v3583
      %v3585 = vpop.f32.mrb[0].mxu0
      %3586 = vdwg.mxu0
      %v3587 = vadd.f32 %v3427, %v3513
      %v3588 = vadd.f32 %v3428, %v3515
      %v3589 = vadd.f32 %v3429, %v3584
      %v3590 = vadd.f32 %v2096, %v3587
      %v3591 = vadd.f32 %v2097, %v3588
      %v3592 = vadd.f32 %v2098, %v3589
      %v3593 = vtanh.pop %v3590
      %v3594 = vtanh.pop %v3591
      %v3595 = vtanh.pop %v3592
      %v3596 = vsub.f32 1.0, %v2130
      %v3597 = vsub.f32 1.0, %v2132
      %v3598 = vsub.f32 1.0, %v2134
      %v3599 = vmul.f32 %v3596, %v1034
      %v3600 = vmul.f32 %v3597, %v1035
      %v3601 = vmul.f32 %v3598, %v1026
      %v3602 = vmul.f32 %v2130, %v3593
      %v3603 = vmul.f32 %v2132, %v3594
      %v3604 = vmul.f32 %v2134, %v3595
      %v3605 = vadd.f32 %v3599, %v3602
      %v3606 = vadd.f32 %v3600, %v3603
      %v3607 = vadd.f32 %v3601, %v3604
      %3608 = vst [vmem:[%s197] sm:$0xff] %v3605
      %3609 = vst [vmem:[%s197 + $0x8] sm:$0xff] %v3606
      %vm3610 = vcmask 261120
      %3611 = vst.msk [vmem:[%s197 + $0x10] sm:$0xff] %vm3610, %v3607
      %p3612 = scmp.lt.s32.totalorder %s15, 1
      %s3613 = scalar_select %p3612, %s15, 1
      %s3614 = smul.addr %s3613, 3
      %s3615 = smul.addr %s3614, 8
      %s3616 = scalar_lea.vmem %s4, %s3615
      // Predicated region
      $region37: #{conv_gru_cell.1} parent=35 // pred_check
        %p3617 = pneg %p122
      $region38: #{conv_gru_cell.1} parent=35 // pred_check_branch
        %3619 = sbr.rel (%p3617) target = $region40
      $region39: #{conv_gru_cell.1} parent=35 // pred_region
        _
      $region40: #{conv_gru_cell.1} parent=35 // pred_fallthru
        _
    $region36: #{conv_gru_cell.1} parent=5 // pred_fallthru
      _
    %p3620 = scmp.le.s32.totalorder 2, %s10
    // Predicated region
    $region41: #{conv_gru_cell.1} parent=5 // pred_check
      %p3621 = pneg %p3620
    $region42: #{conv_gru_cell.1} parent=5 // pred_check_branch
      %3623 = sbr.rel (%p3621) target = $region44
    $region43: #{conv_gru_cell.1} parent=5 // pred_region
      %s3624 = ssub.s32 %s10, 2
      // Predicated region
      $region45: #{conv_gru_cell.1} parent=43 // pred_check
        %p3625 = pneg %p128
      $region46: #{conv_gru_cell.1} parent=43 // pred_check_branch
        %3627 = sbr.rel (%p3625) target = $region48
      $region47: #{conv_gru_cell.1} parent=43 // pred_region
        %p3628 = scmp.lt.s32.totalorder %s16, 1
        %s3629 = scalar_select %p3628, %s16, 1
        %s3630 = smul.addr %s3629, 3
        %s3631 = smul.addr %s3630, 8
        %s3632 = scalar_lea.vmem %s4, %s3631
      $region48: #{conv_gru_cell.1} parent=43 // pred_fallthru
        _
    $region44: #{conv_gru_cell.1} parent=5 // pred_fallthru
      _
  $region6: #{conv_gru_cell.1} parent=0 // loop_footer
    %s14 = sadd.s32 1, %s10
  $region7: #{conv_gru_cell.1} parent=0 // loop_footer_branch
    %9 = sbr.rel target = $region3
  $region8: #{conv_gru_cell.1} parent=0 // loop_exit
    _

</llo_original>
